<compile_context>
chip_gen: v6e
topology: v6e:2x2x1
jax: 0.10.0
libtpu: 0.0.40
codegen_flags: <defaults>
</compile_context>

<pallas_src>
import functools

import jax
import jax.numpy as jnp
from jax.experimental import pallas as pl
from jax.experimental.pallas import tpu as pltpu


# ----------------------------- fused kernel (Bb batches per grid step) -----------------
def _fused_stconv_kernel(x_ref, s_ref, w1_ref, b1_ref, wgc_ref, bs_ref,
                         w2_ref, b2_ref, gamma_ref, beta_ref, o_ref, *, kt, pad):
    f32 = jnp.float32
    mm = x_ref.dtype                       # matmul-operand dtype (bf16 or f32)
    nc1 = wgc_ref.shape[0]                 # N*c1

    x2d = x_ref[...]                       # (M, N*c0)  M = Bb*T

    def temporal_conv(xin, w_ref):
        # sum_dt  shift_dt(xin) @ W_dt.  Time shifts are MXU matmuls with the
        # block-diagonal 0/1 matrices in s_ref (zero 'same' padding, batch-safe),
        # so no padded-concat copies are materialized.
        acc = None
        for dt in range(kt):
            xs = xin if dt == pad else jnp.dot(
                s_ref[dt], xin, preferred_element_type=f32).astype(mm)
            term = jnp.dot(xs, w_ref[dt], preferred_element_type=f32)
            acc = term if acc is None else acc + term
        return acc

    # ---- Stage 1: temporal conv + GLU (Align zero-pad residual folded into w1). ----
    conv1 = temporal_conv(x2d, w1_ref) + b1_ref[...]        # (M, 2*N*c1) f32
    x_t1 = conv1[:, :nc1] * jax.nn.sigmoid(conv1[:, nc1:])  # (M, N*c1)   f32

    # ---- Stage 2: Chebyshev graph conv as ONE matmul (Lk/theta/residual folded). ----
    x_s = jnp.maximum(
        jnp.dot(x_t1.astype(mm), wgc_ref[...], preferred_element_type=f32)
        + bs_ref[...], 0.0)                                  # (M, N*c1) f32

    # ---- Stage 3: temporal conv + ReLU (Align zero-pad residual folded into w2). ----
    y = jnp.maximum(temporal_conv(x_s.astype(mm), w2_ref) + b2_ref[...], 0.0)

    # ---- LayerNorm([N, c2]) per (b, t) == single minor-axis reduction here. ----
    mean = jnp.mean(y, axis=-1, keepdims=True)
    cen = y - mean
    var = jnp.mean(cen * cen, axis=-1, keepdims=True)
    # TODO(synk): Dropout is identity in eval mode (no RNG mask applied here).
    o_ref[...] = (cen * jax.lax.rsqrt(var + 1e-5)) * gamma_ref[...] + beta_ref[...]


# ----------------------------------- wrapper --------------------------------------------
def st_conv_block_forward(x_nchw, params, *, kt, batch_block=None,
                          matmul_dtype=jnp.bfloat16):
    """x_nchw: (B, c0, T, N) as in the PyTorch module. Returns (B, c2, T, N)."""
    B, c0, T, N = x_nchw.shape
    c1 = params["wa"].shape[2]
    c2 = params["w2"].shape[2]
    assert kt % 2 == 1, "symmetric 'same' temporal padding assumes odd kt"
    pad = (kt - 1) // 2
    # TODO(synk): Align's 1x1-conv branch (c_in > c_out) is not implemented.
    assert c0 <= c1 <= c2

    # Batch block: largest divisor of B that keeps grid >= 2 (two v7x TensorCores)
    # and (Bb*T) % 8 == 0 (sublane rule for the row block).
    if batch_block is None:
        cands = [d for d in range(1, max(B // 2, 1) + 1)
                 if B % d == 0 and (d * T) % 8 == 0]
        batch_block = max(cands) if cands else B
    Bb = batch_block
    assert B % Bb == 0
    assert Bb == B or (Bb * T) % 8 == 0

    NC0, NC1, NC2 = N * c0, N * c1, N * c2
    f32, mm, hp = jnp.float32, matmul_dtype, jax.lax.Precision.HIGHEST
    M = Bb * T

    # NCHW -> (B*T, N*c0): lane-dense, contiguous rows for the input DMA.
    x_flat = jnp.transpose(x_nchw, (0, 2, 3, 1)).reshape(B * T, NC0).astype(mm)

    eyeN = jnp.eye(N, dtype=f32)

    # Stage-1 weights: fold Align residual (zero-pad c0->c1) into the centre tap of
    # the value half, expand over nodes (block-diagonal), columns = [value | gate].
    wa = params["wa"].astype(f32).at[pad].add(jnp.eye(c0, c1, dtype=f32))
    w_val = jnp.einsum('mn,dio->dmino', eyeN, wa).reshape(kt, NC0, NC1)
    w_gate = jnp.einsum('mn,dio->dmino', eyeN,
                        params["wg"].astype(f32)).reshape(kt, NC0, NC1)
    w1_big = jnp.concatenate([w_val, w_gate], axis=-1).astype(mm)   # (kt, NC0, 2*NC1)
    b1_flat = jnp.concatenate([jnp.tile(params["ba"], (1, N)),
                               jnp.tile(params["bg"], (1, N))], axis=-1).astype(f32)

    # Graph conv: sum_k Lk[k] (x) theta[k] + identity residual, folded into one
    # (N*c1, N*c1) operator (zero transposes in-kernel).
    wgc = (jnp.einsum('knm,kio->mino', params["Lk"].astype(f32),
                      params["theta"].astype(f32), precision=hp).reshape(NC1, NC1)
           + jnp.eye(NC1, dtype=f32)).astype(mm)
    bs_flat = jnp.tile(params["bs"], (1, N)).astype(f32)

    # Stage-3 weights: fold Align residual (zero-pad c1->c2) into the centre tap.
    w2 = params["w2"].astype(f32).at[pad].add(jnp.eye(c1, c2, dtype=f32))
    w2_big = jnp.einsum('mn,dio->dmino', eyeN, w2).reshape(kt, NC1, NC2).astype(mm)
    b2_flat = jnp.tile(params["b2"], (1, N)).astype(f32)

    gamma_flat = params["gamma"].reshape(1, NC2).astype(f32)
    beta_flat = params["beta"].reshape(1, NC2).astype(f32)

    # Temporal shift matrices: block-diagonal over the Bb batches of a grid step,
    # zero outside [0, T) (i.e. 'same' zero padding).  Shifting becomes MXU work.
    r = jnp.arange(M)
    b_o, b_i = r[:, None] // T, r[None, :] // T
    t_o, t_i = r[:, None] % T, r[None, :] % T
    s_mats = jnp.stack([((b_o == b_i) & (t_i == t_o + (dt - pad))).astype(mm)
                        for dt in range(kt)])                        # (kt, M, M)

    kernel = functools.partial(_fused_stconv_kernel, kt=kt, pad=pad)

    def _const_spec(a):
        nd = a.ndim
        return pl.BlockSpec(a.shape, lambda g, _nd=nd: (0,) * _nd)

    y_flat = pl.pallas_call(
        kernel,
        out_shape=jax.ShapeDtypeStruct((B * T, NC2), f32),
        grid=(B // Bb,),
        in_specs=[
            pl.BlockSpec((M, NC0), lambda g: (g, 0)),
            _const_spec(s_mats), _const_spec(w1_big), _const_spec(b1_flat),
            _const_spec(wgc), _const_spec(bs_flat),
            _const_spec(w2_big), _const_spec(b2_flat),
            _const_spec(gamma_flat), _const_spec(beta_flat),
        ],
        out_specs=pl.BlockSpec((M, NC2), lambda g: (g, 0)),
        compiler_params=pltpu.CompilerParams(dimension_semantics=("parallel",)),
    )(x_flat, s_mats, w1_big, b1_flat, wgc, bs_flat, w2_big, b2_flat,
      gamma_flat, beta_flat)

    # permute(0,2,3,1).permute(0,3,1,2) in the PyTorch forward is an identity.
    return jnp.transpose(y_flat.reshape(B, T, N, c2), (0, 3, 1, 2))   # (B, c2, T, N)


# ------------------------------ plain-JAX reference (for checking) ----------------------
def reference_forward(x_nchw, params, *, kt):
    hp = jax.lax.Precision.HIGHEST
    B, c0, T, N = x_nchw.shape
    c1 = params["wa"].shape[2]
    c2 = params["w2"].shape[2]
    pad = (kt - 1) // 2
    x = jnp.transpose(x_nchw, (0, 2, 3, 1))
    xp = jnp.pad(x, ((0, 0), (pad, pad), (0, 0), (0, 0)))
    a = sum(jnp.einsum('btni,io->btno', xp[:, d:d + T], params["wa"][d], precision=hp)
            for d in range(kt)) + params["ba"]
    g = sum(jnp.einsum('btni,io->btno', xp[:, d:d + T], params["wg"][d], precision=hp)
            for d in range(kt)) + params["bg"]
    x_in1 = jnp.pad(x, ((0, 0), (0, 0), (0, 0), (0, c1 - c0)))
    x_t1 = (a + x_in1) * jax.nn.sigmoid(g)
    x_gc = jnp.einsum('kio,knm,btmi->btno', params["theta"], params["Lk"], x_t1,
                      precision=hp)
    x_s = jnp.maximum(x_gc + params["bs"] + x_t1, 0.0)
    xsp = jnp.pad(x_s, ((0, 0), (pad, pad), (0, 0), (0, 0)))
    conv = sum(jnp.einsum('btni,io->btno', xsp[:, d:d + T], params["w2"][d], precision=hp)
               for d in range(kt)) + params["b2"]
    xs_in = jnp.pad(x_s, ((0, 0), (0, 0), (0, 0), (0, c2 - c1)))
    y = jnp.maximum(conv + xs_in, 0.0)
    mean = jnp.mean(y, axis=(2, 3), keepdims=True)
    var = jnp.mean((y - mean) ** 2, axis=(2, 3), keepdims=True)
    yn = (y - mean) * jax.lax.rsqrt(var + 1e-5)
    out = yn * params["gamma"] + params["beta"]
    return jnp.transpose(out, (0, 3, 1, 2))


if __name__ == "__main__":
    B, T, N = 4, 16, 16                 # batch, time steps, graph nodes
    c0, c1, c2 = 4, 16, 32              # c = [c0, c1, c2] as in STConvBlock
    kt, ks = 3, 3                       # temporal / spatial (Chebyshev) kernel sizes

    keys = jax.random.split(jax.random.PRNGKey(0), 12)
    x = jax.random.normal(keys[0], (B, c0, T, N), jnp.float32)
    params = {
        "wa":    0.3 * jax.random.normal(keys[1], (kt, c0, c1), jnp.float32),
        "wg":    0.3 * jax.random.normal(keys[2], (kt, c0, c1), jnp.float32),
        "ba":    0.1 * jax.random.normal(keys[3], (1, c1), jnp.float32),
        "bg":    0.1 * jax.random.normal(keys[4], (1, c1), jnp.float32),
        "Lk":    0.3 * jax.random.normal(keys[5], (ks, N, N), jnp.float32),
        "theta": 0.3 * jax.random.normal(keys[6], (ks, c1, c1), jnp.float32),
        "bs":    0.1 * jax.random.normal(keys[7], (1, c1), jnp.float32),
        "w2":    0.3 * jax.random.normal(keys[8], (kt, c1, c2), jnp.float32),
        "b2":    0.1 * jax.random.normal(keys[9], (1, c2), jnp.float32),
        "gamma": 1.0 + 0.1 * jax.random.normal(keys[10], (N, c2), jnp.float32),
        "beta":  0.1 * jax.random.normal(keys[11], (N, c2), jnp.float32),
    }

    ref = jax.block_until_ready(reference_forward(x, params, kt=kt))

    # f32 MXU-operand path (validation mode).
    out_f32 = jax.block_until_ready(
        st_conv_block_forward(x, params, kt=kt, matmul_dtype=jnp.float32))
    assert out_f32.shape == (B, c2, T, N), out_f32.shape
    assert jnp.allclose(out_f32, ref, atol=5e-2, rtol=5e-2), \
        float(jnp.max(jnp.abs(out_f32 - ref)))

    # Default fast path: bf16 MXU operands, f32 accumulation/element-wise math.
    out_bf16 = jax.block_until_ready(st_conv_block_forward(x, params, kt=kt))
    assert out_bf16.shape == (B, c2, T, N), out_bf16.shape
    assert jnp.allclose(out_bf16, ref, atol=1e-1, rtol=1e-1), \
        float(jnp.max(jnp.abs(out_bf16 - ref)))

    print("KERNEL_OK")
</pallas_src>

<mosaic_0001>
module attributes {stable_mosaic.version = 11 : i64} {
  func.func @_fused_stconv_kernel(%arg0: i32, %arg1: memref<32x64xf32, #tpu.memory_space<vmem>>, %arg2: memref<3x32x32xf32, #tpu.memory_space<vmem>>, %arg3: memref<3x64x512xf32, #tpu.memory_space<vmem>>, %arg4: memref<1x512xf32, #tpu.memory_space<vmem>>, %arg5: memref<256x256xf32, #tpu.memory_space<vmem>>, %arg6: memref<1x256xf32, #tpu.memory_space<vmem>>, %arg7: memref<3x256x512xf32, #tpu.memory_space<vmem>>, %arg8: memref<1x512xf32, #tpu.memory_space<vmem>>, %arg9: memref<1x512xf32, #tpu.memory_space<vmem>>, %arg10: memref<1x512xf32, #tpu.memory_space<vmem>>, %arg11: memref<32x512xf32, #tpu.memory_space<vmem>>) attributes {dimension_semantics = [#tpu.dimension_semantics<parallel>], iteration_bounds = array<i64: 2>, scalar_prefetch = 0 : i64, scratch_operands = 0 : i64, tpu.core_type = #tpu.core_type<tc>, window_params = [{transform_indices = @transform_0, window_bounds = array<i64: 32, 64>}, {pipeline_mode = #tpu.pipeline_mode<synchronous>, transform_indices = @transform_1, window_bounds = array<i64: 3, 32, 32>}, {pipeline_mode = #tpu.pipeline_mode<synchronous>, transform_indices = @transform_2, window_bounds = array<i64: 3, 64, 512>}, {pipeline_mode = #tpu.pipeline_mode<synchronous>, transform_indices = @transform_3, window_bounds = array<i64: 1, 512>}, {pipeline_mode = #tpu.pipeline_mode<synchronous>, transform_indices = @transform_4, window_bounds = array<i64: 256, 256>}, {pipeline_mode = #tpu.pipeline_mode<synchronous>, transform_indices = @transform_5, window_bounds = array<i64: 1, 256>}, {pipeline_mode = #tpu.pipeline_mode<synchronous>, transform_indices = @transform_6, window_bounds = array<i64: 3, 256, 512>}, {pipeline_mode = #tpu.pipeline_mode<synchronous>, transform_indices = @transform_7, window_bounds = array<i64: 1, 512>}, {pipeline_mode = #tpu.pipeline_mode<synchronous>, transform_indices = @transform_8, window_bounds = array<i64: 1, 512>}, {pipeline_mode = #tpu.pipeline_mode<synchronous>, transform_indices = @transform_9, window_bounds = array<i64: 1, 512>}, {transform_indices = @transform_10, window_bounds = array<i64: 32, 512>}]} {
    %c0 = arith.constant 0 : index
    %c0_0 = arith.constant 0 : index
    %0 = vector.load %arg1[%c0, %c0_0] : memref<32x64xf32, #tpu.memory_space<vmem>>, vector<32x64xf32>
    %c0_1 = arith.constant 0 : index
    %c0_2 = arith.constant 0 : index
    %c0_3 = arith.constant 0 : index
    %1 = vector.load %arg2[%c0_1, %c0_2, %c0_3] : memref<3x32x32xf32, #tpu.memory_space<vmem>>, vector<1x32x32xf32>
    %2 = vector.shape_cast %1 : vector<1x32x32xf32> to vector<32x32xf32>
    %cst = arith.constant dense<0.000000e+00> : vector<32x64xf32>
    %3 = tpu.matmul %2, %0, %cst {dimension_numbers = #tpu.dot_dimension_numbers<[1], [0], [0], [1], [0, 0, 1, 1], [], []>} : vector<32x32xf32>, vector<32x64xf32>, vector<32x64xf32> -> vector<32x64xf32>
    %c0_4 = arith.constant 0 : index
    %c0_5 = arith.constant 0 : index
    %c0_6 = arith.constant 0 : index
    %4 = vector.load %arg3[%c0_4, %c0_5, %c0_6] : memref<3x64x512xf32, #tpu.memory_space<vmem>>, vector<1x64x512xf32>
    %5 = vector.shape_cast %4 : vector<1x64x512xf32> to vector<64x512xf32>
    %cst_7 = arith.constant dense<0.000000e+00> : vector<32x512xf32>
    %6 = tpu.matmul %3, %5, %cst_7 {dimension_numbers = #tpu.dot_dimension_numbers<[1], [0], [0], [1], [0, 0, 1, 1], [], []>} : vector<32x64xf32>, vector<64x512xf32>, vector<32x512xf32> -> vector<32x512xf32>
    %c1 = arith.constant 1 : index
    %c0_8 = arith.constant 0 : index
    %c0_9 = arith.constant 0 : index
    %7 = vector.load %arg3[%c1, %c0_8, %c0_9] : memref<3x64x512xf32, #tpu.memory_space<vmem>>, vector<1x64x512xf32>
    %8 = vector.shape_cast %7 : vector<1x64x512xf32> to vector<64x512xf32>
    %cst_10 = arith.constant dense<0.000000e+00> : vector<32x512xf32>
    %9 = tpu.matmul %0, %8, %cst_10 {dimension_numbers = #tpu.dot_dimension_numbers<[1], [0], [0], [1], [0, 0, 1, 1], [], []>} : vector<32x64xf32>, vector<64x512xf32>, vector<32x512xf32> -> vector<32x512xf32>
    %10 = arith.addf %6, %9 : vector<32x512xf32>
    %c2 = arith.constant 2 : index
    %c0_11 = arith.constant 0 : index
    %c0_12 = arith.constant 0 : index
    %11 = vector.load %arg2[%c2, %c0_11, %c0_12] : memref<3x32x32xf32, #tpu.memory_space<vmem>>, vector<1x32x32xf32>
    %12 = vector.shape_cast %11 : vector<1x32x32xf32> to vector<32x32xf32>
    %cst_13 = arith.constant dense<0.000000e+00> : vector<32x64xf32>
    %13 = tpu.matmul %12, %0, %cst_13 {dimension_numbers = #tpu.dot_dimension_numbers<[1], [0], [0], [1], [0, 0, 1, 1], [], []>} : vector<32x32xf32>, vector<32x64xf32>, vector<32x64xf32> -> vector<32x64xf32>
    %c2_14 = arith.constant 2 : index
    %c0_15 = arith.constant 0 : index
    %c0_16 = arith.constant 0 : index
    %14 = vector.load %arg3[%c2_14, %c0_15, %c0_16] : memref<3x64x512xf32, #tpu.memory_space<vmem>>, vector<1x64x512xf32>
    %15 = vector.shape_cast %14 : vector<1x64x512xf32> to vector<64x512xf32>
    %cst_17 = arith.constant dense<0.000000e+00> : vector<32x512xf32>
    %16 = tpu.matmul %13, %15, %cst_17 {dimension_numbers = #tpu.dot_dimension_numbers<[1], [0], [0], [1], [0, 0, 1, 1], [], []>} : vector<32x64xf32>, vector<64x512xf32>, vector<32x512xf32> -> vector<32x512xf32>
    %17 = arith.addf %10, %16 : vector<32x512xf32>
    %c0_18 = arith.constant 0 : index
    %c0_19 = arith.constant 0 : index
    %18 = vector.load %arg4[%c0_18, %c0_19] : memref<1x512xf32, #tpu.memory_space<vmem>>, vector<1x512xf32>
    %19 = vector.broadcast %18 : vector<1x512xf32> to vector<32x512xf32>
    %20 = arith.addf %17, %19 : vector<32x512xf32>
    %21 = vector.extract_strided_slice %20 {offsets = [0, 0], sizes = [32, 256], strides = [1, 1]} : vector<32x512xf32> to vector<32x256xf32>
    %22 = vector.extract_strided_slice %20 {offsets = [0, 256], sizes = [32, 256], strides = [1, 1]} : vector<32x512xf32> to vector<32x256xf32>
    %23 = arith.negf %22 : vector<32x256xf32>
    %24 = math.exp %23 : vector<32x256xf32>
    %cst_20 = arith.constant 1.000000e+00 : f32
    %25 = vector.broadcast %cst_20 : f32 to vector<32x256xf32>
    %26 = arith.addf %25, %24 : vector<32x256xf32>
    %27 = arith.divf %25, %26 : vector<32x256xf32>
    %28 = arith.mulf %21, %27 : vector<32x256xf32>
    %c0_21 = arith.constant 0 : index
    %c0_22 = arith.constant 0 : index
    %29 = vector.load %arg5[%c0_21, %c0_22] : memref<256x256xf32, #tpu.memory_space<vmem>>, vector<256x256xf32>
    %cst_23 = arith.constant dense<0.000000e+00> : vector<32x256xf32>
    %30 = tpu.matmul %28, %29, %cst_23 {dimension_numbers = #tpu.dot_dimension_numbers<[1], [0], [0], [1], [0, 0, 1, 1], [], []>} : vector<32x256xf32>, vector<256x256xf32>, vector<32x256xf32> -> vector<32x256xf32>
    %c0_24 = arith.constant 0 : index
    %c0_25 = arith.constant 0 : index
    %31 = vector.load %arg6[%c0_24, %c0_25] : memref<1x256xf32, #tpu.memory_space<vmem>>, vector<1x256xf32>
    %32 = vector.broadcast %31 : vector<1x256xf32> to vector<32x256xf32>
    %33 = arith.addf %30, %32 : vector<32x256xf32>
    %cst_26 = arith.constant 0.000000e+00 : f32
    %34 = vector.broadcast %cst_26 : f32 to vector<32x256xf32>
    %35 = arith.maximumf %33, %34 : vector<32x256xf32>
    %c0_27 = arith.constant 0 : index
    %c0_28 = arith.constant 0 : index
    %c0_29 = arith.constant 0 : index
    %36 = vector.load %arg2[%c0_27, %c0_28, %c0_29] : memref<3x32x32xf32, #tpu.memory_space<vmem>>, vector<1x32x32xf32>
    %37 = vector.shape_cast %36 : vector<1x32x32xf32> to vector<32x32xf32>
    %cst_30 = arith.constant dense<0.000000e+00> : vector<32x256xf32>
    %38 = tpu.matmul %37, %35, %cst_30 {dimension_numbers = #tpu.dot_dimension_numbers<[1], [0], [0], [1], [0, 0, 1, 1], [], []>} : vector<32x32xf32>, vector<32x256xf32>, vector<32x256xf32> -> vector<32x256xf32>
    %c0_31 = arith.constant 0 : index
    %c0_32 = arith.constant 0 : index
    %c0_33 = arith.constant 0 : index
    %39 = vector.load %arg7[%c0_31, %c0_32, %c0_33] : memref<3x256x512xf32, #tpu.memory_space<vmem>>, vector<1x256x512xf32>
    %40 = vector.shape_cast %39 : vector<1x256x512xf32> to vector<256x512xf32>
    %cst_34 = arith.constant dense<0.000000e+00> : vector<32x512xf32>
    %41 = tpu.matmul %38, %40, %cst_34 {dimension_numbers = #tpu.dot_dimension_numbers<[1], [0], [0], [1], [0, 0, 1, 1], [], []>} : vector<32x256xf32>, vector<256x512xf32>, vector<32x512xf32> -> vector<32x512xf32>
    %c1_35 = arith.constant 1 : index
    %c0_36 = arith.constant 0 : index
    %c0_37 = arith.constant 0 : index
    %42 = vector.load %arg7[%c1_35, %c0_36, %c0_37] : memref<3x256x512xf32, #tpu.memory_space<vmem>>, vector<1x256x512xf32>
    %43 = vector.shape_cast %42 : vector<1x256x512xf32> to vector<256x512xf32>
    %cst_38 = arith.constant dense<0.000000e+00> : vector<32x512xf32>
    %44 = tpu.matmul %35, %43, %cst_38 {dimension_numbers = #tpu.dot_dimension_numbers<[1], [0], [0], [1], [0, 0, 1, 1], [], []>} : vector<32x256xf32>, vector<256x512xf32>, vector<32x512xf32> -> vector<32x512xf32>
    %45 = arith.addf %41, %44 : vector<32x512xf32>
    %c2_39 = arith.constant 2 : index
    %c0_40 = arith.constant 0 : index
    %c0_41 = arith.constant 0 : index
    %46 = vector.load %arg2[%c2_39, %c0_40, %c0_41] : memref<3x32x32xf32, #tpu.memory_space<vmem>>, vector<1x32x32xf32>
    %47 = vector.shape_cast %46 : vector<1x32x32xf32> to vector<32x32xf32>
    %cst_42 = arith.constant dense<0.000000e+00> : vector<32x256xf32>
    %48 = tpu.matmul %47, %35, %cst_42 {dimension_numbers = #tpu.dot_dimension_numbers<[1], [0], [0], [1], [0, 0, 1, 1], [], []>} : vector<32x32xf32>, vector<32x256xf32>, vector<32x256xf32> -> vector<32x256xf32>
    %c2_43 = arith.constant 2 : index
    %c0_44 = arith.constant 0 : index
    %c0_45 = arith.constant 0 : index
    %49 = vector.load %arg7[%c2_43, %c0_44, %c0_45] : memref<3x256x512xf32, #tpu.memory_space<vmem>>, vector<1x256x512xf32>
    %50 = vector.shape_cast %49 : vector<1x256x512xf32> to vector<256x512xf32>
    %cst_46 = arith.constant dense<0.000000e+00> : vector<32x512xf32>
    %51 = tpu.matmul %48, %50, %cst_46 {dimension_numbers = #tpu.dot_dimension_numbers<[1], [0], [0], [1], [0, 0, 1, 1], [], []>} : vector<32x256xf32>, vector<256x512xf32>, vector<32x512xf32> -> vector<32x512xf32>
    %52 = arith.addf %45, %51 : vector<32x512xf32>
    %c0_47 = arith.constant 0 : index
    %c0_48 = arith.constant 0 : index
    %53 = vector.load %arg8[%c0_47, %c0_48] : memref<1x512xf32, #tpu.memory_space<vmem>>, vector<1x512xf32>
    %54 = vector.broadcast %53 : vector<1x512xf32> to vector<32x512xf32>
    %55 = arith.addf %52, %54 : vector<32x512xf32>
    %cst_49 = arith.constant 0.000000e+00 : f32
    %56 = vector.broadcast %cst_49 : f32 to vector<32x512xf32>
    %57 = arith.maximumf %55, %56 : vector<32x512xf32>
    %cst_50 = arith.constant dense<0.000000e+00> : vector<32xf32>
    %58 = vector.multi_reduction <add>, %57, %cst_50 [1] : vector<32x512xf32> to vector<32xf32>
    %59 = vector.shape_cast %58 : vector<32xf32> to vector<32x1xf32>
    %cst_51 = arith.constant 5.120000e+02 : f32
    %60 = vector.broadcast %cst_51 : f32 to vector<32x1xf32>
    %61 = arith.divf %59, %60 : vector<32x1xf32>
    %62 = vector.broadcast %61 : vector<32x1xf32> to vector<32x512xf32>
    %63 = arith.subf %57, %62 : vector<32x512xf32>
    %64 = arith.mulf %63, %63 : vector<32x512xf32>
    %cst_52 = arith.constant dense<0.000000e+00> : vector<32xf32>
    %65 = vector.multi_reduction <add>, %64, %cst_52 [1] : vector<32x512xf32> to vector<32xf32>
    %66 = vector.shape_cast %65 : vector<32xf32> to vector<32x1xf32>
    %cst_53 = arith.constant 5.120000e+02 : f32
    %67 = vector.broadcast %cst_53 : f32 to vector<32x1xf32>
    %68 = arith.divf %66, %67 : vector<32x1xf32>
    %cst_54 = arith.constant 9.99999974E-6 : f32
    %69 = vector.broadcast %cst_54 : f32 to vector<32x1xf32>
    %70 = arith.addf %68, %69 : vector<32x1xf32>
    %71 = math.rsqrt %70 : vector<32x1xf32>
    %72 = vector.broadcast %71 : vector<32x1xf32> to vector<32x512xf32>
    %73 = arith.mulf %63, %72 : vector<32x512xf32>
    %c0_55 = arith.constant 0 : index
    %c0_56 = arith.constant 0 : index
    %74 = vector.load %arg9[%c0_55, %c0_56] : memref<1x512xf32, #tpu.memory_space<vmem>>, vector<1x512xf32>
    %75 = vector.broadcast %74 : vector<1x512xf32> to vector<32x512xf32>
    %76 = arith.mulf %73, %75 : vector<32x512xf32>
    %c0_57 = arith.constant 0 : index
    %c0_58 = arith.constant 0 : index
    %77 = vector.load %arg10[%c0_57, %c0_58] : memref<1x512xf32, #tpu.memory_space<vmem>>, vector<1x512xf32>
    %78 = vector.broadcast %77 : vector<1x512xf32> to vector<32x512xf32>
    %79 = arith.addf %76, %78 : vector<32x512xf32>
    %c0_59 = arith.constant 0 : index
    %c0_60 = arith.constant 0 : index
    %80 = vector.load %arg11[%c0_59, %c0_60] : memref<32x512xf32, #tpu.memory_space<vmem>>, vector<32x512xf32>
    tpu.vector_store %arg11[%c0_59, %c0_60], %79 {strides = array<i32>} : memref<32x512xf32, #tpu.memory_space<vmem>>, vector<32x512xf32>,
    return
  }
  func.func @transform_0(%arg0: i32) -> (i32, i32) {
    %c0_i32 = arith.constant 0 : i32
    %c0_i32_0 = arith.constant 0 : i32
    return %arg0, %c0_i32 : i32, i32
  }
  func.func @transform_1(%arg0: i32) -> (i32, i32, i32) {
    %c0_i32 = arith.constant 0 : i32
    %c0_i32_0 = arith.constant 0 : i32
    %c0_i32_1 = arith.constant 0 : i32
    %c0_i32_2 = arith.constant 0 : i32
    return %c0_i32, %c0_i32_0, %c0_i32_1 : i32, i32, i32
  }
  func.func @transform_2(%arg0: i32) -> (i32, i32, i32) {
    %c0_i32 = arith.constant 0 : i32
    %c0_i32_0 = arith.constant 0 : i32
    %c0_i32_1 = arith.constant 0 : i32
    %c0_i32_2 = arith.constant 0 : i32
    return %c0_i32, %c0_i32_0, %c0_i32_1 : i32, i32, i32
  }
  func.func @transform_3(%arg0: i32) -> (i32, i32) {
    %c0_i32 = arith.constant 0 : i32
    %c0_i32_0 = arith.constant 0 : i32
    %c0_i32_1 = arith.constant 0 : i32
    return %c0_i32, %c0_i32_0 : i32, i32
  }
  func.func @transform_4(%arg0: i32) -> (i32, i32) {
    %c0_i32 = arith.constant 0 : i32
    %c0_i32_0 = arith.constant 0 : i32
    %c0_i32_1 = arith.constant 0 : i32
    return %c0_i32, %c0_i32_0 : i32, i32
  }
  func.func @transform_5(%arg0: i32) -> (i32, i32) {
    %c0_i32 = arith.constant 0 : i32
    %c0_i32_0 = arith.constant 0 : i32
    %c0_i32_1 = arith.constant 0 : i32
    return %c0_i32, %c0_i32_0 : i32, i32
  }
  func.func @transform_6(%arg0: i32) -> (i32, i32, i32) {
    %c0_i32 = arith.constant 0 : i32
    %c0_i32_0 = arith.constant 0 : i32
    %c0_i32_1 = arith.constant 0 : i32
    %c0_i32_2 = arith.constant 0 : i32
    return %c0_i32, %c0_i32_0, %c0_i32_1 : i32, i32, i32
  }
  func.func @transform_7(%arg0: i32) -> (i32, i32) {
    %c0_i32 = arith.constant 0 : i32
    %c0_i32_0 = arith.constant 0 : i32
    %c0_i32_1 = arith.constant 0 : i32
    return %c0_i32, %c0_i32_0 : i32, i32
  }
  func.func @transform_8(%arg0: i32) -> (i32, i32) {
    %c0_i32 = arith.constant 0 : i32
    %c0_i32_0 = arith.constant 0 : i32
    %c0_i32_1 = arith.constant 0 : i32
    return %c0_i32, %c0_i32_0 : i32, i32
  }
  func.func @transform_9(%arg0: i32) -> (i32, i32) {
    %c0_i32 = arith.constant 0 : i32
    %c0_i32_0 = arith.constant 0 : i32
    %c0_i32_1 = arith.constant 0 : i32
    return %c0_i32, %c0_i32_0 : i32, i32
  }
  func.func @transform_10(%arg0: i32) -> (i32, i32) {
    %c0_i32 = arith.constant 0 : i32
    %c0_i32_0 = arith.constant 0 : i32
    return %arg0, %c0_i32 : i32, i32
  }
}

</mosaic_0001>

<llo_original>
// kernel: tpu_custom_call.1
$region0: #{tpu_custom_call.1}
  #allocation0 [shape = 'u32[]', space=smem, size = 0x4, offset = 0x4, fixed_abs, tag = 'smem constant byte address 0x4 - core index']
  #allocation1 [shape = 'u32[144,128]{1,0:T(1,128)}', space=vmem, size = 0x12000, scoped, tag = 'internal scratch']
  %s0 = inlined_call_operand.hbm [shape: f32[64,64], index: 0, kind: input, shape index: {}]
  %s1 = inlined_call_operand.hbm [shape: f32[3,32,32], index: 1, kind: input, shape index: {}]
  %s2 = inlined_call_operand.hbm [shape: f32[3,64,512], index: 2, kind: input, shape index: {}]
  %s3 = inlined_call_operand.hbm [shape: f32[1,512], index: 3, kind: input, shape index: {}]
  %s4 = inlined_call_operand.hbm [shape: f32[256,256], index: 4, kind: input, shape index: {}]
  %s5 = inlined_call_operand.hbm [shape: f32[1,256], index: 5, kind: input, shape index: {}]
  %s6 = inlined_call_operand.hbm [shape: f32[3,256,512], index: 6, kind: input, shape index: {}]
  %s7 = inlined_call_operand.hbm [shape: f32[1,512], index: 7, kind: input, shape index: {}]
  %s8 = inlined_call_operand.hbm [shape: f32[1,512], index: 8, kind: input, shape index: {}]
  %s9 = inlined_call_operand.hbm [shape: f32[1,512], index: 9, kind: input, shape index: {}]
  %s10 = inlined_call_operand.hbm [shape: f32[64,512], index: 10, kind: output, shape index: {}]
  %s11 = sld [smem:[#allocation0]]
  $region113: #{tpu_custom_call.1} parent=0
    _
  %s13 = ssub.s32 1, %s11
  %s14 = scalar_select 0, %s13, %s11
  $region1: #{tpu_custom_call.1} parent=0
    #allocation2 [shape = 'u8[32768]{0}', space=vmem, size = 0x8000, scoped, tag = 'input window, operand 0']
    #allocation3 [shape = 's32[2]{0}', space=sflag, size = 0x8, scoped, tag = 'scoped memory for tpu_custom_call.1']
    #allocation4 [shape = 's32[2]{0}', space=sflag, size = 0x8, scoped, tag = 'scoped memory for tpu_custom_call.1']
    #allocation5 [shape = 'u8[49152]{0}', space=vmem, size = 0xc000, scoped, tag = 'input window, operand 1, single buffered']
    #allocation6 [shape = 's32[1]{0}', space=sflag, size = 0x4, scoped, tag = 'scoped memory for tpu_custom_call.1']
    #allocation7 [shape = 'u8[393216]{0}', space=vmem, size = 0x60000, scoped, tag = 'input window, operand 2, single buffered']
    #allocation8 [shape = 'u8[2048]{0}', space=vmem, size = 0x800, scoped, tag = 'input window, operand 3, single buffered']
    #allocation9 [shape = 's32[1]{0}', space=sflag, size = 0x4, scoped, tag = 'scoped memory for tpu_custom_call.1']
    #allocation10 [shape = 'u8[262144]{0}', space=vmem, size = 0x40000, scoped, tag = 'input window, operand 4, single buffered']
    #allocation11 [shape = 'u8[1024]{0}', space=vmem, size = 0x400, scoped, tag = 'input window, operand 5, single buffered']
    #allocation12 [shape = 's32[1]{0}', space=sflag, size = 0x4, scoped, tag = 'scoped memory for tpu_custom_call.1']
    #allocation13 [shape = 'u8[1572864]{0}', space=vmem, size = 0x180000, scoped, tag = 'input window, operand 6, single buffered']
    #allocation14 [shape = 'u8[2048]{0}', space=vmem, size = 0x800, scoped, tag = 'input window, operand 7, single buffered']
    #allocation15 [shape = 's32[1]{0}', space=sflag, size = 0x4, scoped, tag = 'scoped memory for tpu_custom_call.1']
    #allocation16 [shape = 'u8[2048]{0}', space=vmem, size = 0x800, scoped, tag = 'input window, operand 8, single buffered']
    #allocation17 [shape = 'u8[2048]{0}', space=vmem, size = 0x800, scoped, tag = 'input window, operand 9, single buffered']
    #allocation18 [shape = 's32[1]{0}', space=sflag, size = 0x4, scoped, tag = 'scoped memory for tpu_custom_call.1']
    #allocation19 [shape = 'u8[131072]{0}', space=vmem, size = 0x20000, scoped, tag = 'output window, operand 0']
    %15 = vsyncpa [#allocation3], 0
    %s16 = scalar_lea.sflag [#allocation3], 1
    %17 = vsyncpa %s16, 0
    %18 = vsyncpa [#allocation6], 0
    %19 = vsyncpa [#allocation9], 0
    %20 = vsyncpa [#allocation12], 0
    %21 = vsyncpa [#allocation15], 0
    %22 = vsyncpa [#allocation18], 0
    %23 = vsyncpa [#allocation4], 0
    %s24 = scalar_lea.sflag [#allocation4], 1
    %25 = vsyncpa %s24, 0
    loop: start=0, step=1, limit=4
    $region2: #{tpu_custom_call.1} parent=1 // loop_pre_header
      _
    $region3: #{tpu_custom_call.1} parent=1 // loop_header
      %s27 = sphi 0, %s31
      %p28 = scmp.ge.s32.totalorder %s27, 4
      %s37 = sphi 0, %s39
      %s40 = sphi 0, %s37
      %s41 = sphi 0, %s40
      %s57 = sphi 0, %s41
      %s61 = sphi 0, %s61
      %s63 = sphi 0, %s61
      %s64 = sphi 0, %s63
      %s78 = sphi 0, %s64
      %s82 = sphi 0, %s82
      %s84 = sphi 0, %s82
      %s85 = sphi 0, %s84
      %s99 = sphi 0, %s85
      %s103 = sphi 0, %s103
      %s105 = sphi 0, %s103
      %s106 = sphi 0, %s105
      %s120 = sphi 0, %s106
      %s124 = sphi 0, %s124
      %s126 = sphi 0, %s124
      %s127 = sphi 0, %s126
      %s141 = sphi 0, %s127
      %s145 = sphi 0, %s145
      %s147 = sphi 0, %s145
      %s148 = sphi 0, %s147
      %s162 = sphi 0, %s148
      %s166 = sphi 0, %s166
      %s168 = sphi 0, %s166
      %s169 = sphi 0, %s168
      %s183 = sphi 0, %s169
      %s187 = sphi 0, %s187
      %s189 = sphi 0, %s187
      %s190 = sphi 0, %s189
      %s204 = sphi 0, %s190
      %s208 = sphi 0, %s208
      %s210 = sphi 0, %s208
      %s211 = sphi 0, %s210
      %s225 = sphi 0, %s211
      %s229 = sphi 0, %s229
      %s231 = sphi 0, %s229
      %s232 = sphi 0, %s231
      %s246 = sphi 0, %s232
      %s252 = sphi 0, %s254
      %s255 = sphi 0, %s252
      %s256 = sphi 0, %s255
      %s272 = sphi 0, %s256
    $region4: #{tpu_custom_call.1} parent=1 // loop_header_branch
      %30 = sbr.rel (%p28) target = $region8
    $region5: #{tpu_custom_call.1} parent=1 // loop_body
      %s32 = ssub.s32 %s27, 1
      %s33 = ssub.s32 %s27, 2
      %s34 = sadd.s32 %s27, 1
      %s35 = ssub.s32 %s27, %s34
      %p36 = scmp.eq.s32.totalorder %s35, 0
      %s38 = sadd.s32 %s37, 1
      %s39 = scalar_select %p36, %s37, %s38
      %p42 = pneg %p36
      %p43 = scmp.eq.s32.totalorder %s27, 1
      %p44 = por %p42, %p43
      %p45 = scmp.ne.s32.totalorder %s37, %s40
      %p46 = scmp.eq.s32.totalorder %s27, 0
      %p47 = por %p45, %p46
      %p48 = scmp.ne.s32.totalorder %s37, %s40
      %p49 = scmp.eq.s32.totalorder %s32, 1
      %p50 = por %p48, %p49
      %p51 = scmp.ne.s32.totalorder %s40, %s41
      %p52 = scmp.eq.s32.totalorder %s32, 0
      %p53 = por %p51, %p52
      %p54 = scmp.ne.s32.totalorder %s40, %s41
      %p55 = scmp.eq.s32.totalorder %s33, 1
      %p56 = por %p54, %p55
      %p58 = scmp.ne.s32.totalorder %s41, %s57
      %p59 = scmp.eq.s32.totalorder %s33, 0
      %p60 = por %p58, %p59
      %s62 = sadd.s32 %s61, 1
      %p65 = scmp.eq.s32.totalorder %s27, 1
      %p66 = scmp.ne.s32.totalorder %s61, %s63
      %p67 = scmp.eq.s32.totalorder %s27, 0
      %p68 = por %p66, %p67
      %p69 = scmp.ne.s32.totalorder %s61, %s63
      %p70 = scmp.eq.s32.totalorder %s32, 1
      %p71 = por %p69, %p70
      %p72 = scmp.ne.s32.totalorder %s63, %s64
      %p73 = scmp.eq.s32.totalorder %s32, 0
      %p74 = por %p72, %p73
      %p75 = scmp.ne.s32.totalorder %s63, %s64
      %p76 = scmp.eq.s32.totalorder %s33, 1
      %p77 = por %p75, %p76
      %p79 = scmp.ne.s32.totalorder %s64, %s78
      %p80 = scmp.eq.s32.totalorder %s33, 0
      %p81 = por %p79, %p80
      %s83 = sadd.s32 %s82, 1
      %p86 = scmp.eq.s32.totalorder %s27, 1
      %p87 = scmp.ne.s32.totalorder %s82, %s84
      %p88 = scmp.eq.s32.totalorder %s27, 0
      %p89 = por %p87, %p88
      %p90 = scmp.ne.s32.totalorder %s82, %s84
      %p91 = scmp.eq.s32.totalorder %s32, 1
      %p92 = por %p90, %p91
      %p93 = scmp.ne.s32.totalorder %s84, %s85
      %p94 = scmp.eq.s32.totalorder %s32, 0
      %p95 = por %p93, %p94
      %p96 = scmp.ne.s32.totalorder %s84, %s85
      %p97 = scmp.eq.s32.totalorder %s33, 1
      %p98 = por %p96, %p97
      %p100 = scmp.ne.s32.totalorder %s85, %s99
      %p101 = scmp.eq.s32.totalorder %s33, 0
      %p102 = por %p100, %p101
      %s104 = sadd.s32 %s103, 1
      %p107 = scmp.eq.s32.totalorder %s27, 1
      %p108 = scmp.ne.s32.totalorder %s103, %s105
      %p109 = scmp.eq.s32.totalorder %s27, 0
      %p110 = por %p108, %p109
      %p111 = scmp.ne.s32.totalorder %s103, %s105
      %p112 = scmp.eq.s32.totalorder %s32, 1
      %p113 = por %p111, %p112
      %p114 = scmp.ne.s32.totalorder %s105, %s106
      %p115 = scmp.eq.s32.totalorder %s32, 0
      %p116 = por %p114, %p115
      %p117 = scmp.ne.s32.totalorder %s105, %s106
      %p118 = scmp.eq.s32.totalorder %s33, 1
      %p119 = por %p117, %p118
      %p121 = scmp.ne.s32.totalorder %s106, %s120
      %p122 = scmp.eq.s32.totalorder %s33, 0
      %p123 = por %p121, %p122
      %s125 = sadd.s32 %s124, 1
      %p128 = scmp.eq.s32.totalorder %s27, 1
      %p129 = scmp.ne.s32.totalorder %s124, %s126
      %p130 = scmp.eq.s32.totalorder %s27, 0
      %p131 = por %p129, %p130
      %p132 = scmp.ne.s32.totalorder %s124, %s126
      %p133 = scmp.eq.s32.totalorder %s32, 1
      %p134 = por %p132, %p133
      %p135 = scmp.ne.s32.totalorder %s126, %s127
      %p136 = scmp.eq.s32.totalorder %s32, 0
      %p137 = por %p135, %p136
      %p138 = scmp.ne.s32.totalorder %s126, %s127
      %p139 = scmp.eq.s32.totalorder %s33, 1
      %p140 = por %p138, %p139
      %p142 = scmp.ne.s32.totalorder %s127, %s141
      %p143 = scmp.eq.s32.totalorder %s33, 0
      %p144 = por %p142, %p143
      %s146 = sadd.s32 %s145, 1
      %p149 = scmp.eq.s32.totalorder %s27, 1
      %p150 = scmp.ne.s32.totalorder %s145, %s147
      %p151 = scmp.eq.s32.totalorder %s27, 0
      %p152 = por %p150, %p151
      %p153 = scmp.ne.s32.totalorder %s145, %s147
      %p154 = scmp.eq.s32.totalorder %s32, 1
      %p155 = por %p153, %p154
      %p156 = scmp.ne.s32.totalorder %s147, %s148
      %p157 = scmp.eq.s32.totalorder %s32, 0
      %p158 = por %p156, %p157
      %p159 = scmp.ne.s32.totalorder %s147, %s148
      %p160 = scmp.eq.s32.totalorder %s33, 1
      %p161 = por %p159, %p160
      %p163 = scmp.ne.s32.totalorder %s148, %s162
      %p164 = scmp.eq.s32.totalorder %s33, 0
      %p165 = por %p163, %p164
      %s167 = sadd.s32 %s166, 1
      %p170 = scmp.eq.s32.totalorder %s27, 1
      %p171 = scmp.ne.s32.totalorder %s166, %s168
      %p172 = scmp.eq.s32.totalorder %s27, 0
      %p173 = por %p171, %p172
      %p174 = scmp.ne.s32.totalorder %s166, %s168
      %p175 = scmp.eq.s32.totalorder %s32, 1
      %p176 = por %p174, %p175
      %p177 = scmp.ne.s32.totalorder %s168, %s169
      %p178 = scmp.eq.s32.totalorder %s32, 0
      %p179 = por %p177, %p178
      %p180 = scmp.ne.s32.totalorder %s168, %s169
      %p181 = scmp.eq.s32.totalorder %s33, 1
      %p182 = por %p180, %p181
      %p184 = scmp.ne.s32.totalorder %s169, %s183
      %p185 = scmp.eq.s32.totalorder %s33, 0
      %p186 = por %p184, %p185
      %s188 = sadd.s32 %s187, 1
      %p191 = scmp.eq.s32.totalorder %s27, 1
      %p192 = scmp.ne.s32.totalorder %s187, %s189
      %p193 = scmp.eq.s32.totalorder %s27, 0
      %p194 = por %p192, %p193
      %p195 = scmp.ne.s32.totalorder %s187, %s189
      %p196 = scmp.eq.s32.totalorder %s32, 1
      %p197 = por %p195, %p196
      %p198 = scmp.ne.s32.totalorder %s189, %s190
      %p199 = scmp.eq.s32.totalorder %s32, 0
      %p200 = por %p198, %p199
      %p201 = scmp.ne.s32.totalorder %s189, %s190
      %p202 = scmp.eq.s32.totalorder %s33, 1
      %p203 = por %p201, %p202
      %p205 = scmp.ne.s32.totalorder %s190, %s204
      %p206 = scmp.eq.s32.totalorder %s33, 0
      %p207 = por %p205, %p206
      %s209 = sadd.s32 %s208, 1
      %p212 = scmp.eq.s32.totalorder %s27, 1
      %p213 = scmp.ne.s32.totalorder %s208, %s210
      %p214 = scmp.eq.s32.totalorder %s27, 0
      %p215 = por %p213, %p214
      %p216 = scmp.ne.s32.totalorder %s208, %s210
      %p217 = scmp.eq.s32.totalorder %s32, 1
      %p218 = por %p216, %p217
      %p219 = scmp.ne.s32.totalorder %s210, %s211
      %p220 = scmp.eq.s32.totalorder %s32, 0
      %p221 = por %p219, %p220
      %p222 = scmp.ne.s32.totalorder %s210, %s211
      %p223 = scmp.eq.s32.totalorder %s33, 1
      %p224 = por %p222, %p223
      %p226 = scmp.ne.s32.totalorder %s211, %s225
      %p227 = scmp.eq.s32.totalorder %s33, 0
      %p228 = por %p226, %p227
      %s230 = sadd.s32 %s229, 1
      %p233 = scmp.eq.s32.totalorder %s27, 1
      %p234 = scmp.ne.s32.totalorder %s229, %s231
      %p235 = scmp.eq.s32.totalorder %s27, 0
      %p236 = por %p234, %p235
      %p237 = scmp.ne.s32.totalorder %s229, %s231
      %p238 = scmp.eq.s32.totalorder %s32, 1
      %p239 = por %p237, %p238
      %p240 = scmp.ne.s32.totalorder %s231, %s232
      %p241 = scmp.eq.s32.totalorder %s32, 0
      %p242 = por %p240, %p241
      %p243 = scmp.ne.s32.totalorder %s231, %s232
      %p244 = scmp.eq.s32.totalorder %s33, 1
      %p245 = por %p243, %p244
      %p247 = scmp.ne.s32.totalorder %s232, %s246
      %p248 = scmp.eq.s32.totalorder %s33, 0
      %p249 = por %p247, %p248
      %s250 = ssub.s32 %s27, %s34
      %p251 = scmp.eq.s32.totalorder %s250, 0
      %s253 = sadd.s32 %s252, 1
      %s254 = scalar_select %p251, %s252, %s253
      %p257 = pneg %p251
      %p258 = scmp.eq.s32.totalorder %s27, 1
      %p259 = por %p257, %p258
      %p260 = scmp.ne.s32.totalorder %s252, %s255
      %p261 = scmp.eq.s32.totalorder %s27, 0
      %p262 = por %p260, %p261
      %p263 = scmp.ne.s32.totalorder %s252, %s255
      %p264 = scmp.eq.s32.totalorder %s32, 1
      %p265 = por %p263, %p264
      %p266 = scmp.ne.s32.totalorder %s255, %s256
      %p267 = scmp.eq.s32.totalorder %s32, 0
      %p268 = por %p266, %p267
      %p269 = scmp.ne.s32.totalorder %s255, %s256
      %p270 = scmp.eq.s32.totalorder %s33, 1
      %p271 = por %p269, %p270
      %p273 = scmp.ne.s32.totalorder %s256, %s272
      %p274 = scmp.eq.s32.totalorder %s33, 0
      %p275 = por %p273, %p274
      %p276 = scmp.le.s32.totalorder 1, %s27
      %p277 = scmp.lt.s32.totalorder %s27, 3
      %p278 = pnand %p276, %p277
      %p279 = pneg %p278
      // Predicated region
      $region9: #{tpu_custom_call.1} parent=5 // pred_check
        _
      $region10: #{tpu_custom_call.1} parent=5 // pred_check_branch
        %281 = sbr.rel (%p278) target = $region12
      $region11: #{tpu_custom_call.1} parent=5 // pred_region
        %s282 = ssub.s32 %s27, 1
        // Predicated region
        $region13: #{tpu_custom_call.1} parent=11 // pred_check
          %p283 = pneg %p74
        $region14: #{tpu_custom_call.1} parent=11 // pred_check_branch
          %285 = sbr.rel (%p283) target = $region16
        $region15: #{tpu_custom_call.1} parent=11 // pred_region
          %s287 = ssub.s32 1536, 1536
          %288 = vsyncadd [#allocation6], %s287
          %s289 = sshll.u32 [#allocation5], 4
          %s290 = int_to_ptr.vmem [resolvable:$true] %s289
          %295 = dma.hbm_to_vmem [thread:$0]  %s1, 1536, %s290, [#allocation6], 128, 128, 8
        $region16: #{tpu_custom_call.1} parent=11 // pred_fallthru
          _
        // Predicated region
        $region17: #{tpu_custom_call.1} parent=11 // pred_check
          %p296 = pneg %p95
        $region18: #{tpu_custom_call.1} parent=11 // pred_check_branch
          %298 = sbr.rel (%p296) target = $region20
        $region19: #{tpu_custom_call.1} parent=11 // pred_region
          %s300 = ssub.s32 12288, 12288
          %301 = vsyncadd [#allocation6], %s300
          %s302 = sshll.u32 [#allocation7], 4
          %s303 = int_to_ptr.vmem [resolvable:$true] %s302
          %308 = dma.hbm_to_vmem [thread:$0]  %s2, 12288, %s303, [#allocation6], 512, 512, 32
        $region20: #{tpu_custom_call.1} parent=11 // pred_fallthru
          _
        // Predicated region
        $region21: #{tpu_custom_call.1} parent=11 // pred_check
          %p309 = pneg %p116
        $region22: #{tpu_custom_call.1} parent=11 // pred_check_branch
          %311 = sbr.rel (%p309) target = $region24
        $region23: #{tpu_custom_call.1} parent=11 // pred_region
          %s313 = ssub.s32 64, 64
          %314 = vsyncadd [#allocation9], %s313
          %s316 = sshll.u32 [#allocation8], 4
          %s317 = int_to_ptr.vmem [resolvable:$true] %s316
          %319 = dma.hbm_to_vmem [thread:$0]  %s3, 64, %s317, [#allocation9]
        $region24: #{tpu_custom_call.1} parent=11 // pred_fallthru
          _
        // Predicated region
        $region25: #{tpu_custom_call.1} parent=11 // pred_check
          %p320 = pneg %p137
        $region26: #{tpu_custom_call.1} parent=11 // pred_check_branch
          %322 = sbr.rel (%p320) target = $region28
        $region27: #{tpu_custom_call.1} parent=11 // pred_region
          %s324 = ssub.s32 8192, 8192
          %325 = vsyncadd [#allocation9], %s324
          %s326 = sshll.u32 [#allocation10], 4
          %s327 = int_to_ptr.vmem [resolvable:$true] %s326
          %332 = dma.hbm_to_vmem [thread:$0]  %s4, 8192, %s327, [#allocation9], 256, 256, 16
        $region28: #{tpu_custom_call.1} parent=11 // pred_fallthru
          _
        // Predicated region
        $region29: #{tpu_custom_call.1} parent=11 // pred_check
          %p333 = pneg %p158
        $region30: #{tpu_custom_call.1} parent=11 // pred_check_branch
          %335 = sbr.rel (%p333) target = $region32
        $region31: #{tpu_custom_call.1} parent=11 // pred_region
          %s337 = ssub.s32 32, 32
          %338 = vsyncadd [#allocation12], %s337
          %s340 = sshll.u32 [#allocation11], 4
          %s341 = int_to_ptr.vmem [resolvable:$true] %s340
          %343 = dma.hbm_to_vmem [thread:$0]  %s5, 32, %s341, [#allocation12]
        $region32: #{tpu_custom_call.1} parent=11 // pred_fallthru
          _
        // Predicated region
        $region33: #{tpu_custom_call.1} parent=11 // pred_check
          %p344 = pneg %p179
        $region34: #{tpu_custom_call.1} parent=11 // pred_check_branch
          %346 = sbr.rel (%p344) target = $region36
        $region35: #{tpu_custom_call.1} parent=11 // pred_region
          %s348 = ssub.s32 49152, 49152
          %349 = vsyncadd [#allocation12], %s348
          %s350 = sshll.u32 [#allocation13], 4
          %s351 = int_to_ptr.vmem [resolvable:$true] %s350
          %356 = dma.hbm_to_vmem [thread:$0]  %s6, 49152, %s351, [#allocation12], 512, 512, 32
        $region36: #{tpu_custom_call.1} parent=11 // pred_fallthru
          _
        // Predicated region
        $region37: #{tpu_custom_call.1} parent=11 // pred_check
          %p357 = pneg %p200
        $region38: #{tpu_custom_call.1} parent=11 // pred_check_branch
          %359 = sbr.rel (%p357) target = $region40
        $region39: #{tpu_custom_call.1} parent=11 // pred_region
          %s361 = ssub.s32 64, 64
          %362 = vsyncadd [#allocation15], %s361
          %s364 = sshll.u32 [#allocation14], 4
          %s365 = int_to_ptr.vmem [resolvable:$true] %s364
          %367 = dma.hbm_to_vmem [thread:$0]  %s7, 64, %s365, [#allocation15]
        $region40: #{tpu_custom_call.1} parent=11 // pred_fallthru
          _
        // Predicated region
        $region41: #{tpu_custom_call.1} parent=11 // pred_check
          %p368 = pneg %p221
        $region42: #{tpu_custom_call.1} parent=11 // pred_check_branch
          %370 = sbr.rel (%p368) target = $region44
        $region43: #{tpu_custom_call.1} parent=11 // pred_region
          %s372 = ssub.s32 64, 64
          %373 = vsyncadd [#allocation15], %s372
          %s375 = sshll.u32 [#allocation16], 4
          %s376 = int_to_ptr.vmem [resolvable:$true] %s375
          %378 = dma.hbm_to_vmem [thread:$0]  %s8, 64, %s376, [#allocation15]
        $region44: #{tpu_custom_call.1} parent=11 // pred_fallthru
          _
        // Predicated region
        $region45: #{tpu_custom_call.1} parent=11 // pred_check
          %p379 = pneg %p242
        $region46: #{tpu_custom_call.1} parent=11 // pred_check_branch
          %381 = sbr.rel (%p379) target = $region48
        $region47: #{tpu_custom_call.1} parent=11 // pred_region
          %s383 = ssub.s32 64, 64
          %384 = vsyncadd [#allocation18], %s383
          %s386 = sshll.u32 [#allocation17], 4
          %s387 = int_to_ptr.vmem [resolvable:$true] %s386
          %389 = dma.hbm_to_vmem [thread:$0]  %s9, 64, %s387, [#allocation18]
        $region48: #{tpu_custom_call.1} parent=11 // pred_fallthru
          _
      $region12: #{tpu_custom_call.1} parent=5 // pred_fallthru
        _
      %p390 = scmp.lt.s32.totalorder %s27, 2
      // Predicated region
      $region49: #{tpu_custom_call.1} parent=5 // pred_check
        %p391 = pneg %p390
      $region50: #{tpu_custom_call.1} parent=5 // pred_check_branch
        %393 = sbr.rel (%p391) target = $region52
      $region51: #{tpu_custom_call.1} parent=5 // pred_region
        // Predicated region
        $region53: #{tpu_custom_call.1} parent=51 // pred_check
          %p394 = pneg %p47
        $region54: #{tpu_custom_call.1} parent=51 // pred_check_branch
          %396 = sbr.rel (%p394) target = $region56
        $region55: #{tpu_custom_call.1} parent=51 // pred_region
          %s397 = sand.u32 %s37, 1
          %s398 = scalar_lea.sflag [#allocation3], %s397
          %s399 = sand.u32 %s37, 1
          %s400 = smul.addr %s399, 32
          %s401 = scalar_lea.vmem [#allocation2], %s400
          %s402 = smul.u32 4, %s27
          %s404 = ssub.s32 512, 512
          %405 = vsyncadd %s398, %s404
          %s406 = smul.addr %s402, 128
          %s407 = scalar_lea.hbm %s0, %s406
          %s408 = sshll.u32 %s401, 4
          %s409 = int_to_ptr.vmem [resolvable:$true] %s408
          %414 = dma.hbm_to_vmem [thread:$0]  %s407, 512, %s409, %s398, 128, 128, 8
        $region56: #{tpu_custom_call.1} parent=51 // pred_fallthru
          _
      $region52: #{tpu_custom_call.1} parent=5 // pred_fallthru
        _
      %p415 = scmp.le.s32.totalorder 1, %s27
      %p416 = scmp.lt.s32.totalorder %s27, 3
      %p417 = pnand %p415, %p416
      %p418 = pneg %p417
      // Predicated region
      $region57: #{tpu_custom_call.1} parent=5 // pred_check
        _
      $region58: #{tpu_custom_call.1} parent=5 // pred_check_branch
        %420 = sbr.rel (%p417) target = $region60
      $region59: #{tpu_custom_call.1} parent=5 // pred_region
        %s421 = ssub.s32 %s27, 1
        %s422 = sand.u32 %s40, 1
        %s423 = scalar_lea.sflag [#allocation3], %s422
        %s424 = sand.u32 %s40, 1
        %s425 = smul.addr %s424, 32
        %s426 = scalar_lea.vmem [#allocation2], %s425
        // Predicated region
        $region61: #{tpu_custom_call.1} parent=59 // pred_check
          %p427 = pneg %p53
        $region62: #{tpu_custom_call.1} parent=59 // pred_check_branch
          %429 = sbr.rel (%p427) target = $region64
        $region63: #{tpu_custom_call.1} parent=59 // pred_region
          %430 = dma.done %s423, 512
        $region64: #{tpu_custom_call.1} parent=59 // pred_fallthru
          _
        // Predicated region
        $region65: #{tpu_custom_call.1} parent=59 // pred_check
          %p431 = pneg %p74
        $region66: #{tpu_custom_call.1} parent=59 // pred_check_branch
          %433 = sbr.rel (%p431) target = $region68
        $region67: #{tpu_custom_call.1} parent=59 // pred_region
          %434 = dma.done [#allocation6], 1536
        $region68: #{tpu_custom_call.1} parent=59 // pred_fallthru
          _
        // Predicated region
        $region69: #{tpu_custom_call.1} parent=59 // pred_check
          %p435 = pneg %p95
        $region70: #{tpu_custom_call.1} parent=59 // pred_check_branch
          %437 = sbr.rel (%p435) target = $region72
        $region71: #{tpu_custom_call.1} parent=59 // pred_region
          %438 = dma.done [#allocation6], 12288
        $region72: #{tpu_custom_call.1} parent=59 // pred_fallthru
          _
        // Predicated region
        $region73: #{tpu_custom_call.1} parent=59 // pred_check
          %p439 = pneg %p116
        $region74: #{tpu_custom_call.1} parent=59 // pred_check_branch
          %441 = sbr.rel (%p439) target = $region76
        $region75: #{tpu_custom_call.1} parent=59 // pred_region
          %442 = dma.done [#allocation9], 64
        $region76: #{tpu_custom_call.1} parent=59 // pred_fallthru
          _
        // Predicated region
        $region77: #{tpu_custom_call.1} parent=59 // pred_check
          %p443 = pneg %p137
        $region78: #{tpu_custom_call.1} parent=59 // pred_check_branch
          %445 = sbr.rel (%p443) target = $region80
        $region79: #{tpu_custom_call.1} parent=59 // pred_region
          %446 = dma.done [#allocation9], 8192
        $region80: #{tpu_custom_call.1} parent=59 // pred_fallthru
          _
        // Predicated region
        $region81: #{tpu_custom_call.1} parent=59 // pred_check
          %p447 = pneg %p158
        $region82: #{tpu_custom_call.1} parent=59 // pred_check_branch
          %449 = sbr.rel (%p447) target = $region84
        $region83: #{tpu_custom_call.1} parent=59 // pred_region
          %450 = dma.done [#allocation12], 32
        $region84: #{tpu_custom_call.1} parent=59 // pred_fallthru
          _
        // Predicated region
        $region85: #{tpu_custom_call.1} parent=59 // pred_check
          %p451 = pneg %p179
        $region86: #{tpu_custom_call.1} parent=59 // pred_check_branch
          %453 = sbr.rel (%p451) target = $region88
        $region87: #{tpu_custom_call.1} parent=59 // pred_region
          %454 = dma.done [#allocation12], 49152
        $region88: #{tpu_custom_call.1} parent=59 // pred_fallthru
          _
        // Predicated region
        $region89: #{tpu_custom_call.1} parent=59 // pred_check
          %p455 = pneg %p200
        $region90: #{tpu_custom_call.1} parent=59 // pred_check_branch
          %457 = sbr.rel (%p455) target = $region92
        $region91: #{tpu_custom_call.1} parent=59 // pred_region
          %458 = dma.done [#allocation15], 64
        $region92: #{tpu_custom_call.1} parent=59 // pred_fallthru
          _
        // Predicated region
        $region93: #{tpu_custom_call.1} parent=59 // pred_check
          %p459 = pneg %p221
        $region94: #{tpu_custom_call.1} parent=59 // pred_check_branch
          %461 = sbr.rel (%p459) target = $region96
        $region95: #{tpu_custom_call.1} parent=59 // pred_region
          %462 = dma.done [#allocation15], 64
        $region96: #{tpu_custom_call.1} parent=59 // pred_fallthru
          _
        // Predicated region
        $region97: #{tpu_custom_call.1} parent=59 // pred_check
          %p463 = pneg %p242
        $region98: #{tpu_custom_call.1} parent=59 // pred_check_branch
          %465 = sbr.rel (%p463) target = $region100
        $region99: #{tpu_custom_call.1} parent=59 // pred_region
          %466 = dma.done [#allocation18], 64
        $region100: #{tpu_custom_call.1} parent=59 // pred_fallthru
          _
        %s467 = sand.u32 %s40, 1
        %s468 = scalar_lea.sflag [#allocation3], %s467
        %s469 = sand.u32 %s40, 1
        %s470 = smul.addr %s469, 32
        %s471 = scalar_lea.vmem [#allocation2], %s470
        %p472 = pneg %p53
        %p473 = pneg %p50
        %p474 = pneg %p74
        %p475 = pneg %p71
        %p476 = pneg %p95
        %p477 = pneg %p92
        %p478 = pneg %p116
        %p479 = pneg %p113
        %p480 = pneg %p137
        %p481 = pneg %p134
        %p482 = pneg %p158
        %p483 = pneg %p155
        %p484 = pneg %p179
        %p485 = pneg %p176
        %p486 = pneg %p200
        %p487 = pneg %p197
        %p488 = pneg %p221
        %p489 = pneg %p218
        %p490 = pneg %p242
        %p491 = pneg %p239
        %p492 = pneg %p268
        %p493 = pneg %p265
        %s494 = sand.u32 %s255, 1
        %s495 = scalar_lea.sflag [#allocation4], %s494
        %s496 = sand.u32 %s255, 1
        %s497 = smul.addr %s496, 128
        %s498 = scalar_lea.vmem [#allocation19], %s497
        %s499 = smul.u32 4, %s32
        %s500 = smul.u32 4, %s32
        %v501 = vld [vmem:[%s426] sm:$0xff]
        %v502 = vld [vmem:[%s426 + $0x8] sm:$0xff]
        %v503 = vld [vmem:[%s426 + $0x10] sm:$0xff]
        %v504 = vld [vmem:[%s426 + $0x18] sm:$0xff]
        %v505 = vld [vmem:[#allocation5] sm:$0xff]
        %v506 = vld [vmem:[#allocation5 + $0x8] sm:$0xff]
        %v507 = vld [vmem:[#allocation5 + $0x10] sm:$0xff]
        %v508 = vld [vmem:[#allocation5 + $0x18] sm:$0xff]
        %vm509 = vcmask 261120
        %v511 = vsel %vm509, %v505, 0
        %v514 = vsel %vm509, %v506, 0
        %v517 = vsel %vm509, %v507, 0
        %v520 = vsel %vm509, %v508, 0
        %522 = vmatprep.subr.mxu0 0.0
        %523 = vmatpush1.msra.mxu0 0.0
        %524 = vmatprep.subr.mxu0 0.0
        %525 = vmatpush1.msra.mxu0 0.0
        %526 = vmatprep.subr.mxu0 0.0
        %527 = vmatpush1.msra.mxu0 0.0
        %528 = vmatprep.subr.mxu0 0.0
        %529 = vmatpush1.msra.mxu0 0.0
        %530 = vmatprep.subr.mxu0 0.0
        %531 = vmatpush1.msra.mxu0 0.0
        %532 = vmatprep.subr.mxu0 0.0
        %533 = vmatpush1.msra.mxu0 0.0
        %534 = vmatprep.subr.mxu0 0.0
        %535 = vmatpush1.msra.mxu0 0.0
        %536 = vmatprep.subr.mxu0 0.0
        %537 = vmatpush1.msra.mxu0 0.0
        %538 = vmatprep.subr.mxu0 0.0
        %539 = vmatpush1.msra.mxu0 0.0
        %540 = vmatprep.subr.mxu0 0.0
        %541 = vmatpush1.msra.mxu0 0.0
        %542 = vmatprep.subr.mxu0 0.0
        %543 = vmatpush1.msra.mxu0 0.0
        %544 = vmatprep.subr.mxu0 0.0
        %545 = vmatpush1.msra.mxu0 0.0
        %546 = vmatprep.subr.mxu0 0.0
        %547 = vmatpush1.msra.mxu0 %v504
        %548 = vmatprep.subr.mxu0 0.0
        %549 = vmatpush1.msra.mxu0 %v503
        %550 = vmatprep.subr.mxu0 0.0
        %551 = vmatpush1.msra.mxu0 %v502
        %552 = vmatprep.subr.mxu0 0.0
        %553 = vmatpush1.msra.mxu0 %v501
        %554 = vmatprep.subr.mxu0 0.0
        %555 = vmatpush2.msra.mxu0 0.0
        %556 = vmatprep.subr.mxu0 0.0
        %557 = vmatpush2.msra.mxu0 0.0
        %558 = vmatprep.subr.mxu0 0.0
        %559 = vmatpush2.msra.mxu0 0.0
        %560 = vmatprep.subr.mxu0 0.0
        %561 = vmatpush2.msra.mxu0 0.0
        %562 = vmatprep.subr.mxu0 0.0
        %563 = vmatpush2.msra.mxu0 0.0
        %564 = vmatprep.subr.mxu0 0.0
        %565 = vmatpush2.msra.mxu0 0.0
        %566 = vmatprep.subr.mxu0 0.0
        %567 = vmatpush2.msra.mxu0 0.0
        %568 = vmatprep.subr.mxu0 0.0
        %569 = vmatpush2.msra.mxu0 0.0
        %570 = vmatprep.subr.mxu0 0.0
        %571 = vmatpush2.msra.mxu0 0.0
        %572 = vmatprep.subr.mxu0 0.0
        %573 = vmatpush2.msra.mxu0 0.0
        %574 = vmatprep.subr.mxu0 0.0
        %575 = vmatpush2.msra.mxu0 0.0
        %576 = vmatprep.subr.mxu0 0.0
        %577 = vmatpush2.msra.mxu0 0.0
        %578 = vmatprep.subr.mxu0 0.0
        %579 = vmatpush2.msra.mxu0 0.0
        %580 = vmatprep.subr.mxu0 0.0
        %581 = vmatpush2.msra.mxu0 0.0
        %582 = vmatprep.subr.mxu0 0.0
        %583 = vmatpush2.msra.mxu0 0.0
        %584 = vmatprep.subr.mxu0 0.0
        %585 = vmatpush2.msra.mxu0 0.0
        %586 = vmatprep.mubr.f32.mxu0 0.0
        %587 = vmatmul.mubr.f32.gmra.mxu0 %v511
        %v588 = vpop.f32.mrf.mxu0
        %v589 = vadd.f32 0.0, %v588
        %v590 = vpop.f32.mrf.mxu0
        %591 = vmatprep.mubr.f32.mxu0 0.0
        %592 = vmatmul.mubr.f32.gmra.mxu0 %v514
        %v593 = vpop.f32.mrf.mxu0
        %v594 = vadd.f32 0.0, %v593
        %v595 = vpop.f32.mrf.mxu0
        %596 = vmatprep.mubr.f32.mxu0 0.0
        %597 = vmatmul.mubr.f32.gmra.mxu0 %v517
        %v598 = vpop.f32.mrf.mxu0
        %v599 = vadd.f32 0.0, %v598
        %v600 = vpop.f32.mrf.mxu0
        %601 = vmatprep.mubr.f32.mxu0 0.0
        %602 = vmatmul.mubr.f32.gmra.mxu0 %v520
        %v603 = vpop.f32.mrf.mxu0
        %v604 = vadd.f32 0.0, %v603
        %v605 = vpop.f32.mrf.mxu0
        %606 = vdwg.mxu0
        %v607 = vld [vmem:[#allocation7] sm:$0xff]
        %v608 = vld [vmem:[#allocation7 + $0x8] sm:$0xff]
        %v609 = vld [vmem:[#allocation7 + $0x10] sm:$0xff]
        %v610 = vld [vmem:[#allocation7 + $0x18] sm:$0xff]
        %v611 = vld [vmem:[#allocation7 + $0x20] sm:$0xff]
        %v612 = vld [vmem:[#allocation7 + $0x28] sm:$0xff]
        %v613 = vld [vmem:[#allocation7 + $0x30] sm:$0xff]
        %v614 = vld [vmem:[#allocation7 + $0x38] sm:$0xff]
        %v615 = vld [vmem:[#allocation7 + $0x40] sm:$0xff]
        %v616 = vld [vmem:[#allocation7 + $0x48] sm:$0xff]
        %v617 = vld [vmem:[#allocation7 + $0x50] sm:$0xff]
        %v618 = vld [vmem:[#allocation7 + $0x58] sm:$0xff]
        %v619 = vld [vmem:[#allocation7 + $0x60] sm:$0xff]
        %v620 = vld [vmem:[#allocation7 + $0x68] sm:$0xff]
        %v621 = vld [vmem:[#allocation7 + $0x70] sm:$0xff]
        %v622 = vld [vmem:[#allocation7 + $0x78] sm:$0xff]
        %v623 = vld [vmem:[#allocation7 + $0x80] sm:$0xff]
        %v624 = vld [vmem:[#allocation7 + $0x88] sm:$0xff]
        %v625 = vld [vmem:[#allocation7 + $0x90] sm:$0xff]
        %v626 = vld [vmem:[#allocation7 + $0x98] sm:$0xff]
        %v627 = vld [vmem:[#allocation7 + $0xa0] sm:$0xff]
        %v628 = vld [vmem:[#allocation7 + $0xa8] sm:$0xff]
        %v629 = vld [vmem:[#allocation7 + $0xb0] sm:$0xff]
        %v630 = vld [vmem:[#allocation7 + $0xb8] sm:$0xff]
        %v631 = vld [vmem:[#allocation7 + $0xc0] sm:$0xff]
        %v632 = vld [vmem:[#allocation7 + $0xc8] sm:$0xff]
        %v633 = vld [vmem:[#allocation7 + $0xd0] sm:$0xff]
        %v634 = vld [vmem:[#allocation7 + $0xd8] sm:$0xff]
        %v635 = vld [vmem:[#allocation7 + $0xe0] sm:$0xff]
        %v636 = vld [vmem:[#allocation7 + $0xe8] sm:$0xff]
        %v637 = vld [vmem:[#allocation7 + $0xf0] sm:$0xff]
        %v638 = vld [vmem:[#allocation7 + $0xf8] sm:$0xff]
        %s639 = scalar_lea.vmem [#allocation7], 256
        %v640 = vld [vmem:[%s639] sm:$0xff]
        %v641 = vld [vmem:[%s639 + $0x8] sm:$0xff]
        %v642 = vld [vmem:[%s639 + $0x10] sm:$0xff]
        %v643 = vld [vmem:[%s639 + $0x18] sm:$0xff]
        %v644 = vld [vmem:[%s639 + $0x20] sm:$0xff]
        %v645 = vld [vmem:[%s639 + $0x28] sm:$0xff]
        %v646 = vld [vmem:[%s639 + $0x30] sm:$0xff]
        %v647 = vld [vmem:[%s639 + $0x38] sm:$0xff]
        %v648 = vld [vmem:[%s639 + $0x40] sm:$0xff]
        %v649 = vld [vmem:[%s639 + $0x48] sm:$0xff]
        %v650 = vld [vmem:[%s639 + $0x50] sm:$0xff]
        %v651 = vld [vmem:[%s639 + $0x58] sm:$0xff]
        %v652 = vld [vmem:[%s639 + $0x60] sm:$0xff]
        %v653 = vld [vmem:[%s639 + $0x68] sm:$0xff]
        %v654 = vld [vmem:[%s639 + $0x70] sm:$0xff]
        %v655 = vld [vmem:[%s639 + $0x78] sm:$0xff]
        %v656 = vld [vmem:[%s639 + $0x80] sm:$0xff]
        %v657 = vld [vmem:[%s639 + $0x88] sm:$0xff]
        %v658 = vld [vmem:[%s639 + $0x90] sm:$0xff]
        %v659 = vld [vmem:[%s639 + $0x98] sm:$0xff]
        %v660 = vld [vmem:[%s639 + $0xa0] sm:$0xff]
        %v661 = vld [vmem:[%s639 + $0xa8] sm:$0xff]
        %v662 = vld [vmem:[%s639 + $0xb0] sm:$0xff]
        %v663 = vld [vmem:[%s639 + $0xb8] sm:$0xff]
        %v664 = vld [vmem:[%s639 + $0xc0] sm:$0xff]
        %v665 = vld [vmem:[%s639 + $0xc8] sm:$0xff]
        %v666 = vld [vmem:[%s639 + $0xd0] sm:$0xff]
        %v667 = vld [vmem:[%s639 + $0xd8] sm:$0xff]
        %v668 = vld [vmem:[%s639 + $0xe0] sm:$0xff]
        %v669 = vld [vmem:[%s639 + $0xe8] sm:$0xff]
        %v670 = vld [vmem:[%s639 + $0xf0] sm:$0xff]
        %v671 = vld [vmem:[%s639 + $0xf8] sm:$0xff]
        %vm672 = vcmask 523264
        %v674 = vsel %vm672, %v501, 0
        %v677 = vsel %vm672, %v502, 0
        %v680 = vsel %vm672, %v503, 0
        %v683 = vsel %vm672, %v504, 0
        %685 = vmatprep.subr.mxu0 0.0
        %686 = vmatpush1.msra.mxu0 0.0
        %687 = vmatprep.subr.mxu0 0.0
        %688 = vmatpush1.msra.mxu0 0.0
        %689 = vmatprep.subr.mxu0 0.0
        %690 = vmatpush1.msra.mxu0 0.0
        %691 = vmatprep.subr.mxu0 0.0
        %692 = vmatpush1.msra.mxu0 0.0
        %693 = vmatprep.subr.mxu0 0.0
        %694 = vmatpush1.msra.mxu0 0.0
        %695 = vmatprep.subr.mxu0 0.0
        %696 = vmatpush1.msra.mxu0 0.0
        %697 = vmatprep.subr.mxu0 0.0
        %698 = vmatpush1.msra.mxu0 0.0
        %699 = vmatprep.subr.mxu0 0.0
        %700 = vmatpush1.msra.mxu0 0.0
        %701 = vmatprep.subr.mxu0 %v669
        %702 = vmatpush1.msra.mxu0 %v668
        %703 = vmatprep.subr.mxu0 %v665
        %704 = vmatpush1.msra.mxu0 %v664
        %705 = vmatprep.subr.mxu0 %v661
        %706 = vmatpush1.msra.mxu0 %v660
        %707 = vmatprep.subr.mxu0 %v657
        %708 = vmatpush1.msra.mxu0 %v656
        %709 = vmatprep.subr.mxu0 %v653
        %710 = vmatpush1.msra.mxu0 %v652
        %711 = vmatprep.subr.mxu0 %v649
        %712 = vmatpush1.msra.mxu0 %v648
        %713 = vmatprep.subr.mxu0 %v645
        %714 = vmatpush1.msra.mxu0 %v644
        %715 = vmatprep.subr.mxu0 %v641
        %716 = vmatpush1.msra.mxu0 %v640
        %717 = vmatprep.subr.mxu0 0.0
        %718 = vmatpush2.msra.mxu0 0.0
        %719 = vmatprep.subr.mxu0 0.0
        %720 = vmatpush2.msra.mxu0 0.0
        %721 = vmatprep.subr.mxu0 0.0
        %722 = vmatpush2.msra.mxu0 0.0
        %723 = vmatprep.subr.mxu0 0.0
        %724 = vmatpush2.msra.mxu0 0.0
        %725 = vmatprep.subr.mxu0 0.0
        %726 = vmatpush2.msra.mxu0 0.0
        %727 = vmatprep.subr.mxu0 0.0
        %728 = vmatpush2.msra.mxu0 0.0
        %729 = vmatprep.subr.mxu0 0.0
        %730 = vmatpush2.msra.mxu0 0.0
        %731 = vmatprep.subr.mxu0 0.0
        %732 = vmatpush2.msra.mxu0 0.0
        %733 = vmatprep.subr.mxu0 0.0
        %734 = vmatpush2.msra.mxu0 0.0
        %735 = vmatprep.subr.mxu0 0.0
        %736 = vmatpush2.msra.mxu0 0.0
        %737 = vmatprep.subr.mxu0 0.0
        %738 = vmatpush2.msra.mxu0 0.0
        %739 = vmatprep.subr.mxu0 0.0
        %740 = vmatpush2.msra.mxu0 0.0
        %741 = vmatprep.subr.mxu0 0.0
        %742 = vmatpush2.msra.mxu0 0.0
        %743 = vmatprep.subr.mxu0 0.0
        %744 = vmatpush2.msra.mxu0 0.0
        %745 = vmatprep.subr.mxu0 0.0
        %746 = vmatpush2.msra.mxu0 0.0
        %747 = vmatprep.subr.mxu0 0.0
        %748 = vmatpush2.msra.mxu0 0.0
        %749 = vmatprep.mubr.f32.mxu0 0.0
        %750 = vmatmul.mubr.f32.gmra.mxu0 %v674
        %v751 = vpop.f32.mrf.mxu0
        %v752 = vadd.f32 0.0, %v751
        %v753 = vpop.f32.mrf.mxu0
        %v754 = vadd.f32 0.0, %v753
        %755 = vmatprep.mubr.f32.mxu0 0.0
        %756 = vmatmul.mubr.f32.gmra.mxu0 %v677
        %v757 = vpop.f32.mrf.mxu0
        %v758 = vadd.f32 0.0, %v757
        %v759 = vpop.f32.mrf.mxu0
        %v760 = vadd.f32 0.0, %v759
        %761 = vmatprep.mubr.f32.mxu0 0.0
        %762 = vmatmul.mubr.f32.gmra.mxu0 %v680
        %v763 = vpop.f32.mrf.mxu0
        %v764 = vadd.f32 0.0, %v763
        %v765 = vpop.f32.mrf.mxu0
        %v766 = vadd.f32 0.0, %v765
        %767 = vmatprep.mubr.f32.mxu0 0.0
        %768 = vmatmul.mubr.f32.gmra.mxu0 %v683
        %v769 = vpop.f32.mrf.mxu0
        %v770 = vadd.f32 0.0, %v769
        %v771 = vpop.f32.mrf.mxu0
        %v772 = vadd.f32 0.0, %v771
        %773 = vdwg.mxu0
        %774 = vmatprep.subr.mxu0 0.0
        %775 = vmatpush1.msra.mxu0 0.0
        %776 = vmatprep.subr.mxu0 0.0
        %777 = vmatpush1.msra.mxu0 0.0
        %778 = vmatprep.subr.mxu0 0.0
        %779 = vmatpush1.msra.mxu0 0.0
        %780 = vmatprep.subr.mxu0 0.0
        %781 = vmatpush1.msra.mxu0 0.0
        %782 = vmatprep.subr.mxu0 0.0
        %783 = vmatpush1.msra.mxu0 0.0
        %784 = vmatprep.subr.mxu0 0.0
        %785 = vmatpush1.msra.mxu0 0.0
        %786 = vmatprep.subr.mxu0 0.0
        %787 = vmatpush1.msra.mxu0 0.0
        %788 = vmatprep.subr.mxu0 0.0
        %789 = vmatpush1.msra.mxu0 0.0
        %790 = vmatprep.subr.mxu0 %v671
        %791 = vmatpush1.msra.mxu0 %v670
        %792 = vmatprep.subr.mxu0 %v667
        %793 = vmatpush1.msra.mxu0 %v666
        %794 = vmatprep.subr.mxu0 %v663
        %795 = vmatpush1.msra.mxu0 %v662
        %796 = vmatprep.subr.mxu0 %v659
        %797 = vmatpush1.msra.mxu0 %v658
        %798 = vmatprep.subr.mxu0 %v655
        %799 = vmatpush1.msra.mxu0 %v654
        %800 = vmatprep.subr.mxu0 %v651
        %801 = vmatpush1.msra.mxu0 %v650
        %802 = vmatprep.subr.mxu0 %v647
        %803 = vmatpush1.msra.mxu0 %v646
        %804 = vmatprep.subr.mxu0 %v643
        %805 = vmatpush1.msra.mxu0 %v642
        %806 = vmatprep.subr.mxu0 0.0
        %807 = vmatpush2.msra.mxu0 0.0
        %808 = vmatprep.subr.mxu0 0.0
        %809 = vmatpush2.msra.mxu0 0.0
        %810 = vmatprep.subr.mxu0 0.0
        %811 = vmatpush2.msra.mxu0 0.0
        %812 = vmatprep.subr.mxu0 0.0
        %813 = vmatpush2.msra.mxu0 0.0
        %814 = vmatprep.subr.mxu0 0.0
        %815 = vmatpush2.msra.mxu0 0.0
        %816 = vmatprep.subr.mxu0 0.0
        %817 = vmatpush2.msra.mxu0 0.0
        %818 = vmatprep.subr.mxu0 0.0
        %819 = vmatpush2.msra.mxu0 0.0
        %820 = vmatprep.subr.mxu0 0.0
        %821 = vmatpush2.msra.mxu0 0.0
        %822 = vmatprep.subr.mxu0 0.0
        %823 = vmatpush2.msra.mxu0 0.0
        %824 = vmatprep.subr.mxu0 0.0
        %825 = vmatpush2.msra.mxu0 0.0
        %826 = vmatprep.subr.mxu0 0.0
        %827 = vmatpush2.msra.mxu0 0.0
        %828 = vmatprep.subr.mxu0 0.0
        %829 = vmatpush2.msra.mxu0 0.0
        %830 = vmatprep.subr.mxu0 0.0
        %831 = vmatpush2.msra.mxu0 0.0
        %832 = vmatprep.subr.mxu0 0.0
        %833 = vmatpush2.msra.mxu0 0.0
        %834 = vmatprep.subr.mxu0 0.0
        %835 = vmatpush2.msra.mxu0 0.0
        %836 = vmatprep.subr.mxu0 0.0
        %837 = vmatpush2.msra.mxu0 0.0
        %838 = vmatprep.mubr.f32.mxu0 0.0
        %839 = vmatmul.mubr.f32.gmra.mxu0 %v674
        %v840 = vpop.f32.mrf.mxu0
        %v841 = vadd.f32 0.0, %v840
        %v842 = vpop.f32.mrf.mxu0
        %v843 = vadd.f32 0.0, %v842
        %844 = vmatprep.mubr.f32.mxu0 0.0
        %845 = vmatmul.mubr.f32.gmra.mxu0 %v677
        %v846 = vpop.f32.mrf.mxu0
        %v847 = vadd.f32 0.0, %v846
        %v848 = vpop.f32.mrf.mxu0
        %v849 = vadd.f32 0.0, %v848
        %850 = vmatprep.mubr.f32.mxu0 0.0
        %851 = vmatmul.mubr.f32.gmra.mxu0 %v680
        %v852 = vpop.f32.mrf.mxu0
        %v853 = vadd.f32 0.0, %v852
        %v854 = vpop.f32.mrf.mxu0
        %v855 = vadd.f32 0.0, %v854
        %856 = vmatprep.mubr.f32.mxu0 0.0
        %857 = vmatmul.mubr.f32.gmra.mxu0 %v683
        %v858 = vpop.f32.mrf.mxu0
        %v859 = vadd.f32 0.0, %v858
        %v860 = vpop.f32.mrf.mxu0
        %v861 = vadd.f32 0.0, %v860
        %862 = vdwg.mxu0
        %v864 = vsel %vm672, %v589, 0
        %v867 = vsel %vm672, %v594, 0
        %v870 = vsel %vm672, %v599, 0
        %v873 = vsel %vm672, %v604, 0
        %875 = vmatprep.subr.mxu0 0.0
        %876 = vmatpush1.msra.mxu0 0.0
        %877 = vmatprep.subr.mxu0 0.0
        %878 = vmatpush1.msra.mxu0 0.0
        %879 = vmatprep.subr.mxu0 0.0
        %880 = vmatpush1.msra.mxu0 0.0
        %881 = vmatprep.subr.mxu0 0.0
        %882 = vmatpush1.msra.mxu0 0.0
        %883 = vmatprep.subr.mxu0 0.0
        %884 = vmatpush1.msra.mxu0 0.0
        %885 = vmatprep.subr.mxu0 0.0
        %886 = vmatpush1.msra.mxu0 0.0
        %887 = vmatprep.subr.mxu0 0.0
        %888 = vmatpush1.msra.mxu0 0.0
        %889 = vmatprep.subr.mxu0 0.0
        %890 = vmatpush1.msra.mxu0 0.0
        %891 = vmatprep.subr.mxu0 %v636
        %892 = vmatpush1.msra.mxu0 %v635
        %893 = vmatprep.subr.mxu0 %v632
        %894 = vmatpush1.msra.mxu0 %v631
        %895 = vmatprep.subr.mxu0 %v628
        %896 = vmatpush1.msra.mxu0 %v627
        %897 = vmatprep.subr.mxu0 %v624
        %898 = vmatpush1.msra.mxu0 %v623
        %899 = vmatprep.subr.mxu0 %v620
        %900 = vmatpush1.msra.mxu0 %v619
        %901 = vmatprep.subr.mxu0 %v616
        %902 = vmatpush1.msra.mxu0 %v615
        %903 = vmatprep.subr.mxu0 %v612
        %904 = vmatpush1.msra.mxu0 %v611
        %905 = vmatprep.subr.mxu0 %v608
        %906 = vmatpush1.msra.mxu0 %v607
        %907 = vmatprep.subr.mxu0 0.0
        %908 = vmatpush2.msra.mxu0 0.0
        %909 = vmatprep.subr.mxu0 0.0
        %910 = vmatpush2.msra.mxu0 0.0
        %911 = vmatprep.subr.mxu0 0.0
        %912 = vmatpush2.msra.mxu0 0.0
        %913 = vmatprep.subr.mxu0 0.0
        %914 = vmatpush2.msra.mxu0 0.0
        %915 = vmatprep.subr.mxu0 0.0
        %916 = vmatpush2.msra.mxu0 0.0
        %917 = vmatprep.subr.mxu0 0.0
        %918 = vmatpush2.msra.mxu0 0.0
        %919 = vmatprep.subr.mxu0 0.0
        %920 = vmatpush2.msra.mxu0 0.0
        %921 = vmatprep.subr.mxu0 0.0
        %922 = vmatpush2.msra.mxu0 0.0
        %923 = vmatprep.subr.mxu0 0.0
        %924 = vmatpush2.msra.mxu0 0.0
        %925 = vmatprep.subr.mxu0 0.0
        %926 = vmatpush2.msra.mxu0 0.0
        %927 = vmatprep.subr.mxu0 0.0
        %928 = vmatpush2.msra.mxu0 0.0
        %929 = vmatprep.subr.mxu0 0.0
        %930 = vmatpush2.msra.mxu0 0.0
        %931 = vmatprep.subr.mxu0 0.0
        %932 = vmatpush2.msra.mxu0 0.0
        %933 = vmatprep.subr.mxu0 0.0
        %934 = vmatpush2.msra.mxu0 0.0
        %935 = vmatprep.subr.mxu0 0.0
        %936 = vmatpush2.msra.mxu0 0.0
        %937 = vmatprep.subr.mxu0 0.0
        %938 = vmatpush2.msra.mxu0 0.0
        %939 = vmatprep.mubr.f32.mxu0 0.0
        %940 = vmatmul.mubr.f32.gmra.mxu0 %v864
        %v941 = vpop.f32.mrf.mxu0
        %v942 = vadd.f32 %v752, %v941
        %v943 = vpop.f32.mrf.mxu0
        %v944 = vadd.f32 %v754, %v943
        %945 = vmatprep.mubr.f32.mxu0 0.0
        %946 = vmatmul.mubr.f32.gmra.mxu0 %v867
        %v947 = vpop.f32.mrf.mxu0
        %v948 = vadd.f32 %v758, %v947
        %v949 = vpop.f32.mrf.mxu0
        %v950 = vadd.f32 %v760, %v949
        %951 = vmatprep.mubr.f32.mxu0 0.0
        %952 = vmatmul.mubr.f32.gmra.mxu0 %v870
        %v953 = vpop.f32.mrf.mxu0
        %v954 = vadd.f32 %v764, %v953
        %v955 = vpop.f32.mrf.mxu0
        %v956 = vadd.f32 %v766, %v955
        %957 = vmatprep.mubr.f32.mxu0 0.0
        %958 = vmatmul.mubr.f32.gmra.mxu0 %v873
        %v959 = vpop.f32.mrf.mxu0
        %v960 = vadd.f32 %v770, %v959
        %v961 = vpop.f32.mrf.mxu0
        %v962 = vadd.f32 %v772, %v961
        %963 = vdwg.mxu0
        %964 = vmatprep.subr.mxu0 0.0
        %965 = vmatpush1.msra.mxu0 0.0
        %966 = vmatprep.subr.mxu0 0.0
        %967 = vmatpush1.msra.mxu0 0.0
        %968 = vmatprep.subr.mxu0 0.0
        %969 = vmatpush1.msra.mxu0 0.0
        %970 = vmatprep.subr.mxu0 0.0
        %971 = vmatpush1.msra.mxu0 0.0
        %972 = vmatprep.subr.mxu0 0.0
        %973 = vmatpush1.msra.mxu0 0.0
        %974 = vmatprep.subr.mxu0 0.0
        %975 = vmatpush1.msra.mxu0 0.0
        %976 = vmatprep.subr.mxu0 0.0
        %977 = vmatpush1.msra.mxu0 0.0
        %978 = vmatprep.subr.mxu0 0.0
        %979 = vmatpush1.msra.mxu0 0.0
        %980 = vmatprep.subr.mxu0 %v638
        %981 = vmatpush1.msra.mxu0 %v637
        %982 = vmatprep.subr.mxu0 %v634
        %983 = vmatpush1.msra.mxu0 %v633
        %984 = vmatprep.subr.mxu0 %v630
        %985 = vmatpush1.msra.mxu0 %v629
        %986 = vmatprep.subr.mxu0 %v626
        %987 = vmatpush1.msra.mxu0 %v625
        %988 = vmatprep.subr.mxu0 %v622
        %989 = vmatpush1.msra.mxu0 %v621
        %990 = vmatprep.subr.mxu0 %v618
        %991 = vmatpush1.msra.mxu0 %v617
        %992 = vmatprep.subr.mxu0 %v614
        %993 = vmatpush1.msra.mxu0 %v613
        %994 = vmatprep.subr.mxu0 %v610
        %995 = vmatpush1.msra.mxu0 %v609
        %996 = vmatprep.subr.mxu0 0.0
        %997 = vmatpush2.msra.mxu0 0.0
        %998 = vmatprep.subr.mxu0 0.0
        %999 = vmatpush2.msra.mxu0 0.0
        %1000 = vmatprep.subr.mxu0 0.0
        %1001 = vmatpush2.msra.mxu0 0.0
        %1002 = vmatprep.subr.mxu0 0.0
        %1003 = vmatpush2.msra.mxu0 0.0
        %1004 = vmatprep.subr.mxu0 0.0
        %1005 = vmatpush2.msra.mxu0 0.0
        %1006 = vmatprep.subr.mxu0 0.0
        %1007 = vmatpush2.msra.mxu0 0.0
        %1008 = vmatprep.subr.mxu0 0.0
        %1009 = vmatpush2.msra.mxu0 0.0
        %1010 = vmatprep.subr.mxu0 0.0
        %1011 = vmatpush2.msra.mxu0 0.0
        %1012 = vmatprep.subr.mxu0 0.0
        %1013 = vmatpush2.msra.mxu0 0.0
        %1014 = vmatprep.subr.mxu0 0.0
        %1015 = vmatpush2.msra.mxu0 0.0
        %1016 = vmatprep.subr.mxu0 0.0
        %1017 = vmatpush2.msra.mxu0 0.0
        %1018 = vmatprep.subr.mxu0 0.0
        %1019 = vmatpush2.msra.mxu0 0.0
        %1020 = vmatprep.subr.mxu0 0.0
        %1021 = vmatpush2.msra.mxu0 0.0
        %1022 = vmatprep.subr.mxu0 0.0
        %1023 = vmatpush2.msra.mxu0 0.0
        %1024 = vmatprep.subr.mxu0 0.0
        %1025 = vmatpush2.msra.mxu0 0.0
        %1026 = vmatprep.subr.mxu0 0.0
        %1027 = vmatpush2.msra.mxu0 0.0
        %1028 = vmatprep.mubr.f32.mxu0 0.0
        %1029 = vmatmul.mubr.f32.gmra.mxu0 %v864
        %v1030 = vpop.f32.mrf.mxu0
        %v1031 = vadd.f32 %v841, %v1030
        %v1032 = vpop.f32.mrf.mxu0
        %v1033 = vadd.f32 %v843, %v1032
        %1034 = vmatprep.mubr.f32.mxu0 0.0
        %1035 = vmatmul.mubr.f32.gmra.mxu0 %v867
        %v1036 = vpop.f32.mrf.mxu0
        %v1037 = vadd.f32 %v847, %v1036
        %v1038 = vpop.f32.mrf.mxu0
        %v1039 = vadd.f32 %v849, %v1038
        %1040 = vmatprep.mubr.f32.mxu0 0.0
        %1041 = vmatmul.mubr.f32.gmra.mxu0 %v870
        %v1042 = vpop.f32.mrf.mxu0
        %v1043 = vadd.f32 %v853, %v1042
        %v1044 = vpop.f32.mrf.mxu0
        %v1045 = vadd.f32 %v855, %v1044
        %1046 = vmatprep.mubr.f32.mxu0 0.0
        %1047 = vmatmul.mubr.f32.gmra.mxu0 %v873
        %v1048 = vpop.f32.mrf.mxu0
        %v1049 = vadd.f32 %v859, %v1048
        %v1050 = vpop.f32.mrf.mxu0
        %v1051 = vadd.f32 %v861, %v1050
        %1052 = vdwg.mxu0
        %s1053 = scalar_lea.vmem [#allocation5], 64
        %v1054 = vld [vmem:[%s1053] sm:$0xff]
        %v1055 = vld [vmem:[%s1053 + $0x8] sm:$0xff]
        %v1056 = vld [vmem:[%s1053 + $0x10] sm:$0xff]
        %v1057 = vld [vmem:[%s1053 + $0x18] sm:$0xff]
        %v1059 = vsel %vm509, %v1054, 0
        %v1062 = vsel %vm509, %v1055, 0
        %v1065 = vsel %vm509, %v1056, 0
        %v1068 = vsel %vm509, %v1057, 0
        %1070 = vmatprep.subr.mxu0 0.0
        %1071 = vmatpush1.msra.mxu0 0.0
        %1072 = vmatprep.subr.mxu0 0.0
        %1073 = vmatpush1.msra.mxu0 0.0
        %1074 = vmatprep.subr.mxu0 0.0
        %1075 = vmatpush1.msra.mxu0 0.0
        %1076 = vmatprep.subr.mxu0 0.0
        %1077 = vmatpush1.msra.mxu0 0.0
        %1078 = vmatprep.subr.mxu0 0.0
        %1079 = vmatpush1.msra.mxu0 0.0
        %1080 = vmatprep.subr.mxu0 0.0
        %1081 = vmatpush1.msra.mxu0 0.0
        %1082 = vmatprep.subr.mxu0 0.0
        %1083 = vmatpush1.msra.mxu0 0.0
        %1084 = vmatprep.subr.mxu0 0.0
        %1085 = vmatpush1.msra.mxu0 0.0
        %1086 = vmatprep.subr.mxu0 0.0
        %1087 = vmatpush1.msra.mxu0 0.0
        %1088 = vmatprep.subr.mxu0 0.0
        %1089 = vmatpush1.msra.mxu0 0.0
        %1090 = vmatprep.subr.mxu0 0.0
        %1091 = vmatpush1.msra.mxu0 0.0
        %1092 = vmatprep.subr.mxu0 0.0
        %1093 = vmatpush1.msra.mxu0 0.0
        %1094 = vmatprep.subr.mxu0 0.0
        %1095 = vmatpush1.msra.mxu0 %v504
        %1096 = vmatprep.subr.mxu0 0.0
        %1097 = vmatpush1.msra.mxu0 %v503
        %1098 = vmatprep.subr.mxu0 0.0
        %1099 = vmatpush1.msra.mxu0 %v502
        %1100 = vmatprep.subr.mxu0 0.0
        %1101 = vmatpush1.msra.mxu0 %v501
        %1102 = vmatprep.subr.mxu0 0.0
        %1103 = vmatpush2.msra.mxu0 0.0
        %1104 = vmatprep.subr.mxu0 0.0
        %1105 = vmatpush2.msra.mxu0 0.0
        %1106 = vmatprep.subr.mxu0 0.0
        %1107 = vmatpush2.msra.mxu0 0.0
        %1108 = vmatprep.subr.mxu0 0.0
        %1109 = vmatpush2.msra.mxu0 0.0
        %1110 = vmatprep.subr.mxu0 0.0
        %1111 = vmatpush2.msra.mxu0 0.0
        %1112 = vmatprep.subr.mxu0 0.0
        %1113 = vmatpush2.msra.mxu0 0.0
        %1114 = vmatprep.subr.mxu0 0.0
        %1115 = vmatpush2.msra.mxu0 0.0
        %1116 = vmatprep.subr.mxu0 0.0
        %1117 = vmatpush2.msra.mxu0 0.0
        %1118 = vmatprep.subr.mxu0 0.0
        %1119 = vmatpush2.msra.mxu0 0.0
        %1120 = vmatprep.subr.mxu0 0.0
        %1121 = vmatpush2.msra.mxu0 0.0
        %1122 = vmatprep.subr.mxu0 0.0
        %1123 = vmatpush2.msra.mxu0 0.0
        %1124 = vmatprep.subr.mxu0 0.0
        %1125 = vmatpush2.msra.mxu0 0.0
        %1126 = vmatprep.subr.mxu0 0.0
        %1127 = vmatpush2.msra.mxu0 0.0
        %1128 = vmatprep.subr.mxu0 0.0
        %1129 = vmatpush2.msra.mxu0 0.0
        %1130 = vmatprep.subr.mxu0 0.0
        %1131 = vmatpush2.msra.mxu0 0.0
        %1132 = vmatprep.subr.mxu0 0.0
        %1133 = vmatpush2.msra.mxu0 0.0
        %1134 = vmatprep.mubr.f32.mxu0 0.0
        %1135 = vmatmul.mubr.f32.gmra.mxu0 %v1059
        %v1136 = vpop.f32.mrf.mxu0
        %v1137 = vadd.f32 0.0, %v1136
        %v1138 = vpop.f32.mrf.mxu0
        %1139 = vmatprep.mubr.f32.mxu0 0.0
        %1140 = vmatmul.mubr.f32.gmra.mxu0 %v1062
        %v1141 = vpop.f32.mrf.mxu0
        %v1142 = vadd.f32 0.0, %v1141
        %v1143 = vpop.f32.mrf.mxu0
        %1144 = vmatprep.mubr.f32.mxu0 0.0
        %1145 = vmatmul.mubr.f32.gmra.mxu0 %v1065
        %v1146 = vpop.f32.mrf.mxu0
        %v1147 = vadd.f32 0.0, %v1146
        %v1148 = vpop.f32.mrf.mxu0
        %1149 = vmatprep.mubr.f32.mxu0 0.0
        %1150 = vmatmul.mubr.f32.gmra.mxu0 %v1068
        %v1151 = vpop.f32.mrf.mxu0
        %v1152 = vadd.f32 0.0, %v1151
        %v1153 = vpop.f32.mrf.mxu0
        %1154 = vdwg.mxu0
        %s1155 = scalar_lea.vmem [#allocation7], 512
        %v1156 = vld [vmem:[%s1155] sm:$0xff]
        %v1157 = vld [vmem:[%s1155 + $0x8] sm:$0xff]
        %v1158 = vld [vmem:[%s1155 + $0x10] sm:$0xff]
        %v1159 = vld [vmem:[%s1155 + $0x18] sm:$0xff]
        %v1160 = vld [vmem:[%s1155 + $0x20] sm:$0xff]
        %v1161 = vld [vmem:[%s1155 + $0x28] sm:$0xff]
        %v1162 = vld [vmem:[%s1155 + $0x30] sm:$0xff]
        %v1163 = vld [vmem:[%s1155 + $0x38] sm:$0xff]
        %v1164 = vld [vmem:[%s1155 + $0x40] sm:$0xff]
        %v1165 = vld [vmem:[%s1155 + $0x48] sm:$0xff]
        %v1166 = vld [vmem:[%s1155 + $0x50] sm:$0xff]
        %v1167 = vld [vmem:[%s1155 + $0x58] sm:$0xff]
        %v1168 = vld [vmem:[%s1155 + $0x60] sm:$0xff]
        %v1169 = vld [vmem:[%s1155 + $0x68] sm:$0xff]
        %v1170 = vld [vmem:[%s1155 + $0x70] sm:$0xff]
        %v1171 = vld [vmem:[%s1155 + $0x78] sm:$0xff]
        %v1172 = vld [vmem:[%s1155 + $0x80] sm:$0xff]
        %v1173 = vld [vmem:[%s1155 + $0x88] sm:$0xff]
        %v1174 = vld [vmem:[%s1155 + $0x90] sm:$0xff]
        %v1175 = vld [vmem:[%s1155 + $0x98] sm:$0xff]
        %v1176 = vld [vmem:[%s1155 + $0xa0] sm:$0xff]
        %v1177 = vld [vmem:[%s1155 + $0xa8] sm:$0xff]
        %v1178 = vld [vmem:[%s1155 + $0xb0] sm:$0xff]
        %v1179 = vld [vmem:[%s1155 + $0xb8] sm:$0xff]
        %v1180 = vld [vmem:[%s1155 + $0xc0] sm:$0xff]
        %v1181 = vld [vmem:[%s1155 + $0xc8] sm:$0xff]
        %v1182 = vld [vmem:[%s1155 + $0xd0] sm:$0xff]
        %v1183 = vld [vmem:[%s1155 + $0xd8] sm:$0xff]
        %v1184 = vld [vmem:[%s1155 + $0xe0] sm:$0xff]
        %v1185 = vld [vmem:[%s1155 + $0xe8] sm:$0xff]
        %v1186 = vld [vmem:[%s1155 + $0xf0] sm:$0xff]
        %v1187 = vld [vmem:[%s1155 + $0xf8] sm:$0xff]
        %v1189 = vsel %vm672, %v1137, 0
        %v1192 = vsel %vm672, %v1142, 0
        %v1195 = vsel %vm672, %v1147, 0
        %v1198 = vsel %vm672, %v1152, 0
        %1200 = vmatprep.subr.mxu0 0.0
        %1201 = vmatpush1.msra.mxu0 0.0
        %1202 = vmatprep.subr.mxu0 0.0
        %1203 = vmatpush1.msra.mxu0 0.0
        %1204 = vmatprep.subr.mxu0 0.0
        %1205 = vmatpush1.msra.mxu0 0.0
        %1206 = vmatprep.subr.mxu0 0.0
        %1207 = vmatpush1.msra.mxu0 0.0
        %1208 = vmatprep.subr.mxu0 0.0
        %1209 = vmatpush1.msra.mxu0 0.0
        %1210 = vmatprep.subr.mxu0 0.0
        %1211 = vmatpush1.msra.mxu0 0.0
        %1212 = vmatprep.subr.mxu0 0.0
        %1213 = vmatpush1.msra.mxu0 0.0
        %1214 = vmatprep.subr.mxu0 0.0
        %1215 = vmatpush1.msra.mxu0 0.0
        %1216 = vmatprep.subr.mxu0 %v1185
        %1217 = vmatpush1.msra.mxu0 %v1184
        %1218 = vmatprep.subr.mxu0 %v1181
        %1219 = vmatpush1.msra.mxu0 %v1180
        %1220 = vmatprep.subr.mxu0 %v1177
        %1221 = vmatpush1.msra.mxu0 %v1176
        %1222 = vmatprep.subr.mxu0 %v1173
        %1223 = vmatpush1.msra.mxu0 %v1172
        %1224 = vmatprep.subr.mxu0 %v1169
        %1225 = vmatpush1.msra.mxu0 %v1168
        %1226 = vmatprep.subr.mxu0 %v1165
        %1227 = vmatpush1.msra.mxu0 %v1164
        %1228 = vmatprep.subr.mxu0 %v1161
        %1229 = vmatpush1.msra.mxu0 %v1160
        %1230 = vmatprep.subr.mxu0 %v1157
        %1231 = vmatpush1.msra.mxu0 %v1156
        %1232 = vmatprep.subr.mxu0 0.0
        %1233 = vmatpush2.msra.mxu0 0.0
        %1234 = vmatprep.subr.mxu0 0.0
        %1235 = vmatpush2.msra.mxu0 0.0
        %1236 = vmatprep.subr.mxu0 0.0
        %1237 = vmatpush2.msra.mxu0 0.0
        %1238 = vmatprep.subr.mxu0 0.0
        %1239 = vmatpush2.msra.mxu0 0.0
        %1240 = vmatprep.subr.mxu0 0.0
        %1241 = vmatpush2.msra.mxu0 0.0
        %1242 = vmatprep.subr.mxu0 0.0
        %1243 = vmatpush2.msra.mxu0 0.0
        %1244 = vmatprep.subr.mxu0 0.0
        %1245 = vmatpush2.msra.mxu0 0.0
        %1246 = vmatprep.subr.mxu0 0.0
        %1247 = vmatpush2.msra.mxu0 0.0
        %1248 = vmatprep.subr.mxu0 0.0
        %1249 = vmatpush2.msra.mxu0 0.0
        %1250 = vmatprep.subr.mxu0 0.0
        %1251 = vmatpush2.msra.mxu0 0.0
        %1252 = vmatprep.subr.mxu0 0.0
        %1253 = vmatpush2.msra.mxu0 0.0
        %1254 = vmatprep.subr.mxu0 0.0
        %1255 = vmatpush2.msra.mxu0 0.0
        %1256 = vmatprep.subr.mxu0 0.0
        %1257 = vmatpush2.msra.mxu0 0.0
        %1258 = vmatprep.subr.mxu0 0.0
        %1259 = vmatpush2.msra.mxu0 0.0
        %1260 = vmatprep.subr.mxu0 0.0
        %1261 = vmatpush2.msra.mxu0 0.0
        %1262 = vmatprep.subr.mxu0 0.0
        %1263 = vmatpush2.msra.mxu0 0.0
        %1264 = vmatprep.mubr.f32.mxu0 0.0
        %1265 = vmatmul.mubr.f32.gmra.mxu0 %v1189
        %v1266 = vpop.f32.mrf.mxu0
        %v1267 = vadd.f32 0.0, %v1266
        %v1268 = vpop.f32.mrf.mxu0
        %v1269 = vadd.f32 0.0, %v1268
        %1270 = vmatprep.mubr.f32.mxu0 0.0
        %1271 = vmatmul.mubr.f32.gmra.mxu0 %v1192
        %v1272 = vpop.f32.mrf.mxu0
        %v1273 = vadd.f32 0.0, %v1272
        %v1274 = vpop.f32.mrf.mxu0
        %v1275 = vadd.f32 0.0, %v1274
        %1276 = vmatprep.mubr.f32.mxu0 0.0
        %1277 = vmatmul.mubr.f32.gmra.mxu0 %v1195
        %v1278 = vpop.f32.mrf.mxu0
        %v1279 = vadd.f32 0.0, %v1278
        %v1280 = vpop.f32.mrf.mxu0
        %v1281 = vadd.f32 0.0, %v1280
        %1282 = vmatprep.mubr.f32.mxu0 0.0
        %1283 = vmatmul.mubr.f32.gmra.mxu0 %v1198
        %v1284 = vpop.f32.mrf.mxu0
        %v1285 = vadd.f32 0.0, %v1284
        %v1286 = vpop.f32.mrf.mxu0
        %v1287 = vadd.f32 0.0, %v1286
        %1288 = vdwg.mxu0
        %1289 = vmatprep.subr.mxu0 0.0
        %1290 = vmatpush1.msra.mxu0 0.0
        %1291 = vmatprep.subr.mxu0 0.0
        %1292 = vmatpush1.msra.mxu0 0.0
        %1293 = vmatprep.subr.mxu0 0.0
        %1294 = vmatpush1.msra.mxu0 0.0
        %1295 = vmatprep.subr.mxu0 0.0
        %1296 = vmatpush1.msra.mxu0 0.0
        %1297 = vmatprep.subr.mxu0 0.0
        %1298 = vmatpush1.msra.mxu0 0.0
        %1299 = vmatprep.subr.mxu0 0.0
        %1300 = vmatpush1.msra.mxu0 0.0
        %1301 = vmatprep.subr.mxu0 0.0
        %1302 = vmatpush1.msra.mxu0 0.0
        %1303 = vmatprep.subr.mxu0 0.0
        %1304 = vmatpush1.msra.mxu0 0.0
        %1305 = vmatprep.subr.mxu0 %v1187
        %1306 = vmatpush1.msra.mxu0 %v1186
        %1307 = vmatprep.subr.mxu0 %v1183
        %1308 = vmatpush1.msra.mxu0 %v1182
        %1309 = vmatprep.subr.mxu0 %v1179
        %1310 = vmatpush1.msra.mxu0 %v1178
        %1311 = vmatprep.subr.mxu0 %v1175
        %1312 = vmatpush1.msra.mxu0 %v1174
        %1313 = vmatprep.subr.mxu0 %v1171
        %1314 = vmatpush1.msra.mxu0 %v1170
        %1315 = vmatprep.subr.mxu0 %v1167
        %1316 = vmatpush1.msra.mxu0 %v1166
        %1317 = vmatprep.subr.mxu0 %v1163
        %1318 = vmatpush1.msra.mxu0 %v1162
        %1319 = vmatprep.subr.mxu0 %v1159
        %1320 = vmatpush1.msra.mxu0 %v1158
        %1321 = vmatprep.subr.mxu0 0.0
        %1322 = vmatpush2.msra.mxu0 0.0
        %1323 = vmatprep.subr.mxu0 0.0
        %1324 = vmatpush2.msra.mxu0 0.0
        %1325 = vmatprep.subr.mxu0 0.0
        %1326 = vmatpush2.msra.mxu0 0.0
        %1327 = vmatprep.subr.mxu0 0.0
        %1328 = vmatpush2.msra.mxu0 0.0
        %1329 = vmatprep.subr.mxu0 0.0
        %1330 = vmatpush2.msra.mxu0 0.0
        %1331 = vmatprep.subr.mxu0 0.0
        %1332 = vmatpush2.msra.mxu0 0.0
        %1333 = vmatprep.subr.mxu0 0.0
        %1334 = vmatpush2.msra.mxu0 0.0
        %1335 = vmatprep.subr.mxu0 0.0
        %1336 = vmatpush2.msra.mxu0 0.0
        %1337 = vmatprep.subr.mxu0 0.0
        %1338 = vmatpush2.msra.mxu0 0.0
        %1339 = vmatprep.subr.mxu0 0.0
        %1340 = vmatpush2.msra.mxu0 0.0
        %1341 = vmatprep.subr.mxu0 0.0
        %1342 = vmatpush2.msra.mxu0 0.0
        %1343 = vmatprep.subr.mxu0 0.0
        %1344 = vmatpush2.msra.mxu0 0.0
        %1345 = vmatprep.subr.mxu0 0.0
        %1346 = vmatpush2.msra.mxu0 0.0
        %1347 = vmatprep.subr.mxu0 0.0
        %1348 = vmatpush2.msra.mxu0 0.0
        %1349 = vmatprep.subr.mxu0 0.0
        %1350 = vmatpush2.msra.mxu0 0.0
        %1351 = vmatprep.subr.mxu0 0.0
        %1352 = vmatpush2.msra.mxu0 0.0
        %1353 = vmatprep.mubr.f32.mxu0 0.0
        %1354 = vmatmul.mubr.f32.gmra.mxu0 %v1189
        %v1355 = vpop.f32.mrf.mxu0
        %v1356 = vadd.f32 0.0, %v1355
        %v1357 = vpop.f32.mrf.mxu0
        %v1358 = vadd.f32 0.0, %v1357
        %1359 = vmatprep.mubr.f32.mxu0 0.0
        %1360 = vmatmul.mubr.f32.gmra.mxu0 %v1192
        %v1361 = vpop.f32.mrf.mxu0
        %v1362 = vadd.f32 0.0, %v1361
        %v1363 = vpop.f32.mrf.mxu0
        %v1364 = vadd.f32 0.0, %v1363
        %1365 = vmatprep.mubr.f32.mxu0 0.0
        %1366 = vmatmul.mubr.f32.gmra.mxu0 %v1195
        %v1367 = vpop.f32.mrf.mxu0
        %v1368 = vadd.f32 0.0, %v1367
        %v1369 = vpop.f32.mrf.mxu0
        %v1370 = vadd.f32 0.0, %v1369
        %1371 = vmatprep.mubr.f32.mxu0 0.0
        %1372 = vmatmul.mubr.f32.gmra.mxu0 %v1198
        %v1373 = vpop.f32.mrf.mxu0
        %v1374 = vadd.f32 0.0, %v1373
        %v1375 = vpop.f32.mrf.mxu0
        %v1376 = vadd.f32 0.0, %v1375
        %1377 = vdwg.mxu0
        %v1378 = vadd.f32 %v942, %v1267
        %v1379 = vadd.f32 %v944, %v1269
        %v1380 = vadd.f32 %v1031, %v1356
        %v1381 = vadd.f32 %v1033, %v1358
        %v1382 = vadd.f32 %v948, %v1273
        %v1383 = vadd.f32 %v950, %v1275
        %v1384 = vadd.f32 %v1037, %v1362
        %v1385 = vadd.f32 %v1039, %v1364
        %v1386 = vadd.f32 %v954, %v1279
        %v1387 = vadd.f32 %v956, %v1281
        %v1388 = vadd.f32 %v1043, %v1368
        %v1389 = vadd.f32 %v1045, %v1370
        %v1390 = vadd.f32 %v960, %v1285
        %v1391 = vadd.f32 %v962, %v1287
        %v1392 = vadd.f32 %v1049, %v1374
        %v1393 = vadd.f32 %v1051, %v1376
        %v1394 = vld [vmem:[#allocation8] sm:$0xf]
        %v1396 = vlaneseq
        %v1397 = vshrl.u32 %v1396, 7
        %v1398 = vsub.s32 0, %v1397
        %v1399 = vrot.slane %v1394, %v1398
        %v1400 = vlaneseq
        %v1401 = vshrl.u32 %v1400, 7
        %v1402 = vsub.s32 1, %v1401
        %v1403 = vrot.slane %v1394, %v1402
        %v1404 = vlaneseq
        %v1405 = vshrl.u32 %v1404, 7
        %v1406 = vsub.s32 2, %v1405
        %v1407 = vrot.slane %v1394, %v1406
        %v1408 = vlaneseq
        %v1409 = vshrl.u32 %v1408, 7
        %v1410 = vsub.s32 3, %v1409
        %v1411 = vrot.slane %v1394, %v1410
        %v1416 = vadd.f32 %v1378, %v1399
        %v1417 = vadd.f32 %v1379, %v1403
        %v1418 = vadd.f32 %v1380, %v1407
        %v1419 = vadd.f32 %v1381, %v1411
        %v1420 = vadd.f32 %v1382, %v1399
        %v1421 = vadd.f32 %v1383, %v1403
        %v1422 = vadd.f32 %v1384, %v1407
        %v1423 = vadd.f32 %v1385, %v1411
        %v1424 = vadd.f32 %v1386, %v1399
        %v1425 = vadd.f32 %v1387, %v1403
        %v1426 = vadd.f32 %v1388, %v1407
        %v1427 = vadd.f32 %v1389, %v1411
        %v1428 = vadd.f32 %v1390, %v1399
        %v1429 = vadd.f32 %v1391, %v1403
        %v1430 = vadd.f32 %v1392, %v1407
        %v1431 = vadd.f32 %v1393, %v1411
        %v1432 = vxor.u32 %v1418, 2147483648
        %v1433 = vxor.u32 %v1419, 2147483648
        %v1434 = vxor.u32 %v1422, 2147483648
        %v1435 = vxor.u32 %v1423, 2147483648
        %v1436 = vxor.u32 %v1426, 2147483648
        %v1437 = vxor.u32 %v1427, 2147483648
        %v1438 = vxor.u32 %v1430, 2147483648
        %v1439 = vxor.u32 %v1431, 2147483648
        %v1440 = vmul.f32 %v1432, 1.442695
        %v1441 = vpow.pop %v1440
        %v1442 = vmul.f32 %v1433, 1.442695
        %v1443 = vpow.pop %v1442
        %v1444 = vmul.f32 %v1434, 1.442695
        %v1445 = vpow.pop %v1444
        %v1446 = vmul.f32 %v1435, 1.442695
        %v1447 = vpow.pop %v1446
        %v1448 = vmul.f32 %v1436, 1.442695
        %v1449 = vpow.pop %v1448
        %v1450 = vmul.f32 %v1437, 1.442695
        %v1451 = vpow.pop %v1450
        %v1452 = vmul.f32 %v1438, 1.442695
        %v1453 = vpow.pop %v1452
        %v1454 = vmul.f32 %v1439, 1.442695
        %v1455 = vpow.pop %v1454
        %v1456 = vadd.f32 %v1441, 1.0
        %v1457 = vadd.f32 %v1443, 1.0
        %v1458 = vadd.f32 %v1445, 1.0
        %v1459 = vadd.f32 %v1447, 1.0
        %v1460 = vadd.f32 %v1449, 1.0
        %v1461 = vadd.f32 %v1451, 1.0
        %v1462 = vadd.f32 %v1453, 1.0
        %v1463 = vadd.f32 %v1455, 1.0
        %v1464 = vrcp.pop %v1456
        %v1465 = vmul.f32 1.0, %v1464
        %v1466 = vrcp.pop %v1457
        %v1467 = vmul.f32 1.0, %v1466
        %v1468 = vrcp.pop %v1458
        %v1469 = vmul.f32 1.0, %v1468
        %v1470 = vrcp.pop %v1459
        %v1471 = vmul.f32 1.0, %v1470
        %v1472 = vrcp.pop %v1460
        %v1473 = vmul.f32 1.0, %v1472
        %v1474 = vrcp.pop %v1461
        %v1475 = vmul.f32 1.0, %v1474
        %v1476 = vrcp.pop %v1462
        %v1477 = vmul.f32 1.0, %v1476
        %v1478 = vrcp.pop %v1463
        %v1479 = vmul.f32 1.0, %v1478
        %v1480 = vmul.f32 %v1416, %v1465
        %v1481 = vmul.f32 %v1417, %v1467
        %v1482 = vmul.f32 %v1420, %v1469
        %v1483 = vmul.f32 %v1421, %v1471
        %v1484 = vmul.f32 %v1424, %v1473
        %v1485 = vmul.f32 %v1425, %v1475
        %v1486 = vmul.f32 %v1428, %v1477
        %v1487 = vmul.f32 %v1429, %v1479
        %v1488 = vld [vmem:[#allocation10] sm:$0xff]
        %v1489 = vld [vmem:[#allocation10 + $0x8] sm:$0xff]
        %v1490 = vld [vmem:[#allocation10 + $0x10] sm:$0xff]
        %v1491 = vld [vmem:[#allocation10 + $0x18] sm:$0xff]
        %v1492 = vld [vmem:[#allocation10 + $0x20] sm:$0xff]
        %v1493 = vld [vmem:[#allocation10 + $0x28] sm:$0xff]
        %v1494 = vld [vmem:[#allocation10 + $0x30] sm:$0xff]
        %v1495 = vld [vmem:[#allocation10 + $0x38] sm:$0xff]
        %v1496 = vld [vmem:[#allocation10 + $0x40] sm:$0xff]
        %v1497 = vld [vmem:[#allocation10 + $0x48] sm:$0xff]
        %v1498 = vld [vmem:[#allocation10 + $0x50] sm:$0xff]
        %v1499 = vld [vmem:[#allocation10 + $0x58] sm:$0xff]
        %v1500 = vld [vmem:[#allocation10 + $0x60] sm:$0xff]
        %v1501 = vld [vmem:[#allocation10 + $0x68] sm:$0xff]
        %v1502 = vld [vmem:[#allocation10 + $0x70] sm:$0xff]
        %v1503 = vld [vmem:[#allocation10 + $0x78] sm:$0xff]
        %v1504 = vld [vmem:[#allocation10 + $0x80] sm:$0xff]
        %v1505 = vld [vmem:[#allocation10 + $0x88] sm:$0xff]
        %v1506 = vld [vmem:[#allocation10 + $0x90] sm:$0xff]
        %v1507 = vld [vmem:[#allocation10 + $0x98] sm:$0xff]
        %v1508 = vld [vmem:[#allocation10 + $0xa0] sm:$0xff]
        %v1509 = vld [vmem:[#allocation10 + $0xa8] sm:$0xff]
        %v1510 = vld [vmem:[#allocation10 + $0xb0] sm:$0xff]
        %v1511 = vld [vmem:[#allocation10 + $0xb8] sm:$0xff]
        %v1512 = vld [vmem:[#allocation10 + $0xc0] sm:$0xff]
        %v1513 = vld [vmem:[#allocation10 + $0xc8] sm:$0xff]
        %v1514 = vld [vmem:[#allocation10 + $0xd0] sm:$0xff]
        %v1515 = vld [vmem:[#allocation10 + $0xd8] sm:$0xff]
        %v1516 = vld [vmem:[#allocation10 + $0xe0] sm:$0xff]
        %v1517 = vld [vmem:[#allocation10 + $0xe8] sm:$0xff]
        %v1518 = vld [vmem:[#allocation10 + $0xf0] sm:$0xff]
        %v1519 = vld [vmem:[#allocation10 + $0xf8] sm:$0xff]
        %v1520 = vld [vmem:[#allocation10 + $0x100] sm:$0xff]
        %v1521 = vld [vmem:[#allocation10 + $0x108] sm:$0xff]
        %v1522 = vld [vmem:[#allocation10 + $0x110] sm:$0xff]
        %v1523 = vld [vmem:[#allocation10 + $0x118] sm:$0xff]
        %v1524 = vld [vmem:[#allocation10 + $0x120] sm:$0xff]
        %v1525 = vld [vmem:[#allocation10 + $0x128] sm:$0xff]
        %v1526 = vld [vmem:[#allocation10 + $0x130] sm:$0xff]
        %v1527 = vld [vmem:[#allocation10 + $0x138] sm:$0xff]
        %v1528 = vld [vmem:[#allocation10 + $0x140] sm:$0xff]
        %v1529 = vld [vmem:[#allocation10 + $0x148] sm:$0xff]
        %v1530 = vld [vmem:[#allocation10 + $0x150] sm:$0xff]
        %v1531 = vld [vmem:[#allocation10 + $0x158] sm:$0xff]
        %v1532 = vld [vmem:[#allocation10 + $0x160] sm:$0xff]
        %v1533 = vld [vmem:[#allocation10 + $0x168] sm:$0xff]
        %v1534 = vld [vmem:[#allocation10 + $0x170] sm:$0xff]
        %v1535 = vld [vmem:[#allocation10 + $0x178] sm:$0xff]
        %v1536 = vld [vmem:[#allocation10 + $0x180] sm:$0xff]
        %v1537 = vld [vmem:[#allocation10 + $0x188] sm:$0xff]
        %v1538 = vld [vmem:[#allocation10 + $0x190] sm:$0xff]
        %v1539 = vld [vmem:[#allocation10 + $0x198] sm:$0xff]
        %v1540 = vld [vmem:[#allocation10 + $0x1a0] sm:$0xff]
        %v1541 = vld [vmem:[#allocation10 + $0x1a8] sm:$0xff]
        %v1542 = vld [vmem:[#allocation10 + $0x1b0] sm:$0xff]
        %v1543 = vld [vmem:[#allocation10 + $0x1b8] sm:$0xff]
        %v1544 = vld [vmem:[#allocation10 + $0x1c0] sm:$0xff]
        %v1545 = vld [vmem:[#allocation10 + $0x1c8] sm:$0xff]
        %v1546 = vld [vmem:[#allocation10 + $0x1d0] sm:$0xff]
        %v1547 = vld [vmem:[#allocation10 + $0x1d8] sm:$0xff]
        %v1548 = vld [vmem:[#allocation10 + $0x1e0] sm:$0xff]
        %v1549 = vld [vmem:[#allocation10 + $0x1e8] sm:$0xff]
        %v1550 = vld [vmem:[#allocation10 + $0x1f0] sm:$0xff]
        %v1551 = vld [vmem:[#allocation10 + $0x1f8] sm:$0xff]
        %v1552 = vld [vmem:[#allocation11] sm:$0x3]
        %v1554 = vlaneseq
        %v1555 = vshrl.u32 %v1554, 7
        %v1556 = vsub.s32 0, %v1555
        %v1557 = vrot.slane %v1552, %v1556
        %v1558 = vlaneseq
        %v1559 = vshrl.u32 %v1558, 7
        %v1560 = vsub.s32 1, %v1559
        %v1561 = vrot.slane %v1552, %v1560
        %1564 = vmatprep.subr.mxu0 %v1519
        %1565 = vmatpush1.msra.mxu0 %v1518
        %1566 = vmatprep.subr.mxu0 %v1517
        %1567 = vmatpush1.msra.mxu0 %v1516
        %1568 = vmatprep.subr.mxu0 %v1515
        %1569 = vmatpush1.msra.mxu0 %v1514
        %1570 = vmatprep.subr.mxu0 %v1513
        %1571 = vmatpush1.msra.mxu0 %v1512
        %1572 = vmatprep.subr.mxu0 %v1511
        %1573 = vmatpush1.msra.mxu0 %v1510
        %1574 = vmatprep.subr.mxu0 %v1509
        %1575 = vmatpush1.msra.mxu0 %v1508
        %1576 = vmatprep.subr.mxu0 %v1507
        %1577 = vmatpush1.msra.mxu0 %v1506
        %1578 = vmatprep.subr.mxu0 %v1505
        %1579 = vmatpush1.msra.mxu0 %v1504
        %1580 = vmatprep.subr.mxu0 %v1503
        %1581 = vmatpush1.msra.mxu0 %v1502
        %1582 = vmatprep.subr.mxu0 %v1501
        %1583 = vmatpush1.msra.mxu0 %v1500
        %1584 = vmatprep.subr.mxu0 %v1499
        %1585 = vmatpush1.msra.mxu0 %v1498
        %1586 = vmatprep.subr.mxu0 %v1497
        %1587 = vmatpush1.msra.mxu0 %v1496
        %1588 = vmatprep.subr.mxu0 %v1495
        %1589 = vmatpush1.msra.mxu0 %v1494
        %1590 = vmatprep.subr.mxu0 %v1493
        %1591 = vmatpush1.msra.mxu0 %v1492
        %1592 = vmatprep.subr.mxu0 %v1491
        %1593 = vmatpush1.msra.mxu0 %v1490
        %1594 = vmatprep.subr.mxu0 %v1489
        %1595 = vmatpush1.msra.mxu0 %v1488
        %1596 = vmatprep.subr.mxu0 %v1551
        %1597 = vmatpush2.msra.mxu0 %v1550
        %1598 = vmatprep.subr.mxu0 %v1549
        %1599 = vmatpush2.msra.mxu0 %v1548
        %1600 = vmatprep.subr.mxu0 %v1547
        %1601 = vmatpush2.msra.mxu0 %v1546
        %1602 = vmatprep.subr.mxu0 %v1545
        %1603 = vmatpush2.msra.mxu0 %v1544
        %1604 = vmatprep.subr.mxu0 %v1543
        %1605 = vmatpush2.msra.mxu0 %v1542
        %1606 = vmatprep.subr.mxu0 %v1541
        %1607 = vmatpush2.msra.mxu0 %v1540
        %1608 = vmatprep.subr.mxu0 %v1539
        %1609 = vmatpush2.msra.mxu0 %v1538
        %1610 = vmatprep.subr.mxu0 %v1537
        %1611 = vmatpush2.msra.mxu0 %v1536
        %1612 = vmatprep.subr.mxu0 %v1535
        %1613 = vmatpush2.msra.mxu0 %v1534
        %1614 = vmatprep.subr.mxu0 %v1533
        %1615 = vmatpush2.msra.mxu0 %v1532
        %1616 = vmatprep.subr.mxu0 %v1531
        %1617 = vmatpush2.msra.mxu0 %v1530
        %1618 = vmatprep.subr.mxu0 %v1529
        %1619 = vmatpush2.msra.mxu0 %v1528
        %1620 = vmatprep.subr.mxu0 %v1527
        %1621 = vmatpush2.msra.mxu0 %v1526
        %1622 = vmatprep.subr.mxu0 %v1525
        %1623 = vmatpush2.msra.mxu0 %v1524
        %1624 = vmatprep.subr.mxu0 %v1523
        %1625 = vmatpush2.msra.mxu0 %v1522
        %1626 = vmatprep.subr.mxu0 %v1521
        %1627 = vmatpush2.msra.mxu0 %v1520
        %1628 = vmatprep.mubr.f32.mxu0 %v1481
        %1629 = vmatmul.mubr.f32.gmra.mxu0 %v1480
        %v1630 = vpop.f32.mrf.mxu0
        %v1631 = vadd.f32 %v1557, %v1630
        %v1632 = vpop.f32.mrf.mxu0
        %v1633 = vadd.f32 %v1561, %v1632
        %1634 = vmatprep.mubr.f32.mxu0 %v1483
        %1635 = vmatmul.mubr.f32.gmra.mxu0 %v1482
        %v1636 = vpop.f32.mrf.mxu0
        %v1637 = vadd.f32 %v1557, %v1636
        %v1638 = vpop.f32.mrf.mxu0
        %v1639 = vadd.f32 %v1561, %v1638
        %1640 = vmatprep.mubr.f32.mxu0 %v1485
        %1641 = vmatmul.mubr.f32.gmra.mxu0 %v1484
        %v1642 = vpop.f32.mrf.mxu0
        %v1643 = vadd.f32 %v1557, %v1642
        %v1644 = vpop.f32.mrf.mxu0
        %v1645 = vadd.f32 %v1561, %v1644
        %1646 = vmatprep.mubr.f32.mxu0 %v1487
        %1647 = vmatmul.mubr.f32.gmra.mxu0 %v1486
        %v1648 = vpop.f32.mrf.mxu0
        %v1649 = vadd.f32 %v1557, %v1648
        %v1650 = vpop.f32.mrf.mxu0
        %v1651 = vadd.f32 %v1561, %v1650
        %1652 = vdwg.mxu0
        %v1653 = vmax.f32 %v1631, 0.0
        %v1654 = vmax.f32 %v1633, 0.0
        %v1655 = vmax.f32 %v1637, 0.0
        %v1656 = vmax.f32 %v1639, 0.0
        %v1657 = vmax.f32 %v1643, 0.0
        %v1658 = vmax.f32 %v1645, 0.0
        %v1659 = vmax.f32 %v1649, 0.0
        %v1660 = vmax.f32 %v1651, 0.0
        %1661 = vmatprep.subr.mxu0 0.0
        %1662 = vmatpush1.msra.mxu0 0.0
        %1663 = vmatprep.subr.mxu0 0.0
        %1664 = vmatpush1.msra.mxu0 0.0
        %1665 = vmatprep.subr.mxu0 0.0
        %1666 = vmatpush1.msra.mxu0 0.0
        %1667 = vmatprep.subr.mxu0 0.0
        %1668 = vmatpush1.msra.mxu0 0.0
        %1669 = vmatprep.subr.mxu0 0.0
        %1670 = vmatpush1.msra.mxu0 0.0
        %1671 = vmatprep.subr.mxu0 0.0
        %1672 = vmatpush1.msra.mxu0 0.0
        %1673 = vmatprep.subr.mxu0 0.0
        %1674 = vmatpush1.msra.mxu0 0.0
        %1675 = vmatprep.subr.mxu0 0.0
        %1676 = vmatpush1.msra.mxu0 0.0
        %1677 = vmatprep.subr.mxu0 0.0
        %1678 = vmatpush1.msra.mxu0 0.0
        %1679 = vmatprep.subr.mxu0 0.0
        %1680 = vmatpush1.msra.mxu0 0.0
        %1681 = vmatprep.subr.mxu0 0.0
        %1682 = vmatpush1.msra.mxu0 0.0
        %1683 = vmatprep.subr.mxu0 0.0
        %1684 = vmatpush1.msra.mxu0 0.0
        %1685 = vmatprep.subr.mxu0 %v1660
        %1686 = vmatpush1.msra.mxu0 %v1659
        %1687 = vmatprep.subr.mxu0 %v1658
        %1688 = vmatpush1.msra.mxu0 %v1657
        %1689 = vmatprep.subr.mxu0 %v1656
        %1690 = vmatpush1.msra.mxu0 %v1655
        %1691 = vmatprep.subr.mxu0 %v1654
        %1692 = vmatpush1.msra.mxu0 %v1653
        %1693 = vmatprep.subr.mxu0 0.0
        %1694 = vmatpush2.msra.mxu0 0.0
        %1695 = vmatprep.subr.mxu0 0.0
        %1696 = vmatpush2.msra.mxu0 0.0
        %1697 = vmatprep.subr.mxu0 0.0
        %1698 = vmatpush2.msra.mxu0 0.0
        %1699 = vmatprep.subr.mxu0 0.0
        %1700 = vmatpush2.msra.mxu0 0.0
        %1701 = vmatprep.subr.mxu0 0.0
        %1702 = vmatpush2.msra.mxu0 0.0
        %1703 = vmatprep.subr.mxu0 0.0
        %1704 = vmatpush2.msra.mxu0 0.0
        %1705 = vmatprep.subr.mxu0 0.0
        %1706 = vmatpush2.msra.mxu0 0.0
        %1707 = vmatprep.subr.mxu0 0.0
        %1708 = vmatpush2.msra.mxu0 0.0
        %1709 = vmatprep.subr.mxu0 0.0
        %1710 = vmatpush2.msra.mxu0 0.0
        %1711 = vmatprep.subr.mxu0 0.0
        %1712 = vmatpush2.msra.mxu0 0.0
        %1713 = vmatprep.subr.mxu0 0.0
        %1714 = vmatpush2.msra.mxu0 0.0
        %1715 = vmatprep.subr.mxu0 0.0
        %1716 = vmatpush2.msra.mxu0 0.0
        %1717 = vmatprep.subr.mxu0 0.0
        %1718 = vmatpush2.msra.mxu0 0.0
        %1719 = vmatprep.subr.mxu0 0.0
        %1720 = vmatpush2.msra.mxu0 0.0
        %1721 = vmatprep.subr.mxu0 0.0
        %1722 = vmatpush2.msra.mxu0 0.0
        %1723 = vmatprep.subr.mxu0 0.0
        %1724 = vmatpush2.msra.mxu0 0.0
        %1725 = vmatprep.mubr.f32.mxu0 0.0
        %1726 = vmatmul.mubr.f32.gmra.mxu0 %v511
        %v1727 = vpop.f32.mrf.mxu0
        %v1728 = vadd.f32 0.0, %v1727
        %v1729 = vpop.f32.mrf.mxu0
        %v1730 = vadd.f32 0.0, %v1729
        %1731 = vmatprep.mubr.f32.mxu0 0.0
        %1732 = vmatmul.mubr.f32.gmra.mxu0 %v514
        %v1733 = vpop.f32.mrf.mxu0
        %v1734 = vadd.f32 0.0, %v1733
        %v1735 = vpop.f32.mrf.mxu0
        %v1736 = vadd.f32 0.0, %v1735
        %1737 = vmatprep.mubr.f32.mxu0 0.0
        %1738 = vmatmul.mubr.f32.gmra.mxu0 %v517
        %v1739 = vpop.f32.mrf.mxu0
        %v1740 = vadd.f32 0.0, %v1739
        %v1741 = vpop.f32.mrf.mxu0
        %v1742 = vadd.f32 0.0, %v1741
        %1743 = vmatprep.mubr.f32.mxu0 0.0
        %1744 = vmatmul.mubr.f32.gmra.mxu0 %v520
        %v1745 = vpop.f32.mrf.mxu0
        %v1746 = vadd.f32 0.0, %v1745
        %v1747 = vpop.f32.mrf.mxu0
        %v1748 = vadd.f32 0.0, %v1747
        %1749 = vdwg.mxu0
        %v1750 = vld [vmem:[#allocation13] sm:$0xff]
        %v1751 = vld [vmem:[#allocation13 + $0x8] sm:$0xff]
        %v1752 = vld [vmem:[#allocation13 + $0x10] sm:$0xff]
        %v1753 = vld [vmem:[#allocation13 + $0x18] sm:$0xff]
        %v1754 = vld [vmem:[#allocation13 + $0x20] sm:$0xff]
        %v1755 = vld [vmem:[#allocation13 + $0x28] sm:$0xff]
        %v1756 = vld [vmem:[#allocation13 + $0x30] sm:$0xff]
        %v1757 = vld [vmem:[#allocation13 + $0x38] sm:$0xff]
        %v1758 = vld [vmem:[#allocation13 + $0x40] sm:$0xff]
        %v1759 = vld [vmem:[#allocation13 + $0x48] sm:$0xff]
        %v1760 = vld [vmem:[#allocation13 + $0x50] sm:$0xff]
        %v1761 = vld [vmem:[#allocation13 + $0x58] sm:$0xff]
        %v1762 = vld [vmem:[#allocation13 + $0x60] sm:$0xff]
        %v1763 = vld [vmem:[#allocation13 + $0x68] sm:$0xff]
        %v1764 = vld [vmem:[#allocation13 + $0x70] sm:$0xff]
        %v1765 = vld [vmem:[#allocation13 + $0x78] sm:$0xff]
        %v1766 = vld [vmem:[#allocation13 + $0x80] sm:$0xff]
        %v1767 = vld [vmem:[#allocation13 + $0x88] sm:$0xff]
        %v1768 = vld [vmem:[#allocation13 + $0x90] sm:$0xff]
        %v1769 = vld [vmem:[#allocation13 + $0x98] sm:$0xff]
        %v1770 = vld [vmem:[#allocation13 + $0xa0] sm:$0xff]
        %v1771 = vld [vmem:[#allocation13 + $0xa8] sm:$0xff]
        %v1772 = vld [vmem:[#allocation13 + $0xb0] sm:$0xff]
        %v1773 = vld [vmem:[#allocation13 + $0xb8] sm:$0xff]
        %v1774 = vld [vmem:[#allocation13 + $0xc0] sm:$0xff]
        %v1775 = vld [vmem:[#allocation13 + $0xc8] sm:$0xff]
        %v1776 = vld [vmem:[#allocation13 + $0xd0] sm:$0xff]
        %v1777 = vld [vmem:[#allocation13 + $0xd8] sm:$0xff]
        %v1778 = vld [vmem:[#allocation13 + $0xe0] sm:$0xff]
        %v1779 = vld [vmem:[#allocation13 + $0xe8] sm:$0xff]
        %v1780 = vld [vmem:[#allocation13 + $0xf0] sm:$0xff]
        %v1781 = vld [vmem:[#allocation13 + $0xf8] sm:$0xff]
        %v1782 = vld [vmem:[#allocation13 + $0x100] sm:$0xff]
        %v1783 = vld [vmem:[#allocation13 + $0x108] sm:$0xff]
        %v1784 = vld [vmem:[#allocation13 + $0x110] sm:$0xff]
        %v1785 = vld [vmem:[#allocation13 + $0x118] sm:$0xff]
        %v1786 = vld [vmem:[#allocation13 + $0x120] sm:$0xff]
        %v1787 = vld [vmem:[#allocation13 + $0x128] sm:$0xff]
        %v1788 = vld [vmem:[#allocation13 + $0x130] sm:$0xff]
        %v1789 = vld [vmem:[#allocation13 + $0x138] sm:$0xff]
        %v1790 = vld [vmem:[#allocation13 + $0x140] sm:$0xff]
        %v1791 = vld [vmem:[#allocation13 + $0x148] sm:$0xff]
        %v1792 = vld [vmem:[#allocation13 + $0x150] sm:$0xff]
        %v1793 = vld [vmem:[#allocation13 + $0x158] sm:$0xff]
        %v1794 = vld [vmem:[#allocation13 + $0x160] sm:$0xff]
        %v1795 = vld [vmem:[#allocation13 + $0x168] sm:$0xff]
        %v1796 = vld [vmem:[#allocation13 + $0x170] sm:$0xff]
        %v1797 = vld [vmem:[#allocation13 + $0x178] sm:$0xff]
        %v1798 = vld [vmem:[#allocation13 + $0x180] sm:$0xff]
        %v1799 = vld [vmem:[#allocation13 + $0x188] sm:$0xff]
        %v1800 = vld [vmem:[#allocation13 + $0x190] sm:$0xff]
        %v1801 = vld [vmem:[#allocation13 + $0x198] sm:$0xff]
        %v1802 = vld [vmem:[#allocation13 + $0x1a0] sm:$0xff]
        %v1803 = vld [vmem:[#allocation13 + $0x1a8] sm:$0xff]
        %v1804 = vld [vmem:[#allocation13 + $0x1b0] sm:$0xff]
        %v1805 = vld [vmem:[#allocation13 + $0x1b8] sm:$0xff]
        %v1806 = vld [vmem:[#allocation13 + $0x1c0] sm:$0xff]
        %v1807 = vld [vmem:[#allocation13 + $0x1c8] sm:$0xff]
        %v1808 = vld [vmem:[#allocation13 + $0x1d0] sm:$0xff]
        %v1809 = vld [vmem:[#allocation13 + $0x1d8] sm:$0xff]
        %v1810 = vld [vmem:[#allocation13 + $0x1e0] sm:$0xff]
        %v1811 = vld [vmem:[#allocation13 + $0x1e8] sm:$0xff]
        %v1812 = vld [vmem:[#allocation13 + $0x1f0] sm:$0xff]
        %v1813 = vld [vmem:[#allocation13 + $0x1f8] sm:$0xff]
        %v1814 = vld [vmem:[#allocation13 + $0x200] sm:$0xff]
        %v1815 = vld [vmem:[#allocation13 + $0x208] sm:$0xff]
        %v1816 = vld [vmem:[#allocation13 + $0x210] sm:$0xff]
        %v1817 = vld [vmem:[#allocation13 + $0x218] sm:$0xff]
        %v1818 = vld [vmem:[#allocation13 + $0x220] sm:$0xff]
        %v1819 = vld [vmem:[#allocation13 + $0x228] sm:$0xff]
        %v1820 = vld [vmem:[#allocation13 + $0x230] sm:$0xff]
        %v1821 = vld [vmem:[#allocation13 + $0x238] sm:$0xff]
        %v1822 = vld [vmem:[#allocation13 + $0x240] sm:$0xff]
        %v1823 = vld [vmem:[#allocation13 + $0x248] sm:$0xff]
        %v1824 = vld [vmem:[#allocation13 + $0x250] sm:$0xff]
        %v1825 = vld [vmem:[#allocation13 + $0x258] sm:$0xff]
        %v1826 = vld [vmem:[#allocation13 + $0x260] sm:$0xff]
        %v1827 = vld [vmem:[#allocation13 + $0x268] sm:$0xff]
        %v1828 = vld [vmem:[#allocation13 + $0x270] sm:$0xff]
        %v1829 = vld [vmem:[#allocation13 + $0x278] sm:$0xff]
        %v1830 = vld [vmem:[#allocation13 + $0x280] sm:$0xff]
        %v1831 = vld [vmem:[#allocation13 + $0x288] sm:$0xff]
        %v1832 = vld [vmem:[#allocation13 + $0x290] sm:$0xff]
        %v1833 = vld [vmem:[#allocation13 + $0x298] sm:$0xff]
        %v1834 = vld [vmem:[#allocation13 + $0x2a0] sm:$0xff]
        %v1835 = vld [vmem:[#allocation13 + $0x2a8] sm:$0xff]
        %v1836 = vld [vmem:[#allocation13 + $0x2b0] sm:$0xff]
        %v1837 = vld [vmem:[#allocation13 + $0x2b8] sm:$0xff]
        %v1838 = vld [vmem:[#allocation13 + $0x2c0] sm:$0xff]
        %v1839 = vld [vmem:[#allocation13 + $0x2c8] sm:$0xff]
        %v1840 = vld [vmem:[#allocation13 + $0x2d0] sm:$0xff]
        %v1841 = vld [vmem:[#allocation13 + $0x2d8] sm:$0xff]
        %v1842 = vld [vmem:[#allocation13 + $0x2e0] sm:$0xff]
        %v1843 = vld [vmem:[#allocation13 + $0x2e8] sm:$0xff]
        %v1844 = vld [vmem:[#allocation13 + $0x2f0] sm:$0xff]
        %v1845 = vld [vmem:[#allocation13 + $0x2f8] sm:$0xff]
        %v1846 = vld [vmem:[#allocation13 + $0x300] sm:$0xff]
        %v1847 = vld [vmem:[#allocation13 + $0x308] sm:$0xff]
        %v1848 = vld [vmem:[#allocation13 + $0x310] sm:$0xff]
        %v1849 = vld [vmem:[#allocation13 + $0x318] sm:$0xff]
        %v1850 = vld [vmem:[#allocation13 + $0x320] sm:$0xff]
        %v1851 = vld [vmem:[#allocation13 + $0x328] sm:$0xff]
        %v1852 = vld [vmem:[#allocation13 + $0x330] sm:$0xff]
        %v1853 = vld [vmem:[#allocation13 + $0x338] sm:$0xff]
        %v1854 = vld [vmem:[#allocation13 + $0x340] sm:$0xff]
        %v1855 = vld [vmem:[#allocation13 + $0x348] sm:$0xff]
        %v1856 = vld [vmem:[#allocation13 + $0x350] sm:$0xff]
        %v1857 = vld [vmem:[#allocation13 + $0x358] sm:$0xff]
        %v1858 = vld [vmem:[#allocation13 + $0x360] sm:$0xff]
        %v1859 = vld [vmem:[#allocation13 + $0x368] sm:$0xff]
        %v1860 = vld [vmem:[#allocation13 + $0x370] sm:$0xff]
        %v1861 = vld [vmem:[#allocation13 + $0x378] sm:$0xff]
        %v1862 = vld [vmem:[#allocation13 + $0x380] sm:$0xff]
        %v1863 = vld [vmem:[#allocation13 + $0x388] sm:$0xff]
        %v1864 = vld [vmem:[#allocation13 + $0x390] sm:$0xff]
        %v1865 = vld [vmem:[#allocation13 + $0x398] sm:$0xff]
        %v1866 = vld [vmem:[#allocation13 + $0x3a0] sm:$0xff]
        %v1867 = vld [vmem:[#allocation13 + $0x3a8] sm:$0xff]
        %v1868 = vld [vmem:[#allocation13 + $0x3b0] sm:$0xff]
        %v1869 = vld [vmem:[#allocation13 + $0x3b8] sm:$0xff]
        %v1870 = vld [vmem:[#allocation13 + $0x3c0] sm:$0xff]
        %v1871 = vld [vmem:[#allocation13 + $0x3c8] sm:$0xff]
        %v1872 = vld [vmem:[#allocation13 + $0x3d0] sm:$0xff]
        %v1873 = vld [vmem:[#allocation13 + $0x3d8] sm:$0xff]
        %v1874 = vld [vmem:[#allocation13 + $0x3e0] sm:$0xff]
        %v1875 = vld [vmem:[#allocation13 + $0x3e8] sm:$0xff]
        %v1876 = vld [vmem:[#allocation13 + $0x3f0] sm:$0xff]
        %v1877 = vld [vmem:[#allocation13 + $0x3f8] sm:$0xff]
        %s1878 = scalar_lea.vmem [#allocation13], 1024
        %v1879 = vld [vmem:[%s1878] sm:$0xff]
        %v1880 = vld [vmem:[%s1878 + $0x8] sm:$0xff]
        %v1881 = vld [vmem:[%s1878 + $0x10] sm:$0xff]
        %v1882 = vld [vmem:[%s1878 + $0x18] sm:$0xff]
        %v1883 = vld [vmem:[%s1878 + $0x20] sm:$0xff]
        %v1884 = vld [vmem:[%s1878 + $0x28] sm:$0xff]
        %v1885 = vld [vmem:[%s1878 + $0x30] sm:$0xff]
        %v1886 = vld [vmem:[%s1878 + $0x38] sm:$0xff]
        %v1887 = vld [vmem:[%s1878 + $0x40] sm:$0xff]
        %v1888 = vld [vmem:[%s1878 + $0x48] sm:$0xff]
        %v1889 = vld [vmem:[%s1878 + $0x50] sm:$0xff]
        %v1890 = vld [vmem:[%s1878 + $0x58] sm:$0xff]
        %v1891 = vld [vmem:[%s1878 + $0x60] sm:$0xff]
        %v1892 = vld [vmem:[%s1878 + $0x68] sm:$0xff]
        %v1893 = vld [vmem:[%s1878 + $0x70] sm:$0xff]
        %v1894 = vld [vmem:[%s1878 + $0x78] sm:$0xff]
        %v1895 = vld [vmem:[%s1878 + $0x80] sm:$0xff]
        %v1896 = vld [vmem:[%s1878 + $0x88] sm:$0xff]
        %v1897 = vld [vmem:[%s1878 + $0x90] sm:$0xff]
        %v1898 = vld [vmem:[%s1878 + $0x98] sm:$0xff]
        %v1899 = vld [vmem:[%s1878 + $0xa0] sm:$0xff]
        %v1900 = vld [vmem:[%s1878 + $0xa8] sm:$0xff]
        %v1901 = vld [vmem:[%s1878 + $0xb0] sm:$0xff]
        %v1902 = vld [vmem:[%s1878 + $0xb8] sm:$0xff]
        %v1903 = vld [vmem:[%s1878 + $0xc0] sm:$0xff]
        %v1904 = vld [vmem:[%s1878 + $0xc8] sm:$0xff]
        %v1905 = vld [vmem:[%s1878 + $0xd0] sm:$0xff]
        %v1906 = vld [vmem:[%s1878 + $0xd8] sm:$0xff]
        %v1907 = vld [vmem:[%s1878 + $0xe0] sm:$0xff]
        %v1908 = vld [vmem:[%s1878 + $0xe8] sm:$0xff]
        %v1909 = vld [vmem:[%s1878 + $0xf0] sm:$0xff]
        %v1910 = vld [vmem:[%s1878 + $0xf8] sm:$0xff]
        %v1911 = vld [vmem:[%s1878 + $0x100] sm:$0xff]
        %v1912 = vld [vmem:[%s1878 + $0x108] sm:$0xff]
        %v1913 = vld [vmem:[%s1878 + $0x110] sm:$0xff]
        %v1914 = vld [vmem:[%s1878 + $0x118] sm:$0xff]
        %v1915 = vld [vmem:[%s1878 + $0x120] sm:$0xff]
        %v1916 = vld [vmem:[%s1878 + $0x128] sm:$0xff]
        %v1917 = vld [vmem:[%s1878 + $0x130] sm:$0xff]
        %v1918 = vld [vmem:[%s1878 + $0x138] sm:$0xff]
        %v1919 = vld [vmem:[%s1878 + $0x140] sm:$0xff]
        %v1920 = vld [vmem:[%s1878 + $0x148] sm:$0xff]
        %v1921 = vld [vmem:[%s1878 + $0x150] sm:$0xff]
        %v1922 = vld [vmem:[%s1878 + $0x158] sm:$0xff]
        %v1923 = vld [vmem:[%s1878 + $0x160] sm:$0xff]
        %v1924 = vld [vmem:[%s1878 + $0x168] sm:$0xff]
        %v1925 = vld [vmem:[%s1878 + $0x170] sm:$0xff]
        %v1926 = vld [vmem:[%s1878 + $0x178] sm:$0xff]
        %v1927 = vld [vmem:[%s1878 + $0x180] sm:$0xff]
        %v1928 = vld [vmem:[%s1878 + $0x188] sm:$0xff]
        %v1929 = vld [vmem:[%s1878 + $0x190] sm:$0xff]
        %v1930 = vld [vmem:[%s1878 + $0x198] sm:$0xff]
        %v1931 = vld [vmem:[%s1878 + $0x1a0] sm:$0xff]
        %v1932 = vld [vmem:[%s1878 + $0x1a8] sm:$0xff]
        %v1933 = vld [vmem:[%s1878 + $0x1b0] sm:$0xff]
        %v1934 = vld [vmem:[%s1878 + $0x1b8] sm:$0xff]
        %v1935 = vld [vmem:[%s1878 + $0x1c0] sm:$0xff]
        %v1936 = vld [vmem:[%s1878 + $0x1c8] sm:$0xff]
        %v1937 = vld [vmem:[%s1878 + $0x1d0] sm:$0xff]
        %v1938 = vld [vmem:[%s1878 + $0x1d8] sm:$0xff]
        %v1939 = vld [vmem:[%s1878 + $0x1e0] sm:$0xff]
        %v1940 = vld [vmem:[%s1878 + $0x1e8] sm:$0xff]
        %v1941 = vld [vmem:[%s1878 + $0x1f0] sm:$0xff]
        %v1942 = vld [vmem:[%s1878 + $0x1f8] sm:$0xff]
        %v1943 = vld [vmem:[%s1878 + $0x200] sm:$0xff]
        %v1944 = vld [vmem:[%s1878 + $0x208] sm:$0xff]
        %v1945 = vld [vmem:[%s1878 + $0x210] sm:$0xff]
        %v1946 = vld [vmem:[%s1878 + $0x218] sm:$0xff]
        %v1947 = vld [vmem:[%s1878 + $0x220] sm:$0xff]
        %v1948 = vld [vmem:[%s1878 + $0x228] sm:$0xff]
        %v1949 = vld [vmem:[%s1878 + $0x230] sm:$0xff]
        %v1950 = vld [vmem:[%s1878 + $0x238] sm:$0xff]
        %v1951 = vld [vmem:[%s1878 + $0x240] sm:$0xff]
        %v1952 = vld [vmem:[%s1878 + $0x248] sm:$0xff]
        %v1953 = vld [vmem:[%s1878 + $0x250] sm:$0xff]
        %v1954 = vld [vmem:[%s1878 + $0x258] sm:$0xff]
        %v1955 = vld [vmem:[%s1878 + $0x260] sm:$0xff]
        %v1956 = vld [vmem:[%s1878 + $0x268] sm:$0xff]
        %v1957 = vld [vmem:[%s1878 + $0x270] sm:$0xff]
        %v1958 = vld [vmem:[%s1878 + $0x278] sm:$0xff]
        %v1959 = vld [vmem:[%s1878 + $0x280] sm:$0xff]
        %v1960 = vld [vmem:[%s1878 + $0x288] sm:$0xff]
        %v1961 = vld [vmem:[%s1878 + $0x290] sm:$0xff]
        %v1962 = vld [vmem:[%s1878 + $0x298] sm:$0xff]
        %v1963 = vld [vmem:[%s1878 + $0x2a0] sm:$0xff]
        %v1964 = vld [vmem:[%s1878 + $0x2a8] sm:$0xff]
        %v1965 = vld [vmem:[%s1878 + $0x2b0] sm:$0xff]
        %v1966 = vld [vmem:[%s1878 + $0x2b8] sm:$0xff]
        %v1967 = vld [vmem:[%s1878 + $0x2c0] sm:$0xff]
        %v1968 = vld [vmem:[%s1878 + $0x2c8] sm:$0xff]
        %v1969 = vld [vmem:[%s1878 + $0x2d0] sm:$0xff]
        %v1970 = vld [vmem:[%s1878 + $0x2d8] sm:$0xff]
        %v1971 = vld [vmem:[%s1878 + $0x2e0] sm:$0xff]
        %v1972 = vld [vmem:[%s1878 + $0x2e8] sm:$0xff]
        %v1973 = vld [vmem:[%s1878 + $0x2f0] sm:$0xff]
        %v1974 = vld [vmem:[%s1878 + $0x2f8] sm:$0xff]
        %v1975 = vld [vmem:[%s1878 + $0x300] sm:$0xff]
        %v1976 = vld [vmem:[%s1878 + $0x308] sm:$0xff]
        %v1977 = vld [vmem:[%s1878 + $0x310] sm:$0xff]
        %v1978 = vld [vmem:[%s1878 + $0x318] sm:$0xff]
        %v1979 = vld [vmem:[%s1878 + $0x320] sm:$0xff]
        %v1980 = vld [vmem:[%s1878 + $0x328] sm:$0xff]
        %v1981 = vld [vmem:[%s1878 + $0x330] sm:$0xff]
        %v1982 = vld [vmem:[%s1878 + $0x338] sm:$0xff]
        %v1983 = vld [vmem:[%s1878 + $0x340] sm:$0xff]
        %v1984 = vld [vmem:[%s1878 + $0x348] sm:$0xff]
        %v1985 = vld [vmem:[%s1878 + $0x350] sm:$0xff]
        %v1986 = vld [vmem:[%s1878 + $0x358] sm:$0xff]
        %v1987 = vld [vmem:[%s1878 + $0x360] sm:$0xff]
        %v1988 = vld [vmem:[%s1878 + $0x368] sm:$0xff]
        %v1989 = vld [vmem:[%s1878 + $0x370] sm:$0xff]
        %v1990 = vld [vmem:[%s1878 + $0x378] sm:$0xff]
        %v1991 = vld [vmem:[%s1878 + $0x380] sm:$0xff]
        %v1992 = vld [vmem:[%s1878 + $0x388] sm:$0xff]
        %v1993 = vld [vmem:[%s1878 + $0x390] sm:$0xff]
        %v1994 = vld [vmem:[%s1878 + $0x398] sm:$0xff]
        %v1995 = vld [vmem:[%s1878 + $0x3a0] sm:$0xff]
        %v1996 = vld [vmem:[%s1878 + $0x3a8] sm:$0xff]
        %v1997 = vld [vmem:[%s1878 + $0x3b0] sm:$0xff]
        %v1998 = vld [vmem:[%s1878 + $0x3b8] sm:$0xff]
        %v1999 = vld [vmem:[%s1878 + $0x3c0] sm:$0xff]
        %v2000 = vld [vmem:[%s1878 + $0x3c8] sm:$0xff]
        %v2001 = vld [vmem:[%s1878 + $0x3d0] sm:$0xff]
        %v2002 = vld [vmem:[%s1878 + $0x3d8] sm:$0xff]
        %v2003 = vld [vmem:[%s1878 + $0x3e0] sm:$0xff]
        %v2004 = vld [vmem:[%s1878 + $0x3e8] sm:$0xff]
        %v2005 = vld [vmem:[%s1878 + $0x3f0] sm:$0xff]
        %v2006 = vld [vmem:[%s1878 + $0x3f8] sm:$0xff]
        %2007 = vmatprep.subr.mxu0 %v1940
        %2008 = vmatpush1.msra.mxu0 %v1939
        %2009 = vmatprep.subr.mxu0 %v1936
        %2010 = vmatpush1.msra.mxu0 %v1935
        %2011 = vmatprep.subr.mxu0 %v1932
        %2012 = vmatpush1.msra.mxu0 %v1931
        %2013 = vmatprep.subr.mxu0 %v1928
        %2014 = vmatpush1.msra.mxu0 %v1927
        %2015 = vmatprep.subr.mxu0 %v1924
        %2016 = vmatpush1.msra.mxu0 %v1923
        %2017 = vmatprep.subr.mxu0 %v1920
        %2018 = vmatpush1.msra.mxu0 %v1919
        %2019 = vmatprep.subr.mxu0 %v1916
        %2020 = vmatpush1.msra.mxu0 %v1915
        %2021 = vmatprep.subr.mxu0 %v1912
        %2022 = vmatpush1.msra.mxu0 %v1911
        %2023 = vmatprep.subr.mxu0 %v1908
        %2024 = vmatpush1.msra.mxu0 %v1907
        %2025 = vmatprep.subr.mxu0 %v1904
        %2026 = vmatpush1.msra.mxu0 %v1903
        %2027 = vmatprep.subr.mxu0 %v1900
        %2028 = vmatpush1.msra.mxu0 %v1899
        %2029 = vmatprep.subr.mxu0 %v1896
        %2030 = vmatpush1.msra.mxu0 %v1895
        %2031 = vmatprep.subr.mxu0 %v1892
        %2032 = vmatpush1.msra.mxu0 %v1891
        %2033 = vmatprep.subr.mxu0 %v1888
        %2034 = vmatpush1.msra.mxu0 %v1887
        %2035 = vmatprep.subr.mxu0 %v1884
        %2036 = vmatpush1.msra.mxu0 %v1883
        %2037 = vmatprep.subr.mxu0 %v1880
        %2038 = vmatpush1.msra.mxu0 %v1879
        %2039 = vmatprep.subr.mxu0 %v2004
        %2040 = vmatpush2.msra.mxu0 %v2003
        %2041 = vmatprep.subr.mxu0 %v2000
        %2042 = vmatpush2.msra.mxu0 %v1999
        %2043 = vmatprep.subr.mxu0 %v1996
        %2044 = vmatpush2.msra.mxu0 %v1995
        %2045 = vmatprep.subr.mxu0 %v1992
        %2046 = vmatpush2.msra.mxu0 %v1991
        %2047 = vmatprep.subr.mxu0 %v1988
        %2048 = vmatpush2.msra.mxu0 %v1987
        %2049 = vmatprep.subr.mxu0 %v1984
        %2050 = vmatpush2.msra.mxu0 %v1983
        %2051 = vmatprep.subr.mxu0 %v1980
        %2052 = vmatpush2.msra.mxu0 %v1979
        %2053 = vmatprep.subr.mxu0 %v1976
        %2054 = vmatpush2.msra.mxu0 %v1975
        %2055 = vmatprep.subr.mxu0 %v1972
        %2056 = vmatpush2.msra.mxu0 %v1971
        %2057 = vmatprep.subr.mxu0 %v1968
        %2058 = vmatpush2.msra.mxu0 %v1967
        %2059 = vmatprep.subr.mxu0 %v1964
        %2060 = vmatpush2.msra.mxu0 %v1963
        %2061 = vmatprep.subr.mxu0 %v1960
        %2062 = vmatpush2.msra.mxu0 %v1959
        %2063 = vmatprep.subr.mxu0 %v1956
        %2064 = vmatpush2.msra.mxu0 %v1955
        %2065 = vmatprep.subr.mxu0 %v1952
        %2066 = vmatpush2.msra.mxu0 %v1951
        %2067 = vmatprep.subr.mxu0 %v1948
        %2068 = vmatpush2.msra.mxu0 %v1947
        %2069 = vmatprep.subr.mxu0 %v1944
        %2070 = vmatpush2.msra.mxu0 %v1943
        %2071 = vmatprep.mubr.f32.mxu0 %v1654
        %2072 = vmatmul.mubr.f32.gmra.mxu0 %v1653
        %v2073 = vpop.f32.mrf.mxu0
        %v2074 = vadd.f32 0.0, %v2073
        %v2075 = vpop.f32.mrf.mxu0
        %v2076 = vadd.f32 0.0, %v2075
        %2077 = vmatprep.mubr.f32.mxu0 %v1656
        %2078 = vmatmul.mubr.f32.gmra.mxu0 %v1655
        %v2079 = vpop.f32.mrf.mxu0
        %v2080 = vadd.f32 0.0, %v2079
        %v2081 = vpop.f32.mrf.mxu0
        %v2082 = vadd.f32 0.0, %v2081
        %2083 = vmatprep.mubr.f32.mxu0 %v1658
        %2084 = vmatmul.mubr.f32.gmra.mxu0 %v1657
        %v2085 = vpop.f32.mrf.mxu0
        %v2086 = vadd.f32 0.0, %v2085
        %v2087 = vpop.f32.mrf.mxu0
        %v2088 = vadd.f32 0.0, %v2087
        %2089 = vmatprep.mubr.f32.mxu0 %v1660
        %2090 = vmatmul.mubr.f32.gmra.mxu0 %v1659
        %v2091 = vpop.f32.mrf.mxu0
        %v2092 = vadd.f32 0.0, %v2091
        %v2093 = vpop.f32.mrf.mxu0
        %v2094 = vadd.f32 0.0, %v2093
        %2095 = vdwg.mxu0
        %2096 = vmatprep.subr.mxu0 %v1942
        %2097 = vmatpush1.msra.mxu0 %v1941
        %2098 = vmatprep.subr.mxu0 %v1938
        %2099 = vmatpush1.msra.mxu0 %v1937
        %2100 = vmatprep.subr.mxu0 %v1934
        %2101 = vmatpush1.msra.mxu0 %v1933
        %2102 = vmatprep.subr.mxu0 %v1930
        %2103 = vmatpush1.msra.mxu0 %v1929
        %2104 = vmatprep.subr.mxu0 %v1926
        %2105 = vmatpush1.msra.mxu0 %v1925
        %2106 = vmatprep.subr.mxu0 %v1922
        %2107 = vmatpush1.msra.mxu0 %v1921
        %2108 = vmatprep.subr.mxu0 %v1918
        %2109 = vmatpush1.msra.mxu0 %v1917
        %2110 = vmatprep.subr.mxu0 %v1914
        %2111 = vmatpush1.msra.mxu0 %v1913
        %2112 = vmatprep.subr.mxu0 %v1910
        %2113 = vmatpush1.msra.mxu0 %v1909
        %2114 = vmatprep.subr.mxu0 %v1906
        %2115 = vmatpush1.msra.mxu0 %v1905
        %2116 = vmatprep.subr.mxu0 %v1902
        %2117 = vmatpush1.msra.mxu0 %v1901
        %2118 = vmatprep.subr.mxu0 %v1898
        %2119 = vmatpush1.msra.mxu0 %v1897
        %2120 = vmatprep.subr.mxu0 %v1894
        %2121 = vmatpush1.msra.mxu0 %v1893
        %2122 = vmatprep.subr.mxu0 %v1890
        %2123 = vmatpush1.msra.mxu0 %v1889
        %2124 = vmatprep.subr.mxu0 %v1886
        %2125 = vmatpush1.msra.mxu0 %v1885
        %2126 = vmatprep.subr.mxu0 %v1882
        %2127 = vmatpush1.msra.mxu0 %v1881
        %2128 = vmatprep.subr.mxu0 %v2006
        %2129 = vmatpush2.msra.mxu0 %v2005
        %2130 = vmatprep.subr.mxu0 %v2002
        %2131 = vmatpush2.msra.mxu0 %v2001
        %2132 = vmatprep.subr.mxu0 %v1998
        %2133 = vmatpush2.msra.mxu0 %v1997
        %2134 = vmatprep.subr.mxu0 %v1994
        %2135 = vmatpush2.msra.mxu0 %v1993
        %2136 = vmatprep.subr.mxu0 %v1990
        %2137 = vmatpush2.msra.mxu0 %v1989
        %2138 = vmatprep.subr.mxu0 %v1986
        %2139 = vmatpush2.msra.mxu0 %v1985
        %2140 = vmatprep.subr.mxu0 %v1982
        %2141 = vmatpush2.msra.mxu0 %v1981
        %2142 = vmatprep.subr.mxu0 %v1978
        %2143 = vmatpush2.msra.mxu0 %v1977
        %2144 = vmatprep.subr.mxu0 %v1974
        %2145 = vmatpush2.msra.mxu0 %v1973
        %2146 = vmatprep.subr.mxu0 %v1970
        %2147 = vmatpush2.msra.mxu0 %v1969
        %2148 = vmatprep.subr.mxu0 %v1966
        %2149 = vmatpush2.msra.mxu0 %v1965
        %2150 = vmatprep.subr.mxu0 %v1962
        %2151 = vmatpush2.msra.mxu0 %v1961
        %2152 = vmatprep.subr.mxu0 %v1958
        %2153 = vmatpush2.msra.mxu0 %v1957
        %2154 = vmatprep.subr.mxu0 %v1954
        %2155 = vmatpush2.msra.mxu0 %v1953
        %2156 = vmatprep.subr.mxu0 %v1950
        %2157 = vmatpush2.msra.mxu0 %v1949
        %2158 = vmatprep.subr.mxu0 %v1946
        %2159 = vmatpush2.msra.mxu0 %v1945
        %2160 = vmatprep.mubr.f32.mxu0 %v1654
        %2161 = vmatmul.mubr.f32.gmra.mxu0 %v1653
        %v2162 = vpop.f32.mrf.mxu0
        %v2163 = vadd.f32 0.0, %v2162
        %v2164 = vpop.f32.mrf.mxu0
        %v2165 = vadd.f32 0.0, %v2164
        %2166 = vmatprep.mubr.f32.mxu0 %v1656
        %2167 = vmatmul.mubr.f32.gmra.mxu0 %v1655
        %v2168 = vpop.f32.mrf.mxu0
        %v2169 = vadd.f32 0.0, %v2168
        %v2170 = vpop.f32.mrf.mxu0
        %v2171 = vadd.f32 0.0, %v2170
        %2172 = vmatprep.mubr.f32.mxu0 %v1658
        %2173 = vmatmul.mubr.f32.gmra.mxu0 %v1657
        %v2174 = vpop.f32.mrf.mxu0
        %v2175 = vadd.f32 0.0, %v2174
        %v2176 = vpop.f32.mrf.mxu0
        %v2177 = vadd.f32 0.0, %v2176
        %2178 = vmatprep.mubr.f32.mxu0 %v1660
        %2179 = vmatmul.mubr.f32.gmra.mxu0 %v1659
        %v2180 = vpop.f32.mrf.mxu0
        %v2181 = vadd.f32 0.0, %v2180
        %v2182 = vpop.f32.mrf.mxu0
        %v2183 = vadd.f32 0.0, %v2182
        %2184 = vdwg.mxu0
        %2185 = vmatprep.subr.mxu0 %v1811
        %2186 = vmatpush1.msra.mxu0 %v1810
        %2187 = vmatprep.subr.mxu0 %v1807
        %2188 = vmatpush1.msra.mxu0 %v1806
        %2189 = vmatprep.subr.mxu0 %v1803
        %2190 = vmatpush1.msra.mxu0 %v1802
        %2191 = vmatprep.subr.mxu0 %v1799
        %2192 = vmatpush1.msra.mxu0 %v1798
        %2193 = vmatprep.subr.mxu0 %v1795
        %2194 = vmatpush1.msra.mxu0 %v1794
        %2195 = vmatprep.subr.mxu0 %v1791
        %2196 = vmatpush1.msra.mxu0 %v1790
        %2197 = vmatprep.subr.mxu0 %v1787
        %2198 = vmatpush1.msra.mxu0 %v1786
        %2199 = vmatprep.subr.mxu0 %v1783
        %2200 = vmatpush1.msra.mxu0 %v1782
        %2201 = vmatprep.subr.mxu0 %v1779
        %2202 = vmatpush1.msra.mxu0 %v1778
        %2203 = vmatprep.subr.mxu0 %v1775
        %2204 = vmatpush1.msra.mxu0 %v1774
        %2205 = vmatprep.subr.mxu0 %v1771
        %2206 = vmatpush1.msra.mxu0 %v1770
        %2207 = vmatprep.subr.mxu0 %v1767
        %2208 = vmatpush1.msra.mxu0 %v1766
        %2209 = vmatprep.subr.mxu0 %v1763
        %2210 = vmatpush1.msra.mxu0 %v1762
        %2211 = vmatprep.subr.mxu0 %v1759
        %2212 = vmatpush1.msra.mxu0 %v1758
        %2213 = vmatprep.subr.mxu0 %v1755
        %2214 = vmatpush1.msra.mxu0 %v1754
        %2215 = vmatprep.subr.mxu0 %v1751
        %2216 = vmatpush1.msra.mxu0 %v1750
        %2217 = vmatprep.subr.mxu0 %v1875
        %2218 = vmatpush2.msra.mxu0 %v1874
        %2219 = vmatprep.subr.mxu0 %v1871
        %2220 = vmatpush2.msra.mxu0 %v1870
        %2221 = vmatprep.subr.mxu0 %v1867
        %2222 = vmatpush2.msra.mxu0 %v1866
        %2223 = vmatprep.subr.mxu0 %v1863
        %2224 = vmatpush2.msra.mxu0 %v1862
        %2225 = vmatprep.subr.mxu0 %v1859
        %2226 = vmatpush2.msra.mxu0 %v1858
        %2227 = vmatprep.subr.mxu0 %v1855
        %2228 = vmatpush2.msra.mxu0 %v1854
        %2229 = vmatprep.subr.mxu0 %v1851
        %2230 = vmatpush2.msra.mxu0 %v1850
        %2231 = vmatprep.subr.mxu0 %v1847
        %2232 = vmatpush2.msra.mxu0 %v1846
        %2233 = vmatprep.subr.mxu0 %v1843
        %2234 = vmatpush2.msra.mxu0 %v1842
        %2235 = vmatprep.subr.mxu0 %v1839
        %2236 = vmatpush2.msra.mxu0 %v1838
        %2237 = vmatprep.subr.mxu0 %v1835
        %2238 = vmatpush2.msra.mxu0 %v1834
        %2239 = vmatprep.subr.mxu0 %v1831
        %2240 = vmatpush2.msra.mxu0 %v1830
        %2241 = vmatprep.subr.mxu0 %v1827
        %2242 = vmatpush2.msra.mxu0 %v1826
        %2243 = vmatprep.subr.mxu0 %v1823
        %2244 = vmatpush2.msra.mxu0 %v1822
        %2245 = vmatprep.subr.mxu0 %v1819
        %2246 = vmatpush2.msra.mxu0 %v1818
        %2247 = vmatprep.subr.mxu0 %v1815
        %2248 = vmatpush2.msra.mxu0 %v1814
        %2249 = vmatprep.mubr.f32.mxu0 %v1730
        %2250 = vmatmul.mubr.f32.gmra.mxu0 %v1728
        %v2251 = vpop.f32.mrf.mxu0
        %v2252 = vadd.f32 %v2074, %v2251
        %v2253 = vpop.f32.mrf.mxu0
        %v2254 = vadd.f32 %v2076, %v2253
        %2255 = vmatprep.mubr.f32.mxu0 %v1736
        %2256 = vmatmul.mubr.f32.gmra.mxu0 %v1734
        %v2257 = vpop.f32.mrf.mxu0
        %v2258 = vadd.f32 %v2080, %v2257
        %v2259 = vpop.f32.mrf.mxu0
        %v2260 = vadd.f32 %v2082, %v2259
        %2261 = vmatprep.mubr.f32.mxu0 %v1742
        %2262 = vmatmul.mubr.f32.gmra.mxu0 %v1740
        %v2263 = vpop.f32.mrf.mxu0
        %v2264 = vadd.f32 %v2086, %v2263
        %v2265 = vpop.f32.mrf.mxu0
        %v2266 = vadd.f32 %v2088, %v2265
        %2267 = vmatprep.mubr.f32.mxu0 %v1748
        %2268 = vmatmul.mubr.f32.gmra.mxu0 %v1746
        %v2269 = vpop.f32.mrf.mxu0
        %v2270 = vadd.f32 %v2092, %v2269
        %v2271 = vpop.f32.mrf.mxu0
        %v2272 = vadd.f32 %v2094, %v2271
        %2273 = vdwg.mxu0
        %2274 = vmatprep.subr.mxu0 %v1813
        %2275 = vmatpush1.msra.mxu0 %v1812
        %2276 = vmatprep.subr.mxu0 %v1809
        %2277 = vmatpush1.msra.mxu0 %v1808
        %2278 = vmatprep.subr.mxu0 %v1805
        %2279 = vmatpush1.msra.mxu0 %v1804
        %2280 = vmatprep.subr.mxu0 %v1801
        %2281 = vmatpush1.msra.mxu0 %v1800
        %2282 = vmatprep.subr.mxu0 %v1797
        %2283 = vmatpush1.msra.mxu0 %v1796
        %2284 = vmatprep.subr.mxu0 %v1793
        %2285 = vmatpush1.msra.mxu0 %v1792
        %2286 = vmatprep.subr.mxu0 %v1789
        %2287 = vmatpush1.msra.mxu0 %v1788
        %2288 = vmatprep.subr.mxu0 %v1785
        %2289 = vmatpush1.msra.mxu0 %v1784
        %2290 = vmatprep.subr.mxu0 %v1781
        %2291 = vmatpush1.msra.mxu0 %v1780
        %2292 = vmatprep.subr.mxu0 %v1777
        %2293 = vmatpush1.msra.mxu0 %v1776
        %2294 = vmatprep.subr.mxu0 %v1773
        %2295 = vmatpush1.msra.mxu0 %v1772
        %2296 = vmatprep.subr.mxu0 %v1769
        %2297 = vmatpush1.msra.mxu0 %v1768
        %2298 = vmatprep.subr.mxu0 %v1765
        %2299 = vmatpush1.msra.mxu0 %v1764
        %2300 = vmatprep.subr.mxu0 %v1761
        %2301 = vmatpush1.msra.mxu0 %v1760
        %2302 = vmatprep.subr.mxu0 %v1757
        %2303 = vmatpush1.msra.mxu0 %v1756
        %2304 = vmatprep.subr.mxu0 %v1753
        %2305 = vmatpush1.msra.mxu0 %v1752
        %2306 = vmatprep.subr.mxu0 %v1877
        %2307 = vmatpush2.msra.mxu0 %v1876
        %2308 = vmatprep.subr.mxu0 %v1873
        %2309 = vmatpush2.msra.mxu0 %v1872
        %2310 = vmatprep.subr.mxu0 %v1869
        %2311 = vmatpush2.msra.mxu0 %v1868
        %2312 = vmatprep.subr.mxu0 %v1865
        %2313 = vmatpush2.msra.mxu0 %v1864
        %2314 = vmatprep.subr.mxu0 %v1861
        %2315 = vmatpush2.msra.mxu0 %v1860
        %2316 = vmatprep.subr.mxu0 %v1857
        %2317 = vmatpush2.msra.mxu0 %v1856
        %2318 = vmatprep.subr.mxu0 %v1853
        %2319 = vmatpush2.msra.mxu0 %v1852
        %2320 = vmatprep.subr.mxu0 %v1849
        %2321 = vmatpush2.msra.mxu0 %v1848
        %2322 = vmatprep.subr.mxu0 %v1845
        %2323 = vmatpush2.msra.mxu0 %v1844
        %2324 = vmatprep.subr.mxu0 %v1841
        %2325 = vmatpush2.msra.mxu0 %v1840
        %2326 = vmatprep.subr.mxu0 %v1837
        %2327 = vmatpush2.msra.mxu0 %v1836
        %2328 = vmatprep.subr.mxu0 %v1833
        %2329 = vmatpush2.msra.mxu0 %v1832
        %2330 = vmatprep.subr.mxu0 %v1829
        %2331 = vmatpush2.msra.mxu0 %v1828
        %2332 = vmatprep.subr.mxu0 %v1825
        %2333 = vmatpush2.msra.mxu0 %v1824
        %2334 = vmatprep.subr.mxu0 %v1821
        %2335 = vmatpush2.msra.mxu0 %v1820
        %2336 = vmatprep.subr.mxu0 %v1817
        %2337 = vmatpush2.msra.mxu0 %v1816
        %2338 = vmatprep.mubr.f32.mxu0 %v1730
        %2339 = vmatmul.mubr.f32.gmra.mxu0 %v1728
        %v2340 = vpop.f32.mrf.mxu0
        %v2341 = vadd.f32 %v2163, %v2340
        %v2342 = vpop.f32.mrf.mxu0
        %v2343 = vadd.f32 %v2165, %v2342
        %2344 = vmatprep.mubr.f32.mxu0 %v1736
        %2345 = vmatmul.mubr.f32.gmra.mxu0 %v1734
        %v2346 = vpop.f32.mrf.mxu0
        %v2347 = vadd.f32 %v2169, %v2346
        %v2348 = vpop.f32.mrf.mxu0
        %v2349 = vadd.f32 %v2171, %v2348
        %2350 = vmatprep.mubr.f32.mxu0 %v1742
        %2351 = vmatmul.mubr.f32.gmra.mxu0 %v1740
        %v2352 = vpop.f32.mrf.mxu0
        %v2353 = vadd.f32 %v2175, %v2352
        %v2354 = vpop.f32.mrf.mxu0
        %v2355 = vadd.f32 %v2177, %v2354
        %2356 = vmatprep.mubr.f32.mxu0 %v1748
        %2357 = vmatmul.mubr.f32.gmra.mxu0 %v1746
        %v2358 = vpop.f32.mrf.mxu0
        %v2359 = vadd.f32 %v2181, %v2358
        %v2360 = vpop.f32.mrf.mxu0
        %v2361 = vadd.f32 %v2183, %v2360
        %2362 = vdwg.mxu0
        %2363 = vmatprep.subr.mxu0 0.0
        %2364 = vmatpush1.msra.mxu0 0.0
        %2365 = vmatprep.subr.mxu0 0.0
        %2366 = vmatpush1.msra.mxu0 0.0
        %2367 = vmatprep.subr.mxu0 0.0
        %2368 = vmatpush1.msra.mxu0 0.0
        %2369 = vmatprep.subr.mxu0 0.0
        %2370 = vmatpush1.msra.mxu0 0.0
        %2371 = vmatprep.subr.mxu0 0.0
        %2372 = vmatpush1.msra.mxu0 0.0
        %2373 = vmatprep.subr.mxu0 0.0
        %2374 = vmatpush1.msra.mxu0 0.0
        %2375 = vmatprep.subr.mxu0 0.0
        %2376 = vmatpush1.msra.mxu0 0.0
        %2377 = vmatprep.subr.mxu0 0.0
        %2378 = vmatpush1.msra.mxu0 0.0
        %2379 = vmatprep.subr.mxu0 0.0
        %2380 = vmatpush1.msra.mxu0 0.0
        %2381 = vmatprep.subr.mxu0 0.0
        %2382 = vmatpush1.msra.mxu0 0.0
        %2383 = vmatprep.subr.mxu0 0.0
        %2384 = vmatpush1.msra.mxu0 0.0
        %2385 = vmatprep.subr.mxu0 0.0
        %2386 = vmatpush1.msra.mxu0 0.0
        %2387 = vmatprep.subr.mxu0 %v1660
        %2388 = vmatpush1.msra.mxu0 %v1659
        %2389 = vmatprep.subr.mxu0 %v1658
        %2390 = vmatpush1.msra.mxu0 %v1657
        %2391 = vmatprep.subr.mxu0 %v1656
        %2392 = vmatpush1.msra.mxu0 %v1655
        %2393 = vmatprep.subr.mxu0 %v1654
        %2394 = vmatpush1.msra.mxu0 %v1653
        %2395 = vmatprep.subr.mxu0 0.0
        %2396 = vmatpush2.msra.mxu0 0.0
        %2397 = vmatprep.subr.mxu0 0.0
        %2398 = vmatpush2.msra.mxu0 0.0
        %2399 = vmatprep.subr.mxu0 0.0
        %2400 = vmatpush2.msra.mxu0 0.0
        %2401 = vmatprep.subr.mxu0 0.0
        %2402 = vmatpush2.msra.mxu0 0.0
        %2403 = vmatprep.subr.mxu0 0.0
        %2404 = vmatpush2.msra.mxu0 0.0
        %2405 = vmatprep.subr.mxu0 0.0
        %2406 = vmatpush2.msra.mxu0 0.0
        %2407 = vmatprep.subr.mxu0 0.0
        %2408 = vmatpush2.msra.mxu0 0.0
        %2409 = vmatprep.subr.mxu0 0.0
        %2410 = vmatpush2.msra.mxu0 0.0
        %2411 = vmatprep.subr.mxu0 0.0
        %2412 = vmatpush2.msra.mxu0 0.0
        %2413 = vmatprep.subr.mxu0 0.0
        %2414 = vmatpush2.msra.mxu0 0.0
        %2415 = vmatprep.subr.mxu0 0.0
        %2416 = vmatpush2.msra.mxu0 0.0
        %2417 = vmatprep.subr.mxu0 0.0
        %2418 = vmatpush2.msra.mxu0 0.0
        %2419 = vmatprep.subr.mxu0 0.0
        %2420 = vmatpush2.msra.mxu0 0.0
        %2421 = vmatprep.subr.mxu0 0.0
        %2422 = vmatpush2.msra.mxu0 0.0
        %2423 = vmatprep.subr.mxu0 0.0
        %2424 = vmatpush2.msra.mxu0 0.0
        %2425 = vmatprep.subr.mxu0 0.0
        %2426 = vmatpush2.msra.mxu0 0.0
        %2427 = vmatprep.mubr.f32.mxu0 0.0
        %2428 = vmatmul.mubr.f32.gmra.mxu0 %v1059
        %v2429 = vpop.f32.mrf.mxu0
        %v2430 = vadd.f32 0.0, %v2429
        %v2431 = vpop.f32.mrf.mxu0
        %v2432 = vadd.f32 0.0, %v2431
        %2433 = vmatprep.mubr.f32.mxu0 0.0
        %2434 = vmatmul.mubr.f32.gmra.mxu0 %v1062
        %v2435 = vpop.f32.mrf.mxu0
        %v2436 = vadd.f32 0.0, %v2435
        %v2437 = vpop.f32.mrf.mxu0
        %v2438 = vadd.f32 0.0, %v2437
        %2439 = vmatprep.mubr.f32.mxu0 0.0
        %2440 = vmatmul.mubr.f32.gmra.mxu0 %v1065
        %v2441 = vpop.f32.mrf.mxu0
        %v2442 = vadd.f32 0.0, %v2441
        %v2443 = vpop.f32.mrf.mxu0
        %v2444 = vadd.f32 0.0, %v2443
        %2445 = vmatprep.mubr.f32.mxu0 0.0
        %2446 = vmatmul.mubr.f32.gmra.mxu0 %v1068
        %v2447 = vpop.f32.mrf.mxu0
        %v2448 = vadd.f32 0.0, %v2447
        %v2449 = vpop.f32.mrf.mxu0
        %v2450 = vadd.f32 0.0, %v2449
        %2451 = vdwg.mxu0
        %s2452 = scalar_lea.vmem [#allocation13], 2048
        %v2453 = vld [vmem:[%s2452] sm:$0xff]
        %v2454 = vld [vmem:[%s2452 + $0x8] sm:$0xff]
        %v2455 = vld [vmem:[%s2452 + $0x10] sm:$0xff]
        %v2456 = vld [vmem:[%s2452 + $0x18] sm:$0xff]
        %v2457 = vld [vmem:[%s2452 + $0x20] sm:$0xff]
        %v2458 = vld [vmem:[%s2452 + $0x28] sm:$0xff]
        %v2459 = vld [vmem:[%s2452 + $0x30] sm:$0xff]
        %v2460 = vld [vmem:[%s2452 + $0x38] sm:$0xff]
        %v2461 = vld [vmem:[%s2452 + $0x40] sm:$0xff]
        %v2462 = vld [vmem:[%s2452 + $0x48] sm:$0xff]
        %v2463 = vld [vmem:[%s2452 + $0x50] sm:$0xff]
        %v2464 = vld [vmem:[%s2452 + $0x58] sm:$0xff]
        %v2465 = vld [vmem:[%s2452 + $0x60] sm:$0xff]
        %v2466 = vld [vmem:[%s2452 + $0x68] sm:$0xff]
        %v2467 = vld [vmem:[%s2452 + $0x70] sm:$0xff]
        %v2468 = vld [vmem:[%s2452 + $0x78] sm:$0xff]
        %v2469 = vld [vmem:[%s2452 + $0x80] sm:$0xff]
        %v2470 = vld [vmem:[%s2452 + $0x88] sm:$0xff]
        %v2471 = vld [vmem:[%s2452 + $0x90] sm:$0xff]
        %v2472 = vld [vmem:[%s2452 + $0x98] sm:$0xff]
        %v2473 = vld [vmem:[%s2452 + $0xa0] sm:$0xff]
        %v2474 = vld [vmem:[%s2452 + $0xa8] sm:$0xff]
        %v2475 = vld [vmem:[%s2452 + $0xb0] sm:$0xff]
        %v2476 = vld [vmem:[%s2452 + $0xb8] sm:$0xff]
        %v2477 = vld [vmem:[%s2452 + $0xc0] sm:$0xff]
        %v2478 = vld [vmem:[%s2452 + $0xc8] sm:$0xff]
        %v2479 = vld [vmem:[%s2452 + $0xd0] sm:$0xff]
        %v2480 = vld [vmem:[%s2452 + $0xd8] sm:$0xff]
        %v2481 = vld [vmem:[%s2452 + $0xe0] sm:$0xff]
        %v2482 = vld [vmem:[%s2452 + $0xe8] sm:$0xff]
        %v2483 = vld [vmem:[%s2452 + $0xf0] sm:$0xff]
        %v2484 = vld [vmem:[%s2452 + $0xf8] sm:$0xff]
        %v2485 = vld [vmem:[%s2452 + $0x100] sm:$0xff]
        %v2486 = vld [vmem:[%s2452 + $0x108] sm:$0xff]
        %v2487 = vld [vmem:[%s2452 + $0x110] sm:$0xff]
        %v2488 = vld [vmem:[%s2452 + $0x118] sm:$0xff]
        %v2489 = vld [vmem:[%s2452 + $0x120] sm:$0xff]
        %v2490 = vld [vmem:[%s2452 + $0x128] sm:$0xff]
        %v2491 = vld [vmem:[%s2452 + $0x130] sm:$0xff]
        %v2492 = vld [vmem:[%s2452 + $0x138] sm:$0xff]
        %v2493 = vld [vmem:[%s2452 + $0x140] sm:$0xff]
        %v2494 = vld [vmem:[%s2452 + $0x148] sm:$0xff]
        %v2495 = vld [vmem:[%s2452 + $0x150] sm:$0xff]
        %v2496 = vld [vmem:[%s2452 + $0x158] sm:$0xff]
        %v2497 = vld [vmem:[%s2452 + $0x160] sm:$0xff]
        %v2498 = vld [vmem:[%s2452 + $0x168] sm:$0xff]
        %v2499 = vld [vmem:[%s2452 + $0x170] sm:$0xff]
        %v2500 = vld [vmem:[%s2452 + $0x178] sm:$0xff]
        %v2501 = vld [vmem:[%s2452 + $0x180] sm:$0xff]
        %v2502 = vld [vmem:[%s2452 + $0x188] sm:$0xff]
        %v2503 = vld [vmem:[%s2452 + $0x190] sm:$0xff]
        %v2504 = vld [vmem:[%s2452 + $0x198] sm:$0xff]
        %v2505 = vld [vmem:[%s2452 + $0x1a0] sm:$0xff]
        %v2506 = vld [vmem:[%s2452 + $0x1a8] sm:$0xff]
        %v2507 = vld [vmem:[%s2452 + $0x1b0] sm:$0xff]
        %v2508 = vld [vmem:[%s2452 + $0x1b8] sm:$0xff]
        %v2509 = vld [vmem:[%s2452 + $0x1c0] sm:$0xff]
        %v2510 = vld [vmem:[%s2452 + $0x1c8] sm:$0xff]
        %v2511 = vld [vmem:[%s2452 + $0x1d0] sm:$0xff]
        %v2512 = vld [vmem:[%s2452 + $0x1d8] sm:$0xff]
        %v2513 = vld [vmem:[%s2452 + $0x1e0] sm:$0xff]
        %v2514 = vld [vmem:[%s2452 + $0x1e8] sm:$0xff]
        %v2515 = vld [vmem:[%s2452 + $0x1f0] sm:$0xff]
        %v2516 = vld [vmem:[%s2452 + $0x1f8] sm:$0xff]
        %v2517 = vld [vmem:[%s2452 + $0x200] sm:$0xff]
        %v2518 = vld [vmem:[%s2452 + $0x208] sm:$0xff]
        %v2519 = vld [vmem:[%s2452 + $0x210] sm:$0xff]
        %v2520 = vld [vmem:[%s2452 + $0x218] sm:$0xff]
        %v2521 = vld [vmem:[%s2452 + $0x220] sm:$0xff]
        %v2522 = vld [vmem:[%s2452 + $0x228] sm:$0xff]
        %v2523 = vld [vmem:[%s2452 + $0x230] sm:$0xff]
        %v2524 = vld [vmem:[%s2452 + $0x238] sm:$0xff]
        %v2525 = vld [vmem:[%s2452 + $0x240] sm:$0xff]
        %v2526 = vld [vmem:[%s2452 + $0x248] sm:$0xff]
        %v2527 = vld [vmem:[%s2452 + $0x250] sm:$0xff]
        %v2528 = vld [vmem:[%s2452 + $0x258] sm:$0xff]
        %v2529 = vld [vmem:[%s2452 + $0x260] sm:$0xff]
        %v2530 = vld [vmem:[%s2452 + $0x268] sm:$0xff]
        %v2531 = vld [vmem:[%s2452 + $0x270] sm:$0xff]
        %v2532 = vld [vmem:[%s2452 + $0x278] sm:$0xff]
        %v2533 = vld [vmem:[%s2452 + $0x280] sm:$0xff]
        %v2534 = vld [vmem:[%s2452 + $0x288] sm:$0xff]
        %v2535 = vld [vmem:[%s2452 + $0x290] sm:$0xff]
        %v2536 = vld [vmem:[%s2452 + $0x298] sm:$0xff]
        %v2537 = vld [vmem:[%s2452 + $0x2a0] sm:$0xff]
        %v2538 = vld [vmem:[%s2452 + $0x2a8] sm:$0xff]
        %v2539 = vld [vmem:[%s2452 + $0x2b0] sm:$0xff]
        %v2540 = vld [vmem:[%s2452 + $0x2b8] sm:$0xff]
        %v2541 = vld [vmem:[%s2452 + $0x2c0] sm:$0xff]
        %v2542 = vld [vmem:[%s2452 + $0x2c8] sm:$0xff]
        %v2543 = vld [vmem:[%s2452 + $0x2d0] sm:$0xff]
        %v2544 = vld [vmem:[%s2452 + $0x2d8] sm:$0xff]
        %v2545 = vld [vmem:[%s2452 + $0x2e0] sm:$0xff]
        %v2546 = vld [vmem:[%s2452 + $0x2e8] sm:$0xff]
        %v2547 = vld [vmem:[%s2452 + $0x2f0] sm:$0xff]
        %v2548 = vld [vmem:[%s2452 + $0x2f8] sm:$0xff]
        %v2549 = vld [vmem:[%s2452 + $0x300] sm:$0xff]
        %v2550 = vld [vmem:[%s2452 + $0x308] sm:$0xff]
        %v2551 = vld [vmem:[%s2452 + $0x310] sm:$0xff]
        %v2552 = vld [vmem:[%s2452 + $0x318] sm:$0xff]
        %v2553 = vld [vmem:[%s2452 + $0x320] sm:$0xff]
        %v2554 = vld [vmem:[%s2452 + $0x328] sm:$0xff]
        %v2555 = vld [vmem:[%s2452 + $0x330] sm:$0xff]
        %v2556 = vld [vmem:[%s2452 + $0x338] sm:$0xff]
        %v2557 = vld [vmem:[%s2452 + $0x340] sm:$0xff]
        %v2558 = vld [vmem:[%s2452 + $0x348] sm:$0xff]
        %v2559 = vld [vmem:[%s2452 + $0x350] sm:$0xff]
        %v2560 = vld [vmem:[%s2452 + $0x358] sm:$0xff]
        %v2561 = vld [vmem:[%s2452 + $0x360] sm:$0xff]
        %v2562 = vld [vmem:[%s2452 + $0x368] sm:$0xff]
        %v2563 = vld [vmem:[%s2452 + $0x370] sm:$0xff]
        %v2564 = vld [vmem:[%s2452 + $0x378] sm:$0xff]
        %v2565 = vld [vmem:[%s2452 + $0x380] sm:$0xff]
        %v2566 = vld [vmem:[%s2452 + $0x388] sm:$0xff]
        %v2567 = vld [vmem:[%s2452 + $0x390] sm:$0xff]
        %v2568 = vld [vmem:[%s2452 + $0x398] sm:$0xff]
        %v2569 = vld [vmem:[%s2452 + $0x3a0] sm:$0xff]
        %v2570 = vld [vmem:[%s2452 + $0x3a8] sm:$0xff]
        %v2571 = vld [vmem:[%s2452 + $0x3b0] sm:$0xff]
        %v2572 = vld [vmem:[%s2452 + $0x3b8] sm:$0xff]
        %v2573 = vld [vmem:[%s2452 + $0x3c0] sm:$0xff]
        %v2574 = vld [vmem:[%s2452 + $0x3c8] sm:$0xff]
        %v2575 = vld [vmem:[%s2452 + $0x3d0] sm:$0xff]
        %v2576 = vld [vmem:[%s2452 + $0x3d8] sm:$0xff]
        %v2577 = vld [vmem:[%s2452 + $0x3e0] sm:$0xff]
        %v2578 = vld [vmem:[%s2452 + $0x3e8] sm:$0xff]
        %v2579 = vld [vmem:[%s2452 + $0x3f0] sm:$0xff]
        %v2580 = vld [vmem:[%s2452 + $0x3f8] sm:$0xff]
        %2581 = vmatprep.subr.mxu0 %v2514
        %2582 = vmatpush1.msra.mxu0 %v2513
        %2583 = vmatprep.subr.mxu0 %v2510
        %2584 = vmatpush1.msra.mxu0 %v2509
        %2585 = vmatprep.subr.mxu0 %v2506
        %2586 = vmatpush1.msra.mxu0 %v2505
        %2587 = vmatprep.subr.mxu0 %v2502
        %2588 = vmatpush1.msra.mxu0 %v2501
        %2589 = vmatprep.subr.mxu0 %v2498
        %2590 = vmatpush1.msra.mxu0 %v2497
        %2591 = vmatprep.subr.mxu0 %v2494
        %2592 = vmatpush1.msra.mxu0 %v2493
        %2593 = vmatprep.subr.mxu0 %v2490
        %2594 = vmatpush1.msra.mxu0 %v2489
        %2595 = vmatprep.subr.mxu0 %v2486
        %2596 = vmatpush1.msra.mxu0 %v2485
        %2597 = vmatprep.subr.mxu0 %v2482
        %2598 = vmatpush1.msra.mxu0 %v2481
        %2599 = vmatprep.subr.mxu0 %v2478
        %2600 = vmatpush1.msra.mxu0 %v2477
        %2601 = vmatprep.subr.mxu0 %v2474
        %2602 = vmatpush1.msra.mxu0 %v2473
        %2603 = vmatprep.subr.mxu0 %v2470
        %2604 = vmatpush1.msra.mxu0 %v2469
        %2605 = vmatprep.subr.mxu0 %v2466
        %2606 = vmatpush1.msra.mxu0 %v2465
        %2607 = vmatprep.subr.mxu0 %v2462
        %2608 = vmatpush1.msra.mxu0 %v2461
        %2609 = vmatprep.subr.mxu0 %v2458
        %2610 = vmatpush1.msra.mxu0 %v2457
        %2611 = vmatprep.subr.mxu0 %v2454
        %2612 = vmatpush1.msra.mxu0 %v2453
        %2613 = vmatprep.subr.mxu0 %v2578
        %2614 = vmatpush2.msra.mxu0 %v2577
        %2615 = vmatprep.subr.mxu0 %v2574
        %2616 = vmatpush2.msra.mxu0 %v2573
        %2617 = vmatprep.subr.mxu0 %v2570
        %2618 = vmatpush2.msra.mxu0 %v2569
        %2619 = vmatprep.subr.mxu0 %v2566
        %2620 = vmatpush2.msra.mxu0 %v2565
        %2621 = vmatprep.subr.mxu0 %v2562
        %2622 = vmatpush2.msra.mxu0 %v2561
        %2623 = vmatprep.subr.mxu0 %v2558
        %2624 = vmatpush2.msra.mxu0 %v2557
        %2625 = vmatprep.subr.mxu0 %v2554
        %2626 = vmatpush2.msra.mxu0 %v2553
        %2627 = vmatprep.subr.mxu0 %v2550
        %2628 = vmatpush2.msra.mxu0 %v2549
        %2629 = vmatprep.subr.mxu0 %v2546
        %2630 = vmatpush2.msra.mxu0 %v2545
        %2631 = vmatprep.subr.mxu0 %v2542
        %2632 = vmatpush2.msra.mxu0 %v2541
        %2633 = vmatprep.subr.mxu0 %v2538
        %2634 = vmatpush2.msra.mxu0 %v2537
        %2635 = vmatprep.subr.mxu0 %v2534
        %2636 = vmatpush2.msra.mxu0 %v2533
        %2637 = vmatprep.subr.mxu0 %v2530
        %2638 = vmatpush2.msra.mxu0 %v2529
        %2639 = vmatprep.subr.mxu0 %v2526
        %2640 = vmatpush2.msra.mxu0 %v2525
        %2641 = vmatprep.subr.mxu0 %v2522
        %2642 = vmatpush2.msra.mxu0 %v2521
        %2643 = vmatprep.subr.mxu0 %v2518
        %2644 = vmatpush2.msra.mxu0 %v2517
        %2645 = vmatprep.mubr.f32.mxu0 %v2432
        %2646 = vmatmul.mubr.f32.gmra.mxu0 %v2430
        %v2647 = vpop.f32.mrf.mxu0
        %v2648 = vadd.f32 0.0, %v2647
        %v2649 = vpop.f32.mrf.mxu0
        %v2650 = vadd.f32 0.0, %v2649
        %2651 = vmatprep.mubr.f32.mxu0 %v2438
        %2652 = vmatmul.mubr.f32.gmra.mxu0 %v2436
        %v2653 = vpop.f32.mrf.mxu0
        %v2654 = vadd.f32 0.0, %v2653
        %v2655 = vpop.f32.mrf.mxu0
        %v2656 = vadd.f32 0.0, %v2655
        %2657 = vmatprep.mubr.f32.mxu0 %v2444
        %2658 = vmatmul.mubr.f32.gmra.mxu0 %v2442
        %v2659 = vpop.f32.mrf.mxu0
        %v2660 = vadd.f32 0.0, %v2659
        %v2661 = vpop.f32.mrf.mxu0
        %v2662 = vadd.f32 0.0, %v2661
        %2663 = vmatprep.mubr.f32.mxu0 %v2450
        %2664 = vmatmul.mubr.f32.gmra.mxu0 %v2448
        %v2665 = vpop.f32.mrf.mxu0
        %v2666 = vadd.f32 0.0, %v2665
        %v2667 = vpop.f32.mrf.mxu0
        %v2668 = vadd.f32 0.0, %v2667
        %2669 = vdwg.mxu0
        %2670 = vmatprep.subr.mxu0 %v2516
        %2671 = vmatpush1.msra.mxu0 %v2515
        %2672 = vmatprep.subr.mxu0 %v2512
        %2673 = vmatpush1.msra.mxu0 %v2511
        %2674 = vmatprep.subr.mxu0 %v2508
        %2675 = vmatpush1.msra.mxu0 %v2507
        %2676 = vmatprep.subr.mxu0 %v2504
        %2677 = vmatpush1.msra.mxu0 %v2503
        %2678 = vmatprep.subr.mxu0 %v2500
        %2679 = vmatpush1.msra.mxu0 %v2499
        %2680 = vmatprep.subr.mxu0 %v2496
        %2681 = vmatpush1.msra.mxu0 %v2495
        %2682 = vmatprep.subr.mxu0 %v2492
        %2683 = vmatpush1.msra.mxu0 %v2491
        %2684 = vmatprep.subr.mxu0 %v2488
        %2685 = vmatpush1.msra.mxu0 %v2487
        %2686 = vmatprep.subr.mxu0 %v2484
        %2687 = vmatpush1.msra.mxu0 %v2483
        %2688 = vmatprep.subr.mxu0 %v2480
        %2689 = vmatpush1.msra.mxu0 %v2479
        %2690 = vmatprep.subr.mxu0 %v2476
        %2691 = vmatpush1.msra.mxu0 %v2475
        %2692 = vmatprep.subr.mxu0 %v2472
        %2693 = vmatpush1.msra.mxu0 %v2471
        %2694 = vmatprep.subr.mxu0 %v2468
        %2695 = vmatpush1.msra.mxu0 %v2467
        %2696 = vmatprep.subr.mxu0 %v2464
        %2697 = vmatpush1.msra.mxu0 %v2463
        %2698 = vmatprep.subr.mxu0 %v2460
        %2699 = vmatpush1.msra.mxu0 %v2459
        %2700 = vmatprep.subr.mxu0 %v2456
        %2701 = vmatpush1.msra.mxu0 %v2455
        %2702 = vmatprep.subr.mxu0 %v2580
        %2703 = vmatpush2.msra.mxu0 %v2579
        %2704 = vmatprep.subr.mxu0 %v2576
        %2705 = vmatpush2.msra.mxu0 %v2575
        %2706 = vmatprep.subr.mxu0 %v2572
        %2707 = vmatpush2.msra.mxu0 %v2571
        %2708 = vmatprep.subr.mxu0 %v2568
        %2709 = vmatpush2.msra.mxu0 %v2567
        %2710 = vmatprep.subr.mxu0 %v2564
        %2711 = vmatpush2.msra.mxu0 %v2563
        %2712 = vmatprep.subr.mxu0 %v2560
        %2713 = vmatpush2.msra.mxu0 %v2559
        %2714 = vmatprep.subr.mxu0 %v2556
        %2715 = vmatpush2.msra.mxu0 %v2555
        %2716 = vmatprep.subr.mxu0 %v2552
        %2717 = vmatpush2.msra.mxu0 %v2551
        %2718 = vmatprep.subr.mxu0 %v2548
        %2719 = vmatpush2.msra.mxu0 %v2547
        %2720 = vmatprep.subr.mxu0 %v2544
        %2721 = vmatpush2.msra.mxu0 %v2543
        %2722 = vmatprep.subr.mxu0 %v2540
        %2723 = vmatpush2.msra.mxu0 %v2539
        %2724 = vmatprep.subr.mxu0 %v2536
        %2725 = vmatpush2.msra.mxu0 %v2535
        %2726 = vmatprep.subr.mxu0 %v2532
        %2727 = vmatpush2.msra.mxu0 %v2531
        %2728 = vmatprep.subr.mxu0 %v2528
        %2729 = vmatpush2.msra.mxu0 %v2527
        %2730 = vmatprep.subr.mxu0 %v2524
        %2731 = vmatpush2.msra.mxu0 %v2523
        %2732 = vmatprep.subr.mxu0 %v2520
        %2733 = vmatpush2.msra.mxu0 %v2519
        %2734 = vmatprep.mubr.f32.mxu0 %v2432
        %2735 = vmatmul.mubr.f32.gmra.mxu0 %v2430
        %v2736 = vpop.f32.mrf.mxu0
        %v2737 = vadd.f32 0.0, %v2736
        %v2738 = vpop.f32.mrf.mxu0
        %v2739 = vadd.f32 0.0, %v2738
        %2740 = vmatprep.mubr.f32.mxu0 %v2438
        %2741 = vmatmul.mubr.f32.gmra.mxu0 %v2436
        %v2742 = vpop.f32.mrf.mxu0
        %v2743 = vadd.f32 0.0, %v2742
        %v2744 = vpop.f32.mrf.mxu0
        %v2745 = vadd.f32 0.0, %v2744
        %2746 = vmatprep.mubr.f32.mxu0 %v2444
        %2747 = vmatmul.mubr.f32.gmra.mxu0 %v2442
        %v2748 = vpop.f32.mrf.mxu0
        %v2749 = vadd.f32 0.0, %v2748
        %v2750 = vpop.f32.mrf.mxu0
        %v2751 = vadd.f32 0.0, %v2750
        %2752 = vmatprep.mubr.f32.mxu0 %v2450
        %2753 = vmatmul.mubr.f32.gmra.mxu0 %v2448
        %v2754 = vpop.f32.mrf.mxu0
        %v2755 = vadd.f32 0.0, %v2754
        %v2756 = vpop.f32.mrf.mxu0
        %v2757 = vadd.f32 0.0, %v2756
        %2758 = vdwg.mxu0
        %v2759 = vadd.f32 %v2252, %v2648
        %v2760 = vadd.f32 %v2254, %v2650
        %v2761 = vadd.f32 %v2341, %v2737
        %v2762 = vadd.f32 %v2343, %v2739
        %v2763 = vadd.f32 %v2258, %v2654
        %v2764 = vadd.f32 %v2260, %v2656
        %v2765 = vadd.f32 %v2347, %v2743
        %v2766 = vadd.f32 %v2349, %v2745
        %v2767 = vadd.f32 %v2264, %v2660
        %v2768 = vadd.f32 %v2266, %v2662
        %v2769 = vadd.f32 %v2353, %v2749
        %v2770 = vadd.f32 %v2355, %v2751
        %v2771 = vadd.f32 %v2270, %v2666
        %v2772 = vadd.f32 %v2272, %v2668
        %v2773 = vadd.f32 %v2359, %v2755
        %v2774 = vadd.f32 %v2361, %v2757
        %v2775 = vld [vmem:[#allocation14] sm:$0xf]
        %v2777 = vlaneseq
        %v2778 = vshrl.u32 %v2777, 7
        %v2779 = vsub.s32 0, %v2778
        %v2780 = vrot.slane %v2775, %v2779
        %v2781 = vlaneseq
        %v2782 = vshrl.u32 %v2781, 7
        %v2783 = vsub.s32 1, %v2782
        %v2784 = vrot.slane %v2775, %v2783
        %v2785 = vlaneseq
        %v2786 = vshrl.u32 %v2785, 7
        %v2787 = vsub.s32 2, %v2786
        %v2788 = vrot.slane %v2775, %v2787
        %v2789 = vlaneseq
        %v2790 = vshrl.u32 %v2789, 7
        %v2791 = vsub.s32 3, %v2790
        %v2792 = vrot.slane %v2775, %v2791
        %v2797 = vadd.f32 %v2759, %v2780
        %v2798 = vadd.f32 %v2760, %v2784
        %v2799 = vadd.f32 %v2761, %v2788
        %v2800 = vadd.f32 %v2762, %v2792
        %v2801 = vadd.f32 %v2763, %v2780
        %v2802 = vadd.f32 %v2764, %v2784
        %v2803 = vadd.f32 %v2765, %v2788
        %v2804 = vadd.f32 %v2766, %v2792
        %v2805 = vadd.f32 %v2767, %v2780
        %v2806 = vadd.f32 %v2768, %v2784
        %v2807 = vadd.f32 %v2769, %v2788
        %v2808 = vadd.f32 %v2770, %v2792
        %v2809 = vadd.f32 %v2771, %v2780
        %v2810 = vadd.f32 %v2772, %v2784
        %v2811 = vadd.f32 %v2773, %v2788
        %v2812 = vadd.f32 %v2774, %v2792
        %v2813 = vmax.f32 %v2797, 0.0
        %v2814 = vmax.f32 %v2798, 0.0
        %v2815 = vmax.f32 %v2799, 0.0
        %v2816 = vmax.f32 %v2800, 0.0
        %v2817 = vmax.f32 %v2801, 0.0
        %v2818 = vmax.f32 %v2802, 0.0
        %v2819 = vmax.f32 %v2803, 0.0
        %v2820 = vmax.f32 %v2804, 0.0
        %v2821 = vmax.f32 %v2805, 0.0
        %v2822 = vmax.f32 %v2806, 0.0
        %v2823 = vmax.f32 %v2807, 0.0
        %v2824 = vmax.f32 %v2808, 0.0
        %v2825 = vmax.f32 %v2809, 0.0
        %v2826 = vmax.f32 %v2810, 0.0
        %v2827 = vmax.f32 %v2811, 0.0
        %v2828 = vmax.f32 %v2812, 0.0
        %v2829 = vadd.f32 %v2813, %v2814
        %v2830 = vadd.f32 %v2829, %v2815
        %v2831 = vadd.f32 %v2830, %v2816
        %2832 = vadd.xlane.f32.xlu0 %v2831
        %v2833 = vpop.xlane.xlu0 %2832
        %v2834 = vadd.f32 %v2817, %v2818
        %v2835 = vadd.f32 %v2834, %v2819
        %v2836 = vadd.f32 %v2835, %v2820
        %2837 = vadd.xlane.f32.xlu0 %v2836
        %v2838 = vpop.xlane.xlu0 %2837
        %v2839 = vadd.f32 %v2821, %v2822
        %v2840 = vadd.f32 %v2839, %v2823
        %v2841 = vadd.f32 %v2840, %v2824
        %2842 = vadd.xlane.f32.xlu0 %v2841
        %v2843 = vpop.xlane.xlu0 %2842
        %v2844 = vadd.f32 %v2825, %v2826
        %v2845 = vadd.f32 %v2844, %v2827
        %v2846 = vadd.f32 %v2845, %v2828
        %2847 = vadd.xlane.f32.xlu0 %v2846
        %v2848 = vpop.xlane.xlu0 %2847
        %v2849 = vrcp.pop 512.0
        %v2850 = vmul.f32 %v2833, %v2849
        %v2851 = vmul.f32 %v2838, %v2849
        %v2852 = vmul.f32 %v2843, %v2849
        %v2853 = vmul.f32 %v2848, %v2849
        %v2854 = vsub.f32 %v2813, %v2850
        %v2855 = vsub.f32 %v2814, %v2850
        %v2856 = vsub.f32 %v2815, %v2850
        %v2857 = vsub.f32 %v2816, %v2850
        %v2858 = vsub.f32 %v2817, %v2851
        %v2859 = vsub.f32 %v2818, %v2851
        %v2860 = vsub.f32 %v2819, %v2851
        %v2861 = vsub.f32 %v2820, %v2851
        %v2862 = vsub.f32 %v2821, %v2852
        %v2863 = vsub.f32 %v2822, %v2852
        %v2864 = vsub.f32 %v2823, %v2852
        %v2865 = vsub.f32 %v2824, %v2852
        %v2866 = vsub.f32 %v2825, %v2853
        %v2867 = vsub.f32 %v2826, %v2853
        %v2868 = vsub.f32 %v2827, %v2853
        %v2869 = vsub.f32 %v2828, %v2853
        %v2870 = vmul.f32 %v2854, %v2854
        %v2871 = vmul.f32 %v2855, %v2855
        %v2872 = vmul.f32 %v2856, %v2856
        %v2873 = vmul.f32 %v2857, %v2857
        %v2874 = vmul.f32 %v2858, %v2858
        %v2875 = vmul.f32 %v2859, %v2859
        %v2876 = vmul.f32 %v2860, %v2860
        %v2877 = vmul.f32 %v2861, %v2861
        %v2878 = vmul.f32 %v2862, %v2862
        %v2879 = vmul.f32 %v2863, %v2863
        %v2880 = vmul.f32 %v2864, %v2864
        %v2881 = vmul.f32 %v2865, %v2865
        %v2882 = vmul.f32 %v2866, %v2866
        %v2883 = vmul.f32 %v2867, %v2867
        %v2884 = vmul.f32 %v2868, %v2868
        %v2885 = vmul.f32 %v2869, %v2869
        %v2886 = vadd.f32 %v2870, %v2871
        %v2887 = vadd.f32 %v2886, %v2872
        %v2888 = vadd.f32 %v2887, %v2873
        %2889 = vadd.xlane.f32.xlu0 %v2888
        %v2890 = vpop.xlane.xlu0 %2889
        %v2891 = vadd.f32 %v2874, %v2875
        %v2892 = vadd.f32 %v2891, %v2876
        %v2893 = vadd.f32 %v2892, %v2877
        %2894 = vadd.xlane.f32.xlu0 %v2893
        %v2895 = vpop.xlane.xlu0 %2894
        %v2896 = vadd.f32 %v2878, %v2879
        %v2897 = vadd.f32 %v2896, %v2880
        %v2898 = vadd.f32 %v2897, %v2881
        %2899 = vadd.xlane.f32.xlu0 %v2898
        %v2900 = vpop.xlane.xlu0 %2899
        %v2901 = vadd.f32 %v2882, %v2883
        %v2902 = vadd.f32 %v2901, %v2884
        %v2903 = vadd.f32 %v2902, %v2885
        %2904 = vadd.xlane.f32.xlu0 %v2903
        %v2905 = vpop.xlane.xlu0 %2904
        %v2906 = vmul.f32 %v2890, %v2849
        %v2907 = vmul.f32 %v2895, %v2849
        %v2908 = vmul.f32 %v2900, %v2849
        %v2909 = vmul.f32 %v2905, %v2849
        %v2910 = vadd.f32 %v2906, 1e-05
        %v2911 = vadd.f32 %v2907, 1e-05
        %v2912 = vadd.f32 %v2908, 1e-05
        %v2913 = vadd.f32 %v2909, 1e-05
        %v2914 = vrsqrt.pop %v2910
        %v2915 = vrsqrt.pop %v2911
        %v2916 = vrsqrt.pop %v2912
        %v2917 = vrsqrt.pop %v2913
        %v2918 = vmul.f32 %v2854, %v2914
        %v2919 = vmul.f32 %v2855, %v2914
        %v2920 = vmul.f32 %v2856, %v2914
        %v2921 = vmul.f32 %v2857, %v2914
        %v2922 = vmul.f32 %v2858, %v2915
        %v2923 = vmul.f32 %v2859, %v2915
        %v2924 = vmul.f32 %v2860, %v2915
        %v2925 = vmul.f32 %v2861, %v2915
        %v2926 = vmul.f32 %v2862, %v2916
        %v2927 = vmul.f32 %v2863, %v2916
        %v2928 = vmul.f32 %v2864, %v2916
        %v2929 = vmul.f32 %v2865, %v2916
        %v2930 = vmul.f32 %v2866, %v2917
        %v2931 = vmul.f32 %v2867, %v2917
        %v2932 = vmul.f32 %v2868, %v2917
        %v2933 = vmul.f32 %v2869, %v2917
        %v2934 = vld [vmem:[#allocation16] sm:$0xf]
        %v2936 = vlaneseq
        %v2937 = vshrl.u32 %v2936, 7
        %v2938 = vsub.s32 0, %v2937
        %v2939 = vrot.slane %v2934, %v2938
        %v2940 = vlaneseq
        %v2941 = vshrl.u32 %v2940, 7
        %v2942 = vsub.s32 1, %v2941
        %v2943 = vrot.slane %v2934, %v2942
        %v2944 = vlaneseq
        %v2945 = vshrl.u32 %v2944, 7
        %v2946 = vsub.s32 2, %v2945
        %v2947 = vrot.slane %v2934, %v2946
        %v2948 = vlaneseq
        %v2949 = vshrl.u32 %v2948, 7
        %v2950 = vsub.s32 3, %v2949
        %v2951 = vrot.slane %v2934, %v2950
        %v2956 = vmul.f32 %v2918, %v2939
        %v2957 = vmul.f32 %v2919, %v2943
        %v2958 = vmul.f32 %v2920, %v2947
        %v2959 = vmul.f32 %v2921, %v2951
        %v2960 = vmul.f32 %v2922, %v2939
        %v2961 = vmul.f32 %v2923, %v2943
        %v2962 = vmul.f32 %v2924, %v2947
        %v2963 = vmul.f32 %v2925, %v2951
        %v2964 = vmul.f32 %v2926, %v2939
        %v2965 = vmul.f32 %v2927, %v2943
        %v2966 = vmul.f32 %v2928, %v2947
        %v2967 = vmul.f32 %v2929, %v2951
        %v2968 = vmul.f32 %v2930, %v2939
        %v2969 = vmul.f32 %v2931, %v2943
        %v2970 = vmul.f32 %v2932, %v2947
        %v2971 = vmul.f32 %v2933, %v2951
        %v2972 = vld [vmem:[#allocation17] sm:$0xf]
        %v2974 = vlaneseq
        %v2975 = vshrl.u32 %v2974, 7
        %v2976 = vsub.s32 0, %v2975
        %v2977 = vrot.slane %v2972, %v2976
        %v2978 = vlaneseq
        %v2979 = vshrl.u32 %v2978, 7
        %v2980 = vsub.s32 1, %v2979
        %v2981 = vrot.slane %v2972, %v2980
        %v2982 = vlaneseq
        %v2983 = vshrl.u32 %v2982, 7
        %v2984 = vsub.s32 2, %v2983
        %v2985 = vrot.slane %v2972, %v2984
        %v2986 = vlaneseq
        %v2987 = vshrl.u32 %v2986, 7
        %v2988 = vsub.s32 3, %v2987
        %v2989 = vrot.slane %v2972, %v2988
        %v2994 = vadd.f32 %v2956, %v2977
        %v2995 = vadd.f32 %v2957, %v2981
        %v2996 = vadd.f32 %v2958, %v2985
        %v2997 = vadd.f32 %v2959, %v2989
        %v2998 = vadd.f32 %v2960, %v2977
        %v2999 = vadd.f32 %v2961, %v2981
        %v3000 = vadd.f32 %v2962, %v2985
        %v3001 = vadd.f32 %v2963, %v2989
        %v3002 = vadd.f32 %v2964, %v2977
        %v3003 = vadd.f32 %v2965, %v2981
        %v3004 = vadd.f32 %v2966, %v2985
        %v3005 = vadd.f32 %v2967, %v2989
        %v3006 = vadd.f32 %v2968, %v2977
        %v3007 = vadd.f32 %v2969, %v2981
        %v3008 = vadd.f32 %v2970, %v2985
        %v3009 = vadd.f32 %v2971, %v2989
        %3010 = vst [vmem:[%s498] sm:$0xff] %v2994
        %3011 = vst [vmem:[%s498 + $0x8] sm:$0xff] %v2995
        %3012 = vst [vmem:[%s498 + $0x10] sm:$0xff] %v2996
        %3013 = vst [vmem:[%s498 + $0x18] sm:$0xff] %v2997
        %3014 = vst [vmem:[%s498 + $0x20] sm:$0xff] %v2998
        %3015 = vst [vmem:[%s498 + $0x28] sm:$0xff] %v2999
        %3016 = vst [vmem:[%s498 + $0x30] sm:$0xff] %v3000
        %3017 = vst [vmem:[%s498 + $0x38] sm:$0xff] %v3001
        %3018 = vst [vmem:[%s498 + $0x40] sm:$0xff] %v3002
        %3019 = vst [vmem:[%s498 + $0x48] sm:$0xff] %v3003
        %3020 = vst [vmem:[%s498 + $0x50] sm:$0xff] %v3004
        %3021 = vst [vmem:[%s498 + $0x58] sm:$0xff] %v3005
        %3022 = vst [vmem:[%s498 + $0x60] sm:$0xff] %v3006
        %3023 = vst [vmem:[%s498 + $0x68] sm:$0xff] %v3007
        %3024 = vst [vmem:[%s498 + $0x70] sm:$0xff] %v3008
        %3025 = vst [vmem:[%s498 + $0x78] sm:$0xff] %v3009
        %s3026 = sand.u32 %s255, 1
        %s3027 = scalar_lea.sflag [#allocation4], %s3026
        %s3028 = sand.u32 %s255, 1
        %s3029 = smul.addr %s3028, 128
        %s3030 = scalar_lea.vmem [#allocation19], %s3029
        // Predicated region
        $region101: #{tpu_custom_call.1} parent=59 // pred_check
          %p3031 = pneg %p265
        $region102: #{tpu_custom_call.1} parent=59 // pred_check_branch
          %3033 = sbr.rel (%p3031) target = $region104
        $region103: #{tpu_custom_call.1} parent=59 // pred_region
          %s3034 = smul.u32 4, %s32
          %s3036 = ssub.s32 2048, 2048
          %3037 = vsyncadd %s3027, %s3036
          %s3038 = smul.addr %s3034, 4
          %s3039 = smul.addr %s3038, 128
          %s3040 = scalar_lea.hbm %s10, %s3039
          %s3041 = sshll.u32 %s3030, 4
          %s3042 = int_to_ptr.vmem [resolvable:$true] %s3041
          %3047 = dma.vmem_to_hbm [thread:$0]  %s3042, 2048, %s3040, %s3027, 512, 512, 32
        $region104: #{tpu_custom_call.1} parent=59 // pred_fallthru
          _
      $region60: #{tpu_custom_call.1} parent=5 // pred_fallthru
        _
      %p3048 = scmp.le.s32.totalorder 2, %s27
      // Predicated region
      $region105: #{tpu_custom_call.1} parent=5 // pred_check
        %p3049 = pneg %p3048
      $region106: #{tpu_custom_call.1} parent=5 // pred_check_branch
        %3051 = sbr.rel (%p3049) target = $region108
      $region107: #{tpu_custom_call.1} parent=5 // pred_region
        %s3052 = ssub.s32 %s27, 2
        // Predicated region
        $region109: #{tpu_custom_call.1} parent=107 // pred_check
          %p3053 = pneg %p271
        $region110: #{tpu_custom_call.1} parent=107 // pred_check_branch
          %3055 = sbr.rel (%p3053) target = $region112
        $region111: #{tpu_custom_call.1} parent=107 // pred_region
          %s3056 = sand.u32 %s256, 1
          %s3057 = scalar_lea.sflag [#allocation4], %s3056
          %s3058 = sand.u32 %s256, 1
          %s3059 = smul.addr %s3058, 128
          %s3060 = scalar_lea.vmem [#allocation19], %s3059
          %3061 = dma.done %s3057, 2048
        $region112: #{tpu_custom_call.1} parent=107 // pred_fallthru
          _
      $region108: #{tpu_custom_call.1} parent=5 // pred_fallthru
        _
    $region6: #{tpu_custom_call.1} parent=1 // loop_footer
      %s31 = sadd.s32 1, %s27
    $region7: #{tpu_custom_call.1} parent=1 // loop_footer_branch
      %26 = sbr.rel target = $region3
    $region8: #{tpu_custom_call.1} parent=1 // loop_exit
      _
    %3062 = vsyncpa [#allocation3], 1
    %s3063 = scalar_lea.sflag [#allocation3], 1
    %3064 = vsyncpa %s3063, 1
    %3065 = vsyncpa [#allocation6], 1
    %3066 = vsyncpa [#allocation9], 1
    %3067 = vsyncpa [#allocation12], 1
    %3068 = vsyncpa [#allocation15], 1
    %3069 = vsyncpa [#allocation18], 1
    %3070 = vsyncpa [#allocation4], 1
    %s3071 = scalar_lea.sflag [#allocation4], 1
    %3072 = vsyncpa %s3071, 1

</llo_original>
